<compile_context>
chip_gen: v6e
topology: v6e:2x2x1
jax: 0.10.0
libtpu: 0.0.40
codegen_flags: <defaults>
</compile_context>

<pallas_src>
import jax
import jax.numpy as jnp
from jax.experimental import pallas as pl
from jax.experimental.pallas import tpu as pltpu

NUM_CHROM = 100          # H
PIECE_SIZE = 15          # W
C_IN = 6
C_MID = 20
K_RAW = C_IN * PIECE_SIZE   # 90 flattened conv1 features
K_PAD = 128                 # lane-aligned feature dim


def _round_up(n, m):
    return ((n + m - 1) // m) * m


def _sigmoid(x):
    # 1 / (1 + exp(-x)); exp + approximate reciprocal both run on the EUP slot,
    # which has slack in this HBM-bandwidth-bound regime.  Math stays in f32.
    return pl.reciprocal(1.0 + jnp.exp(-x), approx=True)


def epi_kernel(x_ref, w1_ref, b1_ref, w2_ref, b2_ref, w3_ref, b3_ref,
               w4_ref, b4_ref, out_ref):
    tb = out_ref.shape[-1]                        # batch-tile size (static)
    x = x_ref[0]                                  # (H*TB, 128) bf16, rows ordered (h, b)

    # conv1 (1 x piece_size) == matmul over the flattened (cin, w) features.
    h1 = jnp.dot(x, w1_ref[...], preferred_element_type=jnp.float32)       # (H*TB, 20)
    h1 = _sigmoid(h1 + b1_ref[...])

    # conv2 (1x1) == matmul over channels.
    h2 = jnp.dot(h1.astype(jnp.bfloat16), w2_ref[...],
                 preferred_element_type=jnp.float32)                        # (H*TB, 20)
    h2 = _sigmoid(h2 + b2_ref[...])

    # mean over H (dim=2 of NCHW): batch b's h-th row sits at row h*TB + b, so the
    # reduction is a tree-sum of 100 sublane-aligned (TB, 20) slabs on the VPU.
    # This replaces the old O(B^2) pooling matmul / jnp.kron matrix.
    slabs = [h2[h * tb:(h + 1) * tb] for h in range(NUM_CHROM)]
    while len(slabs) > 1:
        nxt = [a + c for a, c in zip(slabs[0::2], slabs[1::2])]
        if len(slabs) % 2:
            nxt.append(slabs[-1])
        slabs = nxt
    pooled = slabs[0] * (1.0 / NUM_CHROM)          # (TB, 20) f32

    # linear2, computed transposed (features on sublanes, batch on lanes) so everything
    # downstream -- including the output store -- is lane-dense.
    pooled_t = pooled.T.astype(jnp.bfloat16)       # (20, TB)
    h3 = jnp.dot(w3_ref[...], pooled_t, preferred_element_type=jnp.float32)  # (20, TB)
    h3 = _sigmoid(h3 + b3_ref[...])

    # linear3 (20 -> 1): VPU multiply + sublane reduce instead of an N=1 MXU matmul.
    h4 = jnp.sum(h3 * w4_ref[...], axis=0, keepdims=True) + b4_ref[...]      # (1, TB)
    out_ref[0] = _sigmoid(h4)


def epi_forward(x, kp):
    """x: (B, 6, NUM_CHROM, PIECE_SIZE) float32 (NCHW). Returns (B,) float32."""
    B = x.shape[0]
    H = NUM_CHROM
    # Batch tile: 128 for large B (~3.3 MiB bf16 x tile, in the measured 2-4 MiB sweet
    # spot and within the v7x VMEM budget); otherwise B rounded up to a multiple of 16
    # so in-kernel slices stay sublane-tile aligned.
    TB = 128 if B >= 128 else _round_up(B, 16)
    B_pad = _round_up(B, TB)
    nbt = B_pad // TB

    # NCHW -> (H, B, Cin*W); pad batch and features; regroup into per-tile slabs with
    # rows ordered (h, b): x_t[i, h*TB + t, k] = features of batch (i*TB + t), row h.
    xw = jnp.transpose(x, (2, 0, 1, 3)).reshape(H, B, K_RAW)
    xw = jnp.pad(xw, ((0, 0), (0, B_pad - B), (0, K_PAD - K_RAW)))
    xw = xw.reshape(H, nbt, TB, K_PAD).transpose(1, 0, 2, 3)
    x_t = xw.reshape(nbt, H * TB, K_PAD).astype(jnp.bfloat16)

    const = lambda i: (0, 0)                       # weights/biases stay VMEM-resident
    out = pl.pallas_call(
        epi_kernel,
        out_shape=jax.ShapeDtypeStruct((nbt, 1, TB), jnp.float32),
        grid=(nbt,),
        in_specs=[
            # x tile: double-buffered by the pipeline.  (If DMA is still exposed on
            # v6e, pipeline_mode=pl.Buffered(3) here is the next knob.)
            pl.BlockSpec((1, H * TB, K_PAD), lambda i: (i, 0, 0)),
            pl.BlockSpec((K_PAD, C_MID), const),   # w1 (128, 20) bf16
            pl.BlockSpec((1, C_MID), const),       # b1
            pl.BlockSpec((C_MID, C_MID), const),   # w2 (in, out) bf16
            pl.BlockSpec((1, C_MID), const),       # b2
            pl.BlockSpec((C_MID, C_MID), const),   # w3 (out, in) bf16
            pl.BlockSpec((C_MID, 1), const),       # b3
            pl.BlockSpec((C_MID, 1), const),       # w4 (20, 1) f32
            pl.BlockSpec((1, 1), const),           # b4
        ],
        out_specs=pl.BlockSpec((1, 1, TB), lambda i: (i, 0, 0)),  # lane-dense (1, TB)
        compiler_params=pltpu.CompilerParams(
            dimension_semantics=("parallel",),      # megacore-shard batch tiles (v7x)
            vmem_limit_bytes=40 * 1024 * 1024,      # headroom; < 64 MiB v7x physical
        ),
    )(x_t, kp["w1"], kp["b1"], kp["w2"], kp["b2"],
      kp["w3"], kp["b3"], kp["w4"], kp["b4"])
    return out.reshape(-1)[:B]


def init_raw_params(key):
    """Deterministic params in PyTorch-native shapes (uniform +-1/sqrt(fan_in))."""
    ks = jax.random.split(key, 8)

    def u(k, shape, fan_in):
        bound = 1.0 / jnp.sqrt(jnp.float32(fan_in))
        return jax.random.uniform(k, shape, jnp.float32, -bound, bound)

    return {
        "conv1_w": u(ks[0], (C_MID, C_IN, 1, PIECE_SIZE), C_IN * PIECE_SIZE),
        "conv1_b": u(ks[1], (C_MID,), C_IN * PIECE_SIZE),
        "conv2_w": u(ks[2], (C_MID, C_MID, 1, 1), C_MID),
        "conv2_b": u(ks[3], (C_MID,), C_MID),
        "lin2_w":  u(ks[4], (C_MID, C_MID), C_MID),
        "lin2_b":  u(ks[5], (C_MID,), C_MID),
        "lin3_w":  u(ks[6], (1, C_MID), C_MID),
        "lin3_b":  u(ks[7], (1,), C_MID),
    }


def pack_params(raw):
    """Convert to the kernel's matmul-friendly layouts (bf16 matmul weights, f32 biases)."""
    w1 = raw["conv1_w"].reshape(C_MID, K_RAW).T                     # (90, 20)
    w1 = jnp.pad(w1, ((0, K_PAD - K_RAW), (0, 0)))                  # (128, 20)
    return {
        "w1": w1.astype(jnp.bfloat16),
        "b1": raw["conv1_b"].reshape(1, C_MID).astype(jnp.float32),
        "w2": raw["conv2_w"].reshape(C_MID, C_MID).T.astype(jnp.bfloat16),  # (in, out)
        "b2": raw["conv2_b"].reshape(1, C_MID).astype(jnp.float32),
        "w3": raw["lin2_w"].astype(jnp.bfloat16),                           # (out, in)
        "b3": raw["lin2_b"].reshape(C_MID, 1).astype(jnp.float32),
        "w4": raw["lin3_w"].reshape(1, C_MID).T.astype(jnp.float32),        # (20, 1)
        "b4": raw["lin3_b"].reshape(1, 1).astype(jnp.float32),
    }


def ref_forward(x, raw):
    """Plain-JAX f32 reference using real convolutions (independent of the kernel math)."""
    y = jax.lax.conv_general_dilated(
        x, raw["conv1_w"], window_strides=(1, 1), padding="VALID",
        dimension_numbers=("NCHW", "OIHW", "NCHW"))
    y = jax.nn.sigmoid(y + raw["conv1_b"].reshape(1, C_MID, 1, 1))
    y = jax.lax.conv_general_dilated(
        y, raw["conv2_w"], window_strides=(1, 1), padding="VALID",
        dimension_numbers=("NCHW", "OIHW", "NCHW"))
    y = jax.nn.sigmoid(y + raw["conv2_b"].reshape(1, C_MID, 1, 1))
    y = y.mean(axis=2)                       # (B, 20, 1)
    y = y.reshape(y.shape[0], -1)            # (B, 20)
    y = jax.nn.sigmoid(y @ raw["lin2_w"].T + raw["lin2_b"])
    y = y @ raw["lin3_w"].T + raw["lin3_b"]  # (B, 1)
    return jax.nn.sigmoid(y.reshape(-1))


if __name__ == "__main__":
    key = jax.random.PRNGKey(0)
    kx, kw = jax.random.split(key)

    B = 2
    x = jax.random.normal(kx, (B, C_IN, NUM_CHROM, PIECE_SIZE), jnp.float32)

    raw = init_raw_params(kw)
    kp = pack_params(raw)

    out = jax.block_until_ready(jax.jit(epi_forward)(x, kp))
    ref = ref_forward(x, raw)

    assert out.shape == (B,)
    # bf16 matmul inputs + approximate reciprocal -> relaxed (but tight) tolerance.
    assert jnp.allclose(out, ref, atol=2e-2, rtol=2e-2), (out, ref)

    print("KERNEL_OK")
</pallas_src>

<mosaic_0001>
module attributes {stable_mosaic.version = 11 : i64} {
  func.func @epi_kernel(%arg0: i32, %arg1: memref<1x1600x128xbf16, #tpu.memory_space<vmem>>, %arg2: memref<128x20xbf16, #tpu.memory_space<vmem>>, %arg3: memref<1x20xf32, #tpu.memory_space<vmem>>, %arg4: memref<20x20xbf16, #tpu.memory_space<vmem>>, %arg5: memref<1x20xf32, #tpu.memory_space<vmem>>, %arg6: memref<20x20xbf16, #tpu.memory_space<vmem>>, %arg7: memref<20x1xf32, #tpu.memory_space<vmem>>, %arg8: memref<20x1xf32, #tpu.memory_space<vmem>>, %arg9: memref<1x1xf32, #tpu.memory_space<vmem>>, %arg10: memref<1x1x16xf32, #tpu.memory_space<vmem>>) attributes {dimension_semantics = [#tpu.dimension_semantics<parallel>], iteration_bounds = array<i64: 1>, scalar_prefetch = 0 : i64, scratch_operands = 0 : i64, tpu.core_type = #tpu.core_type<tc>, window_params = [{transform_indices = @transform_0, window_bounds = array<i64: 1, 1600, 128>}, {pipeline_mode = #tpu.pipeline_mode<synchronous>, transform_indices = @transform_1, window_bounds = array<i64: 128, 20>}, {pipeline_mode = #tpu.pipeline_mode<synchronous>, transform_indices = @transform_2, window_bounds = array<i64: 1, 20>}, {pipeline_mode = #tpu.pipeline_mode<synchronous>, transform_indices = @transform_3, window_bounds = array<i64: 20, 20>}, {pipeline_mode = #tpu.pipeline_mode<synchronous>, transform_indices = @transform_4, window_bounds = array<i64: 1, 20>}, {pipeline_mode = #tpu.pipeline_mode<synchronous>, transform_indices = @transform_5, window_bounds = array<i64: 20, 20>}, {pipeline_mode = #tpu.pipeline_mode<synchronous>, transform_indices = @transform_6, window_bounds = array<i64: 20, 1>}, {pipeline_mode = #tpu.pipeline_mode<synchronous>, transform_indices = @transform_7, window_bounds = array<i64: 20, 1>}, {pipeline_mode = #tpu.pipeline_mode<synchronous>, transform_indices = @transform_8, window_bounds = array<i64: 1, 1>}, {transform_indices = @transform_9, window_bounds = array<i64: 1, 1, 16>}]} {
    %c0 = arith.constant 0 : index
    %c0_0 = arith.constant 0 : index
    %c0_1 = arith.constant 0 : index
    %0 = vector.load %arg1[%c0, %c0_0, %c0_1] : memref<1x1600x128xbf16, #tpu.memory_space<vmem>>, vector<1x1600x128xbf16>
    %1 = vector.shape_cast %0 : vector<1x1600x128xbf16> to vector<1600x128xbf16>
    %c0_2 = arith.constant 0 : index
    %c0_3 = arith.constant 0 : index
    %2 = vector.load %arg2[%c0_2, %c0_3] : memref<128x20xbf16, #tpu.memory_space<vmem>>, vector<128x20xbf16>
    %cst = arith.constant dense<0.000000e+00> : vector<1600x20xf32>
    %3 = tpu.matmul %1, %2, %cst {dimension_numbers = #tpu.dot_dimension_numbers<[1], [0], [0], [1], [0, 0, 1, 1], [], []>} : vector<1600x128xbf16>, vector<128x20xbf16>, vector<1600x20xf32> -> vector<1600x20xf32>
    %c0_4 = arith.constant 0 : index
    %c0_5 = arith.constant 0 : index
    %4 = vector.load %arg3[%c0_4, %c0_5] : memref<1x20xf32, #tpu.memory_space<vmem>>, vector<1x20xf32>
    %5 = vector.broadcast %4 : vector<1x20xf32> to vector<1600x20xf32>
    %6 = arith.addf %3, %5 : vector<1600x20xf32>
    %cst_6 = arith.constant 0.000000e+00 : f32
    %7 = vector.broadcast %cst_6 : f32 to vector<1600x20xf32>
    %8 = arith.subf %7, %6 : vector<1600x20xf32>
    %9 = math.exp %8 : vector<1600x20xf32>
    %cst_7 = arith.constant 1.000000e+00 : f32
    %10 = vector.broadcast %cst_7 : f32 to vector<1600x20xf32>
    %11 = arith.addf %10, %9 : vector<1600x20xf32>
    %12 = tpu.reciprocal %11 {approx = true} : vector<1600x20xf32> -> vector<1600x20xf32>
    %13 = arith.truncf %12 : vector<1600x20xf32> to vector<1600x20xbf16>
    %c0_8 = arith.constant 0 : index
    %c0_9 = arith.constant 0 : index
    %14 = vector.load %arg4[%c0_8, %c0_9] : memref<20x20xbf16, #tpu.memory_space<vmem>>, vector<20x20xbf16>
    %cst_10 = arith.constant dense<0.000000e+00> : vector<1600x20xf32>
    %15 = tpu.matmul %13, %14, %cst_10 {dimension_numbers = #tpu.dot_dimension_numbers<[1], [0], [0], [1], [0, 0, 1, 1], [], []>} : vector<1600x20xbf16>, vector<20x20xbf16>, vector<1600x20xf32> -> vector<1600x20xf32>
    %c0_11 = arith.constant 0 : index
    %c0_12 = arith.constant 0 : index
    %16 = vector.load %arg5[%c0_11, %c0_12] : memref<1x20xf32, #tpu.memory_space<vmem>>, vector<1x20xf32>
    %17 = vector.broadcast %16 : vector<1x20xf32> to vector<1600x20xf32>
    %18 = arith.addf %15, %17 : vector<1600x20xf32>
    %cst_13 = arith.constant 0.000000e+00 : f32
    %19 = vector.broadcast %cst_13 : f32 to vector<1600x20xf32>
    %20 = arith.subf %19, %18 : vector<1600x20xf32>
    %21 = math.exp %20 : vector<1600x20xf32>
    %cst_14 = arith.constant 1.000000e+00 : f32
    %22 = vector.broadcast %cst_14 : f32 to vector<1600x20xf32>
    %23 = arith.addf %22, %21 : vector<1600x20xf32>
    %24 = tpu.reciprocal %23 {approx = true} : vector<1600x20xf32> -> vector<1600x20xf32>
    %25 = vector.extract_strided_slice %24 {offsets = [0, 0], sizes = [16, 20], strides = [1, 1]} : vector<1600x20xf32> to vector<16x20xf32>
    %26 = vector.extract_strided_slice %24 {offsets = [16, 0], sizes = [16, 20], strides = [1, 1]} : vector<1600x20xf32> to vector<16x20xf32>
    %27 = vector.extract_strided_slice %24 {offsets = [32, 0], sizes = [16, 20], strides = [1, 1]} : vector<1600x20xf32> to vector<16x20xf32>
    %28 = vector.extract_strided_slice %24 {offsets = [48, 0], sizes = [16, 20], strides = [1, 1]} : vector<1600x20xf32> to vector<16x20xf32>
    %29 = vector.extract_strided_slice %24 {offsets = [64, 0], sizes = [16, 20], strides = [1, 1]} : vector<1600x20xf32> to vector<16x20xf32>
    %30 = vector.extract_strided_slice %24 {offsets = [80, 0], sizes = [16, 20], strides = [1, 1]} : vector<1600x20xf32> to vector<16x20xf32>
    %31 = vector.extract_strided_slice %24 {offsets = [96, 0], sizes = [16, 20], strides = [1, 1]} : vector<1600x20xf32> to vector<16x20xf32>
    %32 = vector.extract_strided_slice %24 {offsets = [112, 0], sizes = [16, 20], strides = [1, 1]} : vector<1600x20xf32> to vector<16x20xf32>
    %33 = vector.extract_strided_slice %24 {offsets = [128, 0], sizes = [16, 20], strides = [1, 1]} : vector<1600x20xf32> to vector<16x20xf32>
    %34 = vector.extract_strided_slice %24 {offsets = [144, 0], sizes = [16, 20], strides = [1, 1]} : vector<1600x20xf32> to vector<16x20xf32>
    %35 = vector.extract_strided_slice %24 {offsets = [160, 0], sizes = [16, 20], strides = [1, 1]} : vector<1600x20xf32> to vector<16x20xf32>
    %36 = vector.extract_strided_slice %24 {offsets = [176, 0], sizes = [16, 20], strides = [1, 1]} : vector<1600x20xf32> to vector<16x20xf32>
    %37 = vector.extract_strided_slice %24 {offsets = [192, 0], sizes = [16, 20], strides = [1, 1]} : vector<1600x20xf32> to vector<16x20xf32>
    %38 = vector.extract_strided_slice %24 {offsets = [208, 0], sizes = [16, 20], strides = [1, 1]} : vector<1600x20xf32> to vector<16x20xf32>
    %39 = vector.extract_strided_slice %24 {offsets = [224, 0], sizes = [16, 20], strides = [1, 1]} : vector<1600x20xf32> to vector<16x20xf32>
    %40 = vector.extract_strided_slice %24 {offsets = [240, 0], sizes = [16, 20], strides = [1, 1]} : vector<1600x20xf32> to vector<16x20xf32>
    %41 = vector.extract_strided_slice %24 {offsets = [256, 0], sizes = [16, 20], strides = [1, 1]} : vector<1600x20xf32> to vector<16x20xf32>
    %42 = vector.extract_strided_slice %24 {offsets = [272, 0], sizes = [16, 20], strides = [1, 1]} : vector<1600x20xf32> to vector<16x20xf32>
    %43 = vector.extract_strided_slice %24 {offsets = [288, 0], sizes = [16, 20], strides = [1, 1]} : vector<1600x20xf32> to vector<16x20xf32>
    %44 = vector.extract_strided_slice %24 {offsets = [304, 0], sizes = [16, 20], strides = [1, 1]} : vector<1600x20xf32> to vector<16x20xf32>
    %45 = vector.extract_strided_slice %24 {offsets = [320, 0], sizes = [16, 20], strides = [1, 1]} : vector<1600x20xf32> to vector<16x20xf32>
    %46 = vector.extract_strided_slice %24 {offsets = [336, 0], sizes = [16, 20], strides = [1, 1]} : vector<1600x20xf32> to vector<16x20xf32>
    %47 = vector.extract_strided_slice %24 {offsets = [352, 0], sizes = [16, 20], strides = [1, 1]} : vector<1600x20xf32> to vector<16x20xf32>
    %48 = vector.extract_strided_slice %24 {offsets = [368, 0], sizes = [16, 20], strides = [1, 1]} : vector<1600x20xf32> to vector<16x20xf32>
    %49 = vector.extract_strided_slice %24 {offsets = [384, 0], sizes = [16, 20], strides = [1, 1]} : vector<1600x20xf32> to vector<16x20xf32>
    %50 = vector.extract_strided_slice %24 {offsets = [400, 0], sizes = [16, 20], strides = [1, 1]} : vector<1600x20xf32> to vector<16x20xf32>
    %51 = vector.extract_strided_slice %24 {offsets = [416, 0], sizes = [16, 20], strides = [1, 1]} : vector<1600x20xf32> to vector<16x20xf32>
    %52 = vector.extract_strided_slice %24 {offsets = [432, 0], sizes = [16, 20], strides = [1, 1]} : vector<1600x20xf32> to vector<16x20xf32>
    %53 = vector.extract_strided_slice %24 {offsets = [448, 0], sizes = [16, 20], strides = [1, 1]} : vector<1600x20xf32> to vector<16x20xf32>
    %54 = vector.extract_strided_slice %24 {offsets = [464, 0], sizes = [16, 20], strides = [1, 1]} : vector<1600x20xf32> to vector<16x20xf32>
    %55 = vector.extract_strided_slice %24 {offsets = [480, 0], sizes = [16, 20], strides = [1, 1]} : vector<1600x20xf32> to vector<16x20xf32>
    %56 = vector.extract_strided_slice %24 {offsets = [496, 0], sizes = [16, 20], strides = [1, 1]} : vector<1600x20xf32> to vector<16x20xf32>
    %57 = vector.extract_strided_slice %24 {offsets = [512, 0], sizes = [16, 20], strides = [1, 1]} : vector<1600x20xf32> to vector<16x20xf32>
    %58 = vector.extract_strided_slice %24 {offsets = [528, 0], sizes = [16, 20], strides = [1, 1]} : vector<1600x20xf32> to vector<16x20xf32>
    %59 = vector.extract_strided_slice %24 {offsets = [544, 0], sizes = [16, 20], strides = [1, 1]} : vector<1600x20xf32> to vector<16x20xf32>
    %60 = vector.extract_strided_slice %24 {offsets = [560, 0], sizes = [16, 20], strides = [1, 1]} : vector<1600x20xf32> to vector<16x20xf32>
    %61 = vector.extract_strided_slice %24 {offsets = [576, 0], sizes = [16, 20], strides = [1, 1]} : vector<1600x20xf32> to vector<16x20xf32>
    %62 = vector.extract_strided_slice %24 {offsets = [592, 0], sizes = [16, 20], strides = [1, 1]} : vector<1600x20xf32> to vector<16x20xf32>
    %63 = vector.extract_strided_slice %24 {offsets = [608, 0], sizes = [16, 20], strides = [1, 1]} : vector<1600x20xf32> to vector<16x20xf32>
    %64 = vector.extract_strided_slice %24 {offsets = [624, 0], sizes = [16, 20], strides = [1, 1]} : vector<1600x20xf32> to vector<16x20xf32>
    %65 = vector.extract_strided_slice %24 {offsets = [640, 0], sizes = [16, 20], strides = [1, 1]} : vector<1600x20xf32> to vector<16x20xf32>
    %66 = vector.extract_strided_slice %24 {offsets = [656, 0], sizes = [16, 20], strides = [1, 1]} : vector<1600x20xf32> to vector<16x20xf32>
    %67 = vector.extract_strided_slice %24 {offsets = [672, 0], sizes = [16, 20], strides = [1, 1]} : vector<1600x20xf32> to vector<16x20xf32>
    %68 = vector.extract_strided_slice %24 {offsets = [688, 0], sizes = [16, 20], strides = [1, 1]} : vector<1600x20xf32> to vector<16x20xf32>
    %69 = vector.extract_strided_slice %24 {offsets = [704, 0], sizes = [16, 20], strides = [1, 1]} : vector<1600x20xf32> to vector<16x20xf32>
    %70 = vector.extract_strided_slice %24 {offsets = [720, 0], sizes = [16, 20], strides = [1, 1]} : vector<1600x20xf32> to vector<16x20xf32>
    %71 = vector.extract_strided_slice %24 {offsets = [736, 0], sizes = [16, 20], strides = [1, 1]} : vector<1600x20xf32> to vector<16x20xf32>
    %72 = vector.extract_strided_slice %24 {offsets = [752, 0], sizes = [16, 20], strides = [1, 1]} : vector<1600x20xf32> to vector<16x20xf32>
    %73 = vector.extract_strided_slice %24 {offsets = [768, 0], sizes = [16, 20], strides = [1, 1]} : vector<1600x20xf32> to vector<16x20xf32>
    %74 = vector.extract_strided_slice %24 {offsets = [784, 0], sizes = [16, 20], strides = [1, 1]} : vector<1600x20xf32> to vector<16x20xf32>
    %75 = vector.extract_strided_slice %24 {offsets = [800, 0], sizes = [16, 20], strides = [1, 1]} : vector<1600x20xf32> to vector<16x20xf32>
    %76 = vector.extract_strided_slice %24 {offsets = [816, 0], sizes = [16, 20], strides = [1, 1]} : vector<1600x20xf32> to vector<16x20xf32>
    %77 = vector.extract_strided_slice %24 {offsets = [832, 0], sizes = [16, 20], strides = [1, 1]} : vector<1600x20xf32> to vector<16x20xf32>
    %78 = vector.extract_strided_slice %24 {offsets = [848, 0], sizes = [16, 20], strides = [1, 1]} : vector<1600x20xf32> to vector<16x20xf32>
    %79 = vector.extract_strided_slice %24 {offsets = [864, 0], sizes = [16, 20], strides = [1, 1]} : vector<1600x20xf32> to vector<16x20xf32>
    %80 = vector.extract_strided_slice %24 {offsets = [880, 0], sizes = [16, 20], strides = [1, 1]} : vector<1600x20xf32> to vector<16x20xf32>
    %81 = vector.extract_strided_slice %24 {offsets = [896, 0], sizes = [16, 20], strides = [1, 1]} : vector<1600x20xf32> to vector<16x20xf32>
    %82 = vector.extract_strided_slice %24 {offsets = [912, 0], sizes = [16, 20], strides = [1, 1]} : vector<1600x20xf32> to vector<16x20xf32>
    %83 = vector.extract_strided_slice %24 {offsets = [928, 0], sizes = [16, 20], strides = [1, 1]} : vector<1600x20xf32> to vector<16x20xf32>
    %84 = vector.extract_strided_slice %24 {offsets = [944, 0], sizes = [16, 20], strides = [1, 1]} : vector<1600x20xf32> to vector<16x20xf32>
    %85 = vector.extract_strided_slice %24 {offsets = [960, 0], sizes = [16, 20], strides = [1, 1]} : vector<1600x20xf32> to vector<16x20xf32>
    %86 = vector.extract_strided_slice %24 {offsets = [976, 0], sizes = [16, 20], strides = [1, 1]} : vector<1600x20xf32> to vector<16x20xf32>
    %87 = vector.extract_strided_slice %24 {offsets = [992, 0], sizes = [16, 20], strides = [1, 1]} : vector<1600x20xf32> to vector<16x20xf32>
    %88 = vector.extract_strided_slice %24 {offsets = [1008, 0], sizes = [16, 20], strides = [1, 1]} : vector<1600x20xf32> to vector<16x20xf32>
    %89 = vector.extract_strided_slice %24 {offsets = [1024, 0], sizes = [16, 20], strides = [1, 1]} : vector<1600x20xf32> to vector<16x20xf32>
    %90 = vector.extract_strided_slice %24 {offsets = [1040, 0], sizes = [16, 20], strides = [1, 1]} : vector<1600x20xf32> to vector<16x20xf32>
    %91 = vector.extract_strided_slice %24 {offsets = [1056, 0], sizes = [16, 20], strides = [1, 1]} : vector<1600x20xf32> to vector<16x20xf32>
    %92 = vector.extract_strided_slice %24 {offsets = [1072, 0], sizes = [16, 20], strides = [1, 1]} : vector<1600x20xf32> to vector<16x20xf32>
    %93 = vector.extract_strided_slice %24 {offsets = [1088, 0], sizes = [16, 20], strides = [1, 1]} : vector<1600x20xf32> to vector<16x20xf32>
    %94 = vector.extract_strided_slice %24 {offsets = [1104, 0], sizes = [16, 20], strides = [1, 1]} : vector<1600x20xf32> to vector<16x20xf32>
    %95 = vector.extract_strided_slice %24 {offsets = [1120, 0], sizes = [16, 20], strides = [1, 1]} : vector<1600x20xf32> to vector<16x20xf32>
    %96 = vector.extract_strided_slice %24 {offsets = [1136, 0], sizes = [16, 20], strides = [1, 1]} : vector<1600x20xf32> to vector<16x20xf32>
    %97 = vector.extract_strided_slice %24 {offsets = [1152, 0], sizes = [16, 20], strides = [1, 1]} : vector<1600x20xf32> to vector<16x20xf32>
    %98 = vector.extract_strided_slice %24 {offsets = [1168, 0], sizes = [16, 20], strides = [1, 1]} : vector<1600x20xf32> to vector<16x20xf32>
    %99 = vector.extract_strided_slice %24 {offsets = [1184, 0], sizes = [16, 20], strides = [1, 1]} : vector<1600x20xf32> to vector<16x20xf32>
    %100 = vector.extract_strided_slice %24 {offsets = [1200, 0], sizes = [16, 20], strides = [1, 1]} : vector<1600x20xf32> to vector<16x20xf32>
    %101 = vector.extract_strided_slice %24 {offsets = [1216, 0], sizes = [16, 20], strides = [1, 1]} : vector<1600x20xf32> to vector<16x20xf32>
    %102 = vector.extract_strided_slice %24 {offsets = [1232, 0], sizes = [16, 20], strides = [1, 1]} : vector<1600x20xf32> to vector<16x20xf32>
    %103 = vector.extract_strided_slice %24 {offsets = [1248, 0], sizes = [16, 20], strides = [1, 1]} : vector<1600x20xf32> to vector<16x20xf32>
    %104 = vector.extract_strided_slice %24 {offsets = [1264, 0], sizes = [16, 20], strides = [1, 1]} : vector<1600x20xf32> to vector<16x20xf32>
    %105 = vector.extract_strided_slice %24 {offsets = [1280, 0], sizes = [16, 20], strides = [1, 1]} : vector<1600x20xf32> to vector<16x20xf32>
    %106 = vector.extract_strided_slice %24 {offsets = [1296, 0], sizes = [16, 20], strides = [1, 1]} : vector<1600x20xf32> to vector<16x20xf32>
    %107 = vector.extract_strided_slice %24 {offsets = [1312, 0], sizes = [16, 20], strides = [1, 1]} : vector<1600x20xf32> to vector<16x20xf32>
    %108 = vector.extract_strided_slice %24 {offsets = [1328, 0], sizes = [16, 20], strides = [1, 1]} : vector<1600x20xf32> to vector<16x20xf32>
    %109 = vector.extract_strided_slice %24 {offsets = [1344, 0], sizes = [16, 20], strides = [1, 1]} : vector<1600x20xf32> to vector<16x20xf32>
    %110 = vector.extract_strided_slice %24 {offsets = [1360, 0], sizes = [16, 20], strides = [1, 1]} : vector<1600x20xf32> to vector<16x20xf32>
    %111 = vector.extract_strided_slice %24 {offsets = [1376, 0], sizes = [16, 20], strides = [1, 1]} : vector<1600x20xf32> to vector<16x20xf32>
    %112 = vector.extract_strided_slice %24 {offsets = [1392, 0], sizes = [16, 20], strides = [1, 1]} : vector<1600x20xf32> to vector<16x20xf32>
    %113 = vector.extract_strided_slice %24 {offsets = [1408, 0], sizes = [16, 20], strides = [1, 1]} : vector<1600x20xf32> to vector<16x20xf32>
    %114 = vector.extract_strided_slice %24 {offsets = [1424, 0], sizes = [16, 20], strides = [1, 1]} : vector<1600x20xf32> to vector<16x20xf32>
    %115 = vector.extract_strided_slice %24 {offsets = [1440, 0], sizes = [16, 20], strides = [1, 1]} : vector<1600x20xf32> to vector<16x20xf32>
    %116 = vector.extract_strided_slice %24 {offsets = [1456, 0], sizes = [16, 20], strides = [1, 1]} : vector<1600x20xf32> to vector<16x20xf32>
    %117 = vector.extract_strided_slice %24 {offsets = [1472, 0], sizes = [16, 20], strides = [1, 1]} : vector<1600x20xf32> to vector<16x20xf32>
    %118 = vector.extract_strided_slice %24 {offsets = [1488, 0], sizes = [16, 20], strides = [1, 1]} : vector<1600x20xf32> to vector<16x20xf32>
    %119 = vector.extract_strided_slice %24 {offsets = [1504, 0], sizes = [16, 20], strides = [1, 1]} : vector<1600x20xf32> to vector<16x20xf32>
    %120 = vector.extract_strided_slice %24 {offsets = [1520, 0], sizes = [16, 20], strides = [1, 1]} : vector<1600x20xf32> to vector<16x20xf32>
    %121 = vector.extract_strided_slice %24 {offsets = [1536, 0], sizes = [16, 20], strides = [1, 1]} : vector<1600x20xf32> to vector<16x20xf32>
    %122 = vector.extract_strided_slice %24 {offsets = [1552, 0], sizes = [16, 20], strides = [1, 1]} : vector<1600x20xf32> to vector<16x20xf32>
    %123 = vector.extract_strided_slice %24 {offsets = [1568, 0], sizes = [16, 20], strides = [1, 1]} : vector<1600x20xf32> to vector<16x20xf32>
    %124 = vector.extract_strided_slice %24 {offsets = [1584, 0], sizes = [16, 20], strides = [1, 1]} : vector<1600x20xf32> to vector<16x20xf32>
    %125 = arith.addf %25, %26 : vector<16x20xf32>
    %126 = arith.addf %27, %28 : vector<16x20xf32>
    %127 = arith.addf %29, %30 : vector<16x20xf32>
    %128 = arith.addf %31, %32 : vector<16x20xf32>
    %129 = arith.addf %33, %34 : vector<16x20xf32>
    %130 = arith.addf %35, %36 : vector<16x20xf32>
    %131 = arith.addf %37, %38 : vector<16x20xf32>
    %132 = arith.addf %39, %40 : vector<16x20xf32>
    %133 = arith.addf %41, %42 : vector<16x20xf32>
    %134 = arith.addf %43, %44 : vector<16x20xf32>
    %135 = arith.addf %45, %46 : vector<16x20xf32>
    %136 = arith.addf %47, %48 : vector<16x20xf32>
    %137 = arith.addf %49, %50 : vector<16x20xf32>
    %138 = arith.addf %51, %52 : vector<16x20xf32>
    %139 = arith.addf %53, %54 : vector<16x20xf32>
    %140 = arith.addf %55, %56 : vector<16x20xf32>
    %141 = arith.addf %57, %58 : vector<16x20xf32>
    %142 = arith.addf %59, %60 : vector<16x20xf32>
    %143 = arith.addf %61, %62 : vector<16x20xf32>
    %144 = arith.addf %63, %64 : vector<16x20xf32>
    %145 = arith.addf %65, %66 : vector<16x20xf32>
    %146 = arith.addf %67, %68 : vector<16x20xf32>
    %147 = arith.addf %69, %70 : vector<16x20xf32>
    %148 = arith.addf %71, %72 : vector<16x20xf32>
    %149 = arith.addf %73, %74 : vector<16x20xf32>
    %150 = arith.addf %75, %76 : vector<16x20xf32>
    %151 = arith.addf %77, %78 : vector<16x20xf32>
    %152 = arith.addf %79, %80 : vector<16x20xf32>
    %153 = arith.addf %81, %82 : vector<16x20xf32>
    %154 = arith.addf %83, %84 : vector<16x20xf32>
    %155 = arith.addf %85, %86 : vector<16x20xf32>
    %156 = arith.addf %87, %88 : vector<16x20xf32>
    %157 = arith.addf %89, %90 : vector<16x20xf32>
    %158 = arith.addf %91, %92 : vector<16x20xf32>
    %159 = arith.addf %93, %94 : vector<16x20xf32>
    %160 = arith.addf %95, %96 : vector<16x20xf32>
    %161 = arith.addf %97, %98 : vector<16x20xf32>
    %162 = arith.addf %99, %100 : vector<16x20xf32>
    %163 = arith.addf %101, %102 : vector<16x20xf32>
    %164 = arith.addf %103, %104 : vector<16x20xf32>
    %165 = arith.addf %105, %106 : vector<16x20xf32>
    %166 = arith.addf %107, %108 : vector<16x20xf32>
    %167 = arith.addf %109, %110 : vector<16x20xf32>
    %168 = arith.addf %111, %112 : vector<16x20xf32>
    %169 = arith.addf %113, %114 : vector<16x20xf32>
    %170 = arith.addf %115, %116 : vector<16x20xf32>
    %171 = arith.addf %117, %118 : vector<16x20xf32>
    %172 = arith.addf %119, %120 : vector<16x20xf32>
    %173 = arith.addf %121, %122 : vector<16x20xf32>
    %174 = arith.addf %123, %124 : vector<16x20xf32>
    %175 = arith.addf %125, %126 : vector<16x20xf32>
    %176 = arith.addf %127, %128 : vector<16x20xf32>
    %177 = arith.addf %129, %130 : vector<16x20xf32>
    %178 = arith.addf %131, %132 : vector<16x20xf32>
    %179 = arith.addf %133, %134 : vector<16x20xf32>
    %180 = arith.addf %135, %136 : vector<16x20xf32>
    %181 = arith.addf %137, %138 : vector<16x20xf32>
    %182 = arith.addf %139, %140 : vector<16x20xf32>
    %183 = arith.addf %141, %142 : vector<16x20xf32>
    %184 = arith.addf %143, %144 : vector<16x20xf32>
    %185 = arith.addf %145, %146 : vector<16x20xf32>
    %186 = arith.addf %147, %148 : vector<16x20xf32>
    %187 = arith.addf %149, %150 : vector<16x20xf32>
    %188 = arith.addf %151, %152 : vector<16x20xf32>
    %189 = arith.addf %153, %154 : vector<16x20xf32>
    %190 = arith.addf %155, %156 : vector<16x20xf32>
    %191 = arith.addf %157, %158 : vector<16x20xf32>
    %192 = arith.addf %159, %160 : vector<16x20xf32>
    %193 = arith.addf %161, %162 : vector<16x20xf32>
    %194 = arith.addf %163, %164 : vector<16x20xf32>
    %195 = arith.addf %165, %166 : vector<16x20xf32>
    %196 = arith.addf %167, %168 : vector<16x20xf32>
    %197 = arith.addf %169, %170 : vector<16x20xf32>
    %198 = arith.addf %171, %172 : vector<16x20xf32>
    %199 = arith.addf %173, %174 : vector<16x20xf32>
    %200 = arith.addf %175, %176 : vector<16x20xf32>
    %201 = arith.addf %177, %178 : vector<16x20xf32>
    %202 = arith.addf %179, %180 : vector<16x20xf32>
    %203 = arith.addf %181, %182 : vector<16x20xf32>
    %204 = arith.addf %183, %184 : vector<16x20xf32>
    %205 = arith.addf %185, %186 : vector<16x20xf32>
    %206 = arith.addf %187, %188 : vector<16x20xf32>
    %207 = arith.addf %189, %190 : vector<16x20xf32>
    %208 = arith.addf %191, %192 : vector<16x20xf32>
    %209 = arith.addf %193, %194 : vector<16x20xf32>
    %210 = arith.addf %195, %196 : vector<16x20xf32>
    %211 = arith.addf %197, %198 : vector<16x20xf32>
    %212 = arith.addf %200, %201 : vector<16x20xf32>
    %213 = arith.addf %202, %203 : vector<16x20xf32>
    %214 = arith.addf %204, %205 : vector<16x20xf32>
    %215 = arith.addf %206, %207 : vector<16x20xf32>
    %216 = arith.addf %208, %209 : vector<16x20xf32>
    %217 = arith.addf %210, %211 : vector<16x20xf32>
    %218 = arith.addf %212, %213 : vector<16x20xf32>
    %219 = arith.addf %214, %215 : vector<16x20xf32>
    %220 = arith.addf %216, %217 : vector<16x20xf32>
    %221 = arith.addf %218, %219 : vector<16x20xf32>
    %222 = arith.addf %220, %199 : vector<16x20xf32>
    %223 = arith.addf %221, %222 : vector<16x20xf32>
    %cst_15 = arith.constant 0.00999999977 : f32
    %224 = vector.broadcast %cst_15 : f32 to vector<16x20xf32>
    %225 = arith.mulf %223, %224 : vector<16x20xf32>
    %226 = tpu.transpose %225, [1, 0] : vector<16x20xf32> -> vector<20x16xf32>
    %227 = arith.truncf %226 : vector<20x16xf32> to vector<20x16xbf16>
    %c0_16 = arith.constant 0 : index
    %c0_17 = arith.constant 0 : index
    %228 = vector.load %arg6[%c0_16, %c0_17] : memref<20x20xbf16, #tpu.memory_space<vmem>>, vector<20x20xbf16>
    %cst_18 = arith.constant dense<0.000000e+00> : vector<20x16xf32>
    %229 = tpu.matmul %228, %227, %cst_18 {dimension_numbers = #tpu.dot_dimension_numbers<[1], [0], [0], [1], [0, 0, 1, 1], [], []>} : vector<20x20xbf16>, vector<20x16xbf16>, vector<20x16xf32> -> vector<20x16xf32>
    %c0_19 = arith.constant 0 : index
    %c0_20 = arith.constant 0 : index
    %230 = vector.load %arg7[%c0_19, %c0_20] : memref<20x1xf32, #tpu.memory_space<vmem>>, vector<20x1xf32>
    %231 = vector.broadcast %230 : vector<20x1xf32> to vector<20x16xf32>
    %232 = arith.addf %229, %231 : vector<20x16xf32>
    %cst_21 = arith.constant 0.000000e+00 : f32
    %233 = vector.broadcast %cst_21 : f32 to vector<20x16xf32>
    %234 = arith.subf %233, %232 : vector<20x16xf32>
    %235 = math.exp %234 : vector<20x16xf32>
    %cst_22 = arith.constant 1.000000e+00 : f32
    %236 = vector.broadcast %cst_22 : f32 to vector<20x16xf32>
    %237 = arith.addf %236, %235 : vector<20x16xf32>
    %238 = tpu.reciprocal %237 {approx = true} : vector<20x16xf32> -> vector<20x16xf32>
    %c0_23 = arith.constant 0 : index
    %c0_24 = arith.constant 0 : index
    %239 = vector.load %arg8[%c0_23, %c0_24] : memref<20x1xf32, #tpu.memory_space<vmem>>, vector<20x1xf32>
    %240 = vector.broadcast %239 : vector<20x1xf32> to vector<20x16xf32>
    %241 = arith.mulf %238, %240 : vector<20x16xf32>
    %cst_25 = arith.constant dense<0.000000e+00> : vector<16xf32>
    %242 = vector.multi_reduction <add>, %241, %cst_25 [0] : vector<20x16xf32> to vector<16xf32>
    %243 = vector.shape_cast %242 : vector<16xf32> to vector<1x16xf32>
    %c0_26 = arith.constant 0 : index
    %c0_27 = arith.constant 0 : index
    %244 = vector.load %arg9[%c0_26, %c0_27] : memref<1x1xf32, #tpu.memory_space<vmem>>, vector<1x1xf32>
    %245 = vector.broadcast %244 : vector<1x1xf32> to vector<1x16xf32>
    %246 = arith.addf %243, %245 : vector<1x16xf32>
    %cst_28 = arith.constant 0.000000e+00 : f32
    %247 = vector.broadcast %cst_28 : f32 to vector<1x16xf32>
    %248 = arith.subf %247, %246 : vector<1x16xf32>
    %249 = math.exp %248 : vector<1x16xf32>
    %cst_29 = arith.constant 1.000000e+00 : f32
    %250 = vector.broadcast %cst_29 : f32 to vector<1x16xf32>
    %251 = arith.addf %250, %249 : vector<1x16xf32>
    %252 = tpu.reciprocal %251 {approx = true} : vector<1x16xf32> -> vector<1x16xf32>
    %c0_30 = arith.constant 0 : index
    %c0_31 = arith.constant 0 : index
    %c0_32 = arith.constant 0 : index
    %253 = vector.load %arg10[%c0_30, %c0_31, %c0_32] : memref<1x1x16xf32, #tpu.memory_space<vmem>>, vector<1x1x16xf32>
    %254 = vector.shape_cast %253 : vector<1x1x16xf32> to vector<1x16xf32>
    %255 = vector.shape_cast %252 : vector<1x16xf32> to vector<1x1x16xf32>
    tpu.vector_store %arg10[%c0_30, %c0_31, %c0_32], %255 {strides = array<i32>} : memref<1x1x16xf32, #tpu.memory_space<vmem>>, vector<1x1x16xf32>,
    return
  }
  func.func @transform_0(%arg0: i32) -> (i32, i32, i32) {
    %c0_i32 = arith.constant 0 : i32
    %c0_i32_0 = arith.constant 0 : i32
    %c0_i32_1 = arith.constant 0 : i32
    return %arg0, %c0_i32, %c0_i32_0 : i32, i32, i32
  }
  func.func @transform_1(%arg0: i32) -> (i32, i32) {
    %c0_i32 = arith.constant 0 : i32
    %c0_i32_0 = arith.constant 0 : i32
    %c0_i32_1 = arith.constant 0 : i32
    return %c0_i32, %c0_i32_0 : i32, i32
  }
  func.func @transform_2(%arg0: i32) -> (i32, i32) {
    %c0_i32 = arith.constant 0 : i32
    %c0_i32_0 = arith.constant 0 : i32
    %c0_i32_1 = arith.constant 0 : i32
    return %c0_i32, %c0_i32_0 : i32, i32
  }
  func.func @transform_3(%arg0: i32) -> (i32, i32) {
    %c0_i32 = arith.constant 0 : i32
    %c0_i32_0 = arith.constant 0 : i32
    %c0_i32_1 = arith.constant 0 : i32
    return %c0_i32, %c0_i32_0 : i32, i32
  }
  func.func @transform_4(%arg0: i32) -> (i32, i32) {
    %c0_i32 = arith.constant 0 : i32
    %c0_i32_0 = arith.constant 0 : i32
    %c0_i32_1 = arith.constant 0 : i32
    return %c0_i32, %c0_i32_0 : i32, i32
  }
  func.func @transform_5(%arg0: i32) -> (i32, i32) {
    %c0_i32 = arith.constant 0 : i32
    %c0_i32_0 = arith.constant 0 : i32
    %c0_i32_1 = arith.constant 0 : i32
    return %c0_i32, %c0_i32_0 : i32, i32
  }
  func.func @transform_6(%arg0: i32) -> (i32, i32) {
    %c0_i32 = arith.constant 0 : i32
    %c0_i32_0 = arith.constant 0 : i32
    %c0_i32_1 = arith.constant 0 : i32
    return %c0_i32, %c0_i32_0 : i32, i32
  }
  func.func @transform_7(%arg0: i32) -> (i32, i32) {
    %c0_i32 = arith.constant 0 : i32
    %c0_i32_0 = arith.constant 0 : i32
    %c0_i32_1 = arith.constant 0 : i32
    return %c0_i32, %c0_i32_0 : i32, i32
  }
  func.func @transform_8(%arg0: i32) -> (i32, i32) {
    %c0_i32 = arith.constant 0 : i32
    %c0_i32_0 = arith.constant 0 : i32
    %c0_i32_1 = arith.constant 0 : i32
    return %c0_i32, %c0_i32_0 : i32, i32
  }
  func.func @transform_9(%arg0: i32) -> (i32, i32, i32) {
    %c0_i32 = arith.constant 0 : i32
    %c0_i32_0 = arith.constant 0 : i32
    %c0_i32_1 = arith.constant 0 : i32
    return %arg0, %c0_i32, %c0_i32_0 : i32, i32, i32
  }
}

</mosaic_0001>

<llo_original>
// kernel: epi_forward.1
$region0: #{epi_forward.1}
  #allocation0 [shape = 'u32[]', space=smem, size = 0x4, offset = 0x4, fixed_abs, tag = 'smem constant byte address 0x4 - core index']
  #allocation1 [shape = 'u32[144,128]{1,0:T(1,128)}', space=vmem, size = 0x12000, scoped, tag = 'internal scratch']
  #allocation2 [shape = 'f32[1,1]{1,0:T(1,128)S(1)}', space=vmem, size = 0x200, scoped, tag = 'scoped memory for epi_forward.1']
  %s0 = inlined_call_operand.vmem [shape: bf16[1,1600,128], index: 0, kind: input, shape index: {}]
  %s1 = inlined_call_operand.vmem [shape: bf16[128,20], index: 1, kind: input, shape index: {}]
  %s2 = inlined_call_operand.vmem [shape: f32[1,20], index: 2, kind: input, shape index: {}]
  %s3 = inlined_call_operand.vmem [shape: bf16[20,20], index: 3, kind: input, shape index: {}]
  %s4 = inlined_call_operand.vmem [shape: f32[1,20], index: 4, kind: input, shape index: {}]
  %s5 = inlined_call_operand.vmem [shape: bf16[20,20], index: 5, kind: input, shape index: {}]
  %s6 = inlined_call_operand.vmem [shape: f32[20,1], index: 6, kind: input, shape index: {}]
  %s7 = inlined_call_operand.vmem [shape: f32[20,1], index: 7, kind: input, shape index: {}]
  %s8 = inlined_call_operand.<no memory space> [shape: f32[1,1], index: 8, kind: input, shape index: {}]
  %s9 = inlined_call_operand.vmem [shape: f32[1,1,16], index: 9, kind: output, shape index: {}]
  %s10 = sld [smem:[#allocation0]]
  $region46: #{epi_forward.1} parent=0
    _
  %s12 = ssub.s32 1, %s10
  %s13 = scalar_select 0, %s12, %s10
  %v14 = vstv %s8
  %15 = vst [vmem:[#allocation2] sm:$0x1] %v14
  // Predicated region
  $region2: #{epi_forward.1} parent=0 // pred_check
    _
  $region3: #{epi_forward.1} parent=0 // pred_check_branch
    %17 = sbr.rel (0) target = $region5
  $region4: #{epi_forward.1} parent=0 // pred_region
    _
  $region5: #{epi_forward.1} parent=0 // pred_fallthru
    _
  // Predicated region
  $region6: #{epi_forward.1} parent=0 // pred_check
    _
  $region7: #{epi_forward.1} parent=0 // pred_check_branch
    %19 = sbr.rel (0) target = $region9
  $region8: #{epi_forward.1} parent=0 // pred_region
    _
  $region9: #{epi_forward.1} parent=0 // pred_fallthru
    _
  // Predicated region
  $region10: #{epi_forward.1} parent=0 // pred_check
    _
  $region11: #{epi_forward.1} parent=0 // pred_check_branch
    %21 = sbr.rel (0) target = $region13
  $region12: #{epi_forward.1} parent=0 // pred_region
    _
  $region13: #{epi_forward.1} parent=0 // pred_fallthru
    _
  // Predicated region
  $region14: #{epi_forward.1} parent=0 // pred_check
    _
  $region15: #{epi_forward.1} parent=0 // pred_check_branch
    %23 = sbr.rel (0) target = $region17
  $region16: #{epi_forward.1} parent=0 // pred_region
    _
  $region17: #{epi_forward.1} parent=0 // pred_fallthru
    _
  // Predicated region
  $region18: #{epi_forward.1} parent=0 // pred_check
    _
  $region19: #{epi_forward.1} parent=0 // pred_check_branch
    %25 = sbr.rel (0) target = $region21
  $region20: #{epi_forward.1} parent=0 // pred_region
    _
  $region21: #{epi_forward.1} parent=0 // pred_fallthru
    _
  // Predicated region
  $region22: #{epi_forward.1} parent=0 // pred_check
    _
  $region23: #{epi_forward.1} parent=0 // pred_check_branch
    %27 = sbr.rel (0) target = $region25
  $region24: #{epi_forward.1} parent=0 // pred_region
    _
  $region25: #{epi_forward.1} parent=0 // pred_fallthru
    _
  // Predicated region
  $region26: #{epi_forward.1} parent=0 // pred_check
    _
  $region27: #{epi_forward.1} parent=0 // pred_check_branch
    %29 = sbr.rel (0) target = $region29
  $region28: #{epi_forward.1} parent=0 // pred_region
    _
  $region29: #{epi_forward.1} parent=0 // pred_fallthru
    _
  // Predicated region
  $region30: #{epi_forward.1} parent=0 // pred_check
    _
  $region31: #{epi_forward.1} parent=0 // pred_check_branch
    %31 = sbr.rel (0) target = $region33
  $region32: #{epi_forward.1} parent=0 // pred_region
    _
  $region33: #{epi_forward.1} parent=0 // pred_fallthru
    _
  // Predicated region
  $region34: #{epi_forward.1} parent=0 // pred_check
    _
  $region35: #{epi_forward.1} parent=0 // pred_check_branch
    %33 = sbr.rel (0) target = $region37
  $region36: #{epi_forward.1} parent=0 // pred_region
    _
  $region37: #{epi_forward.1} parent=0 // pred_fallthru
    _
  %v35 = vld [vmem:[%s0] sm:$0xf]
  %v36 = vld [vmem:[%s0 + $0x4] sm:$0xf]
  %v37 = vld [vmem:[%s0 + $0x8] sm:$0xf]
  %v38 = vld [vmem:[%s0 + $0xc] sm:$0xf]
  %v39 = vld [vmem:[%s0 + $0x10] sm:$0xf]
  %v40 = vld [vmem:[%s0 + $0x14] sm:$0xf]
  %v41 = vld [vmem:[%s0 + $0x18] sm:$0xf]
  %v42 = vld [vmem:[%s0 + $0x1c] sm:$0xf]
  %v43 = vld [vmem:[%s0 + $0x20] sm:$0xf]
  %v44 = vld [vmem:[%s0 + $0x24] sm:$0xf]
  %v45 = vld [vmem:[%s0 + $0x28] sm:$0xf]
  %v46 = vld [vmem:[%s0 + $0x2c] sm:$0xf]
  %v47 = vld [vmem:[%s0 + $0x30] sm:$0xf]
  %v48 = vld [vmem:[%s0 + $0x34] sm:$0xf]
  %v49 = vld [vmem:[%s0 + $0x38] sm:$0xf]
  %v50 = vld [vmem:[%s0 + $0x3c] sm:$0xf]
  %v51 = vld [vmem:[%s0 + $0x40] sm:$0xf]
  %v52 = vld [vmem:[%s0 + $0x44] sm:$0xf]
  %v53 = vld [vmem:[%s0 + $0x48] sm:$0xf]
  %v54 = vld [vmem:[%s0 + $0x4c] sm:$0xf]
  %v55 = vld [vmem:[%s0 + $0x50] sm:$0xf]
  %v56 = vld [vmem:[%s0 + $0x54] sm:$0xf]
  %v57 = vld [vmem:[%s0 + $0x58] sm:$0xf]
  %v58 = vld [vmem:[%s0 + $0x5c] sm:$0xf]
  %v59 = vld [vmem:[%s0 + $0x60] sm:$0xf]
  %v60 = vld [vmem:[%s0 + $0x64] sm:$0xf]
  %v61 = vld [vmem:[%s0 + $0x68] sm:$0xf]
  %v62 = vld [vmem:[%s0 + $0x6c] sm:$0xf]
  %v63 = vld [vmem:[%s0 + $0x70] sm:$0xf]
  %v64 = vld [vmem:[%s0 + $0x74] sm:$0xf]
  %v65 = vld [vmem:[%s0 + $0x78] sm:$0xf]
  %v66 = vld [vmem:[%s0 + $0x7c] sm:$0xf]
  %v67 = vld [vmem:[%s0 + $0x80] sm:$0xf]
  %v68 = vld [vmem:[%s0 + $0x84] sm:$0xf]
  %v69 = vld [vmem:[%s0 + $0x88] sm:$0xf]
  %v70 = vld [vmem:[%s0 + $0x8c] sm:$0xf]
  %v71 = vld [vmem:[%s0 + $0x90] sm:$0xf]
  %v72 = vld [vmem:[%s0 + $0x94] sm:$0xf]
  %v73 = vld [vmem:[%s0 + $0x98] sm:$0xf]
  %v74 = vld [vmem:[%s0 + $0x9c] sm:$0xf]
  %v75 = vld [vmem:[%s0 + $0xa0] sm:$0xf]
  %v76 = vld [vmem:[%s0 + $0xa4] sm:$0xf]
  %v77 = vld [vmem:[%s0 + $0xa8] sm:$0xf]
  %v78 = vld [vmem:[%s0 + $0xac] sm:$0xf]
  %v79 = vld [vmem:[%s0 + $0xb0] sm:$0xf]
  %v80 = vld [vmem:[%s0 + $0xb4] sm:$0xf]
  %v81 = vld [vmem:[%s0 + $0xb8] sm:$0xf]
  %v82 = vld [vmem:[%s0 + $0xbc] sm:$0xf]
  %v83 = vld [vmem:[%s0 + $0xc0] sm:$0xf]
  %v84 = vld [vmem:[%s0 + $0xc4] sm:$0xf]
  %v85 = vld [vmem:[%s0 + $0xc8] sm:$0xf]
  %v86 = vld [vmem:[%s0 + $0xcc] sm:$0xf]
  %v87 = vld [vmem:[%s0 + $0xd0] sm:$0xf]
  %v88 = vld [vmem:[%s0 + $0xd4] sm:$0xf]
  %v89 = vld [vmem:[%s0 + $0xd8] sm:$0xf]
  %v90 = vld [vmem:[%s0 + $0xdc] sm:$0xf]
  %v91 = vld [vmem:[%s0 + $0xe0] sm:$0xf]
  %v92 = vld [vmem:[%s0 + $0xe4] sm:$0xf]
  %v93 = vld [vmem:[%s0 + $0xe8] sm:$0xf]
  %v94 = vld [vmem:[%s0 + $0xec] sm:$0xf]
  %v95 = vld [vmem:[%s0 + $0xf0] sm:$0xf]
  %v96 = vld [vmem:[%s0 + $0xf4] sm:$0xf]
  %v97 = vld [vmem:[%s0 + $0xf8] sm:$0xf]
  %v98 = vld [vmem:[%s0 + $0xfc] sm:$0xf]
  %v99 = vld [vmem:[%s0 + $0x100] sm:$0xf]
  %v100 = vld [vmem:[%s0 + $0x104] sm:$0xf]
  %v101 = vld [vmem:[%s0 + $0x108] sm:$0xf]
  %v102 = vld [vmem:[%s0 + $0x10c] sm:$0xf]
  %v103 = vld [vmem:[%s0 + $0x110] sm:$0xf]
  %v104 = vld [vmem:[%s0 + $0x114] sm:$0xf]
  %v105 = vld [vmem:[%s0 + $0x118] sm:$0xf]
  %v106 = vld [vmem:[%s0 + $0x11c] sm:$0xf]
  %v107 = vld [vmem:[%s0 + $0x120] sm:$0xf]
  %v108 = vld [vmem:[%s0 + $0x124] sm:$0xf]
  %v109 = vld [vmem:[%s0 + $0x128] sm:$0xf]
  %v110 = vld [vmem:[%s0 + $0x12c] sm:$0xf]
  %v111 = vld [vmem:[%s0 + $0x130] sm:$0xf]
  %v112 = vld [vmem:[%s0 + $0x134] sm:$0xf]
  %v113 = vld [vmem:[%s0 + $0x138] sm:$0xf]
  %v114 = vld [vmem:[%s0 + $0x13c] sm:$0xf]
  %v115 = vld [vmem:[%s0 + $0x140] sm:$0xf]
  %v116 = vld [vmem:[%s0 + $0x144] sm:$0xf]
  %v117 = vld [vmem:[%s0 + $0x148] sm:$0xf]
  %v118 = vld [vmem:[%s0 + $0x14c] sm:$0xf]
  %v119 = vld [vmem:[%s0 + $0x150] sm:$0xf]
  %v120 = vld [vmem:[%s0 + $0x154] sm:$0xf]
  %v121 = vld [vmem:[%s0 + $0x158] sm:$0xf]
  %v122 = vld [vmem:[%s0 + $0x15c] sm:$0xf]
  %v123 = vld [vmem:[%s0 + $0x160] sm:$0xf]
  %v124 = vld [vmem:[%s0 + $0x164] sm:$0xf]
  %v125 = vld [vmem:[%s0 + $0x168] sm:$0xf]
  %v126 = vld [vmem:[%s0 + $0x16c] sm:$0xf]
  %v127 = vld [vmem:[%s0 + $0x170] sm:$0xf]
  %v128 = vld [vmem:[%s0 + $0x174] sm:$0xf]
  %v129 = vld [vmem:[%s0 + $0x178] sm:$0xf]
  %v130 = vld [vmem:[%s0 + $0x17c] sm:$0xf]
  %v131 = vld [vmem:[%s0 + $0x180] sm:$0xf]
  %v132 = vld [vmem:[%s0 + $0x184] sm:$0xf]
  %v133 = vld [vmem:[%s0 + $0x188] sm:$0xf]
  %v134 = vld [vmem:[%s0 + $0x18c] sm:$0xf]
  %v135 = vld [vmem:[%s0 + $0x190] sm:$0xf]
  %v136 = vld [vmem:[%s0 + $0x194] sm:$0xf]
  %v137 = vld [vmem:[%s0 + $0x198] sm:$0xf]
  %v138 = vld [vmem:[%s0 + $0x19c] sm:$0xf]
  %v139 = vld [vmem:[%s0 + $0x1a0] sm:$0xf]
  %v140 = vld [vmem:[%s0 + $0x1a4] sm:$0xf]
  %v141 = vld [vmem:[%s0 + $0x1a8] sm:$0xf]
  %v142 = vld [vmem:[%s0 + $0x1ac] sm:$0xf]
  %v143 = vld [vmem:[%s0 + $0x1b0] sm:$0xf]
  %v144 = vld [vmem:[%s0 + $0x1b4] sm:$0xf]
  %v145 = vld [vmem:[%s0 + $0x1b8] sm:$0xf]
  %v146 = vld [vmem:[%s0 + $0x1bc] sm:$0xf]
  %v147 = vld [vmem:[%s0 + $0x1c0] sm:$0xf]
  %v148 = vld [vmem:[%s0 + $0x1c4] sm:$0xf]
  %v149 = vld [vmem:[%s0 + $0x1c8] sm:$0xf]
  %v150 = vld [vmem:[%s0 + $0x1cc] sm:$0xf]
  %v151 = vld [vmem:[%s0 + $0x1d0] sm:$0xf]
  %v152 = vld [vmem:[%s0 + $0x1d4] sm:$0xf]
  %v153 = vld [vmem:[%s0 + $0x1d8] sm:$0xf]
  %v154 = vld [vmem:[%s0 + $0x1dc] sm:$0xf]
  %v155 = vld [vmem:[%s0 + $0x1e0] sm:$0xf]
  %v156 = vld [vmem:[%s0 + $0x1e4] sm:$0xf]
  %v157 = vld [vmem:[%s0 + $0x1e8] sm:$0xf]
  %v158 = vld [vmem:[%s0 + $0x1ec] sm:$0xf]
  %v159 = vld [vmem:[%s0 + $0x1f0] sm:$0xf]
  %v160 = vld [vmem:[%s0 + $0x1f4] sm:$0xf]
  %v161 = vld [vmem:[%s0 + $0x1f8] sm:$0xf]
  %v162 = vld [vmem:[%s0 + $0x1fc] sm:$0xf]
  %v163 = vld [vmem:[%s0 + $0x200] sm:$0xf]
  %v164 = vld [vmem:[%s0 + $0x204] sm:$0xf]
  %v165 = vld [vmem:[%s0 + $0x208] sm:$0xf]
  %v166 = vld [vmem:[%s0 + $0x20c] sm:$0xf]
  %v167 = vld [vmem:[%s0 + $0x210] sm:$0xf]
  %v168 = vld [vmem:[%s0 + $0x214] sm:$0xf]
  %v169 = vld [vmem:[%s0 + $0x218] sm:$0xf]
  %v170 = vld [vmem:[%s0 + $0x21c] sm:$0xf]
  %v171 = vld [vmem:[%s0 + $0x220] sm:$0xf]
  %v172 = vld [vmem:[%s0 + $0x224] sm:$0xf]
  %v173 = vld [vmem:[%s0 + $0x228] sm:$0xf]
  %v174 = vld [vmem:[%s0 + $0x22c] sm:$0xf]
  %v175 = vld [vmem:[%s0 + $0x230] sm:$0xf]
  %v176 = vld [vmem:[%s0 + $0x234] sm:$0xf]
  %v177 = vld [vmem:[%s0 + $0x238] sm:$0xf]
  %v178 = vld [vmem:[%s0 + $0x23c] sm:$0xf]
  %v179 = vld [vmem:[%s0 + $0x240] sm:$0xf]
  %v180 = vld [vmem:[%s0 + $0x244] sm:$0xf]
  %v181 = vld [vmem:[%s0 + $0x248] sm:$0xf]
  %v182 = vld [vmem:[%s0 + $0x24c] sm:$0xf]
  %v183 = vld [vmem:[%s0 + $0x250] sm:$0xf]
  %v184 = vld [vmem:[%s0 + $0x254] sm:$0xf]
  %v185 = vld [vmem:[%s0 + $0x258] sm:$0xf]
  %v186 = vld [vmem:[%s0 + $0x25c] sm:$0xf]
  %v187 = vld [vmem:[%s0 + $0x260] sm:$0xf]
  %v188 = vld [vmem:[%s0 + $0x264] sm:$0xf]
  %v189 = vld [vmem:[%s0 + $0x268] sm:$0xf]
  %v190 = vld [vmem:[%s0 + $0x26c] sm:$0xf]
  %v191 = vld [vmem:[%s0 + $0x270] sm:$0xf]
  %v192 = vld [vmem:[%s0 + $0x274] sm:$0xf]
  %v193 = vld [vmem:[%s0 + $0x278] sm:$0xf]
  %v194 = vld [vmem:[%s0 + $0x27c] sm:$0xf]
  %v195 = vld [vmem:[%s0 + $0x280] sm:$0xf]
  %v196 = vld [vmem:[%s0 + $0x284] sm:$0xf]
  %v197 = vld [vmem:[%s0 + $0x288] sm:$0xf]
  %v198 = vld [vmem:[%s0 + $0x28c] sm:$0xf]
  %v199 = vld [vmem:[%s0 + $0x290] sm:$0xf]
  %v200 = vld [vmem:[%s0 + $0x294] sm:$0xf]
  %v201 = vld [vmem:[%s0 + $0x298] sm:$0xf]
  %v202 = vld [vmem:[%s0 + $0x29c] sm:$0xf]
  %v203 = vld [vmem:[%s0 + $0x2a0] sm:$0xf]
  %v204 = vld [vmem:[%s0 + $0x2a4] sm:$0xf]
  %v205 = vld [vmem:[%s0 + $0x2a8] sm:$0xf]
  %v206 = vld [vmem:[%s0 + $0x2ac] sm:$0xf]
  %v207 = vld [vmem:[%s0 + $0x2b0] sm:$0xf]
  %v208 = vld [vmem:[%s0 + $0x2b4] sm:$0xf]
  %v209 = vld [vmem:[%s0 + $0x2b8] sm:$0xf]
  %v210 = vld [vmem:[%s0 + $0x2bc] sm:$0xf]
  %v211 = vld [vmem:[%s0 + $0x2c0] sm:$0xf]
  %v212 = vld [vmem:[%s0 + $0x2c4] sm:$0xf]
  %v213 = vld [vmem:[%s0 + $0x2c8] sm:$0xf]
  %v214 = vld [vmem:[%s0 + $0x2cc] sm:$0xf]
  %v215 = vld [vmem:[%s0 + $0x2d0] sm:$0xf]
  %v216 = vld [vmem:[%s0 + $0x2d4] sm:$0xf]
  %v217 = vld [vmem:[%s0 + $0x2d8] sm:$0xf]
  %v218 = vld [vmem:[%s0 + $0x2dc] sm:$0xf]
  %v219 = vld [vmem:[%s0 + $0x2e0] sm:$0xf]
  %v220 = vld [vmem:[%s0 + $0x2e4] sm:$0xf]
  %v221 = vld [vmem:[%s0 + $0x2e8] sm:$0xf]
  %v222 = vld [vmem:[%s0 + $0x2ec] sm:$0xf]
  %v223 = vld [vmem:[%s0 + $0x2f0] sm:$0xf]
  %v224 = vld [vmem:[%s0 + $0x2f4] sm:$0xf]
  %v225 = vld [vmem:[%s0 + $0x2f8] sm:$0xf]
  %v226 = vld [vmem:[%s0 + $0x2fc] sm:$0xf]
  %v227 = vld [vmem:[%s0 + $0x300] sm:$0xf]
  %v228 = vld [vmem:[%s0 + $0x304] sm:$0xf]
  %v229 = vld [vmem:[%s0 + $0x308] sm:$0xf]
  %v230 = vld [vmem:[%s0 + $0x30c] sm:$0xf]
  %v231 = vld [vmem:[%s0 + $0x310] sm:$0xf]
  %v232 = vld [vmem:[%s0 + $0x314] sm:$0xf]
  %v233 = vld [vmem:[%s0 + $0x318] sm:$0xf]
  %v234 = vld [vmem:[%s0 + $0x31c] sm:$0xf]
  %v235 = vld [vmem:[%s1] sm:$0xf]
  %v236 = vld [vmem:[%s1 + $0x4] sm:$0xf]
  %v237 = vld [vmem:[%s1 + $0x8] sm:$0xf]
  %v238 = vld [vmem:[%s1 + $0xc] sm:$0xf]
  %v239 = vld [vmem:[%s1 + $0x10] sm:$0xf]
  %v240 = vld [vmem:[%s1 + $0x14] sm:$0xf]
  %v241 = vld [vmem:[%s1 + $0x18] sm:$0xf]
  %v242 = vld [vmem:[%s1 + $0x1c] sm:$0xf]
  %v243 = vld [vmem:[%s1 + $0x20] sm:$0xf]
  %v244 = vld [vmem:[%s1 + $0x24] sm:$0xf]
  %v245 = vld [vmem:[%s1 + $0x28] sm:$0xf]
  %v246 = vld [vmem:[%s1 + $0x2c] sm:$0xf]
  %v247 = vld [vmem:[%s1 + $0x30] sm:$0xf]
  %v248 = vld [vmem:[%s1 + $0x34] sm:$0xf]
  %v249 = vld [vmem:[%s1 + $0x38] sm:$0xf]
  %v250 = vld [vmem:[%s1 + $0x3c] sm:$0xf]
  %v251 = vld [vmem:[%s2] sm:$0x1]
  %v253 = vlaneseq
  %v254 = vshrl.u32 %v253, 7
  %v255 = vsub.s32 0, %v254
  %v256 = vrot.slane %v251, %v255
  %v458 = vunpack.c.l.b16 %v35
  %v459 = vunpack.c.l.b16 %v36
  %v460 = vunpack.c.l.b16 %v37
  %v461 = vunpack.c.l.b16 %v38
  %v462 = vunpack.c.l.b16 %v39
  %v463 = vunpack.c.l.b16 %v40
  %v464 = vunpack.c.l.b16 %v41
  %v465 = vunpack.c.l.b16 %v42
  %v466 = vunpack.c.l.b16 %v43
  %v467 = vunpack.c.l.b16 %v44
  %v468 = vunpack.c.l.b16 %v45
  %v469 = vunpack.c.l.b16 %v46
  %v470 = vunpack.c.l.b16 %v47
  %v471 = vunpack.c.l.b16 %v48
  %v472 = vunpack.c.l.b16 %v49
  %v473 = vunpack.c.l.b16 %v50
  %v474 = vunpack.c.l.b16 %v51
  %v475 = vunpack.c.l.b16 %v52
  %v476 = vunpack.c.l.b16 %v53
  %v477 = vunpack.c.l.b16 %v54
  %v478 = vunpack.c.l.b16 %v55
  %v479 = vunpack.c.l.b16 %v56
  %v480 = vunpack.c.l.b16 %v57
  %v481 = vunpack.c.l.b16 %v58
  %v482 = vunpack.c.l.b16 %v59
  %v483 = vunpack.c.l.b16 %v60
  %v484 = vunpack.c.l.b16 %v61
  %v485 = vunpack.c.l.b16 %v62
  %v486 = vunpack.c.l.b16 %v63
  %v487 = vunpack.c.l.b16 %v64
  %v488 = vunpack.c.l.b16 %v65
  %v489 = vunpack.c.l.b16 %v66
  %v490 = vunpack.c.l.b16 %v67
  %v491 = vunpack.c.l.b16 %v68
  %v492 = vunpack.c.l.b16 %v69
  %v493 = vunpack.c.l.b16 %v70
  %v494 = vunpack.c.l.b16 %v71
  %v495 = vunpack.c.l.b16 %v72
  %v496 = vunpack.c.l.b16 %v73
  %v497 = vunpack.c.l.b16 %v74
  %v498 = vunpack.c.l.b16 %v75
  %v499 = vunpack.c.l.b16 %v76
  %v500 = vunpack.c.l.b16 %v77
  %v501 = vunpack.c.l.b16 %v78
  %v502 = vunpack.c.l.b16 %v79
  %v503 = vunpack.c.l.b16 %v80
  %v504 = vunpack.c.l.b16 %v81
  %v505 = vunpack.c.l.b16 %v82
  %v506 = vunpack.c.l.b16 %v83
  %v507 = vunpack.c.l.b16 %v84
  %v508 = vunpack.c.l.b16 %v85
  %v509 = vunpack.c.l.b16 %v86
  %v510 = vunpack.c.l.b16 %v87
  %v511 = vunpack.c.l.b16 %v88
  %v512 = vunpack.c.l.b16 %v89
  %v513 = vunpack.c.l.b16 %v90
  %v514 = vunpack.c.l.b16 %v91
  %v515 = vunpack.c.l.b16 %v92
  %v516 = vunpack.c.l.b16 %v93
  %v517 = vunpack.c.l.b16 %v94
  %v518 = vunpack.c.l.b16 %v95
  %v519 = vunpack.c.l.b16 %v96
  %v520 = vunpack.c.l.b16 %v97
  %v521 = vunpack.c.l.b16 %v98
  %v522 = vunpack.c.l.b16 %v99
  %v523 = vunpack.c.l.b16 %v100
  %v524 = vunpack.c.l.b16 %v101
  %v525 = vunpack.c.l.b16 %v102
  %v526 = vunpack.c.l.b16 %v103
  %v527 = vunpack.c.l.b16 %v104
  %v528 = vunpack.c.l.b16 %v105
  %v529 = vunpack.c.l.b16 %v106
  %v530 = vunpack.c.l.b16 %v107
  %v531 = vunpack.c.l.b16 %v108
  %v532 = vunpack.c.l.b16 %v109
  %v533 = vunpack.c.l.b16 %v110
  %v534 = vunpack.c.l.b16 %v111
  %v535 = vunpack.c.l.b16 %v112
  %v536 = vunpack.c.l.b16 %v113
  %v537 = vunpack.c.l.b16 %v114
  %v538 = vunpack.c.l.b16 %v115
  %v539 = vunpack.c.l.b16 %v116
  %v540 = vunpack.c.l.b16 %v117
  %v541 = vunpack.c.l.b16 %v118
  %v542 = vunpack.c.l.b16 %v119
  %v543 = vunpack.c.l.b16 %v120
  %v544 = vunpack.c.l.b16 %v121
  %v545 = vunpack.c.l.b16 %v122
  %v546 = vunpack.c.l.b16 %v123
  %v547 = vunpack.c.l.b16 %v124
  %v548 = vunpack.c.l.b16 %v125
  %v549 = vunpack.c.l.b16 %v126
  %v550 = vunpack.c.l.b16 %v127
  %v551 = vunpack.c.l.b16 %v128
  %v552 = vunpack.c.l.b16 %v129
  %v553 = vunpack.c.l.b16 %v130
  %v554 = vunpack.c.l.b16 %v131
  %v555 = vunpack.c.l.b16 %v132
  %v556 = vunpack.c.l.b16 %v133
  %v557 = vunpack.c.l.b16 %v134
  %v558 = vunpack.c.l.b16 %v135
  %v559 = vunpack.c.l.b16 %v136
  %v560 = vunpack.c.l.b16 %v137
  %v561 = vunpack.c.l.b16 %v138
  %v562 = vunpack.c.l.b16 %v139
  %v563 = vunpack.c.l.b16 %v140
  %v564 = vunpack.c.l.b16 %v141
  %v565 = vunpack.c.l.b16 %v142
  %v566 = vunpack.c.l.b16 %v143
  %v567 = vunpack.c.l.b16 %v144
  %v568 = vunpack.c.l.b16 %v145
  %v569 = vunpack.c.l.b16 %v146
  %v570 = vunpack.c.l.b16 %v147
  %v571 = vunpack.c.l.b16 %v148
  %v572 = vunpack.c.l.b16 %v149
  %v573 = vunpack.c.l.b16 %v150
  %v574 = vunpack.c.l.b16 %v151
  %v575 = vunpack.c.l.b16 %v152
  %v576 = vunpack.c.l.b16 %v153
  %v577 = vunpack.c.l.b16 %v154
  %v578 = vunpack.c.l.b16 %v155
  %v579 = vunpack.c.l.b16 %v156
  %v580 = vunpack.c.l.b16 %v157
  %v581 = vunpack.c.l.b16 %v158
  %v582 = vunpack.c.l.b16 %v159
  %v583 = vunpack.c.l.b16 %v160
  %v584 = vunpack.c.l.b16 %v161
  %v585 = vunpack.c.l.b16 %v162
  %v586 = vunpack.c.l.b16 %v163
  %v587 = vunpack.c.l.b16 %v164
  %v588 = vunpack.c.l.b16 %v165
  %v589 = vunpack.c.l.b16 %v166
  %v590 = vunpack.c.l.b16 %v167
  %v591 = vunpack.c.l.b16 %v168
  %v592 = vunpack.c.l.b16 %v169
  %v593 = vunpack.c.l.b16 %v170
  %v594 = vunpack.c.l.b16 %v171
  %v595 = vunpack.c.l.b16 %v172
  %v596 = vunpack.c.l.b16 %v173
  %v597 = vunpack.c.l.b16 %v174
  %v598 = vunpack.c.l.b16 %v175
  %v599 = vunpack.c.l.b16 %v176
  %v600 = vunpack.c.l.b16 %v177
  %v601 = vunpack.c.l.b16 %v178
  %v602 = vunpack.c.l.b16 %v179
  %v603 = vunpack.c.l.b16 %v180
  %v604 = vunpack.c.l.b16 %v181
  %v605 = vunpack.c.l.b16 %v182
  %v606 = vunpack.c.l.b16 %v183
  %v607 = vunpack.c.l.b16 %v184
  %v608 = vunpack.c.l.b16 %v185
  %v609 = vunpack.c.l.b16 %v186
  %v610 = vunpack.c.l.b16 %v187
  %v611 = vunpack.c.l.b16 %v188
  %v612 = vunpack.c.l.b16 %v189
  %v613 = vunpack.c.l.b16 %v190
  %v614 = vunpack.c.l.b16 %v191
  %v615 = vunpack.c.l.b16 %v192
  %v616 = vunpack.c.l.b16 %v193
  %v617 = vunpack.c.l.b16 %v194
  %v618 = vunpack.c.l.b16 %v195
  %v619 = vunpack.c.l.b16 %v196
  %v620 = vunpack.c.l.b16 %v197
  %v621 = vunpack.c.l.b16 %v198
  %v622 = vunpack.c.l.b16 %v199
  %v623 = vunpack.c.l.b16 %v200
  %v624 = vunpack.c.l.b16 %v201
  %v625 = vunpack.c.l.b16 %v202
  %v626 = vunpack.c.l.b16 %v203
  %v627 = vunpack.c.l.b16 %v204
  %v628 = vunpack.c.l.b16 %v205
  %v629 = vunpack.c.l.b16 %v206
  %v630 = vunpack.c.l.b16 %v207
  %v631 = vunpack.c.l.b16 %v208
  %v632 = vunpack.c.l.b16 %v209
  %v633 = vunpack.c.l.b16 %v210
  %v634 = vunpack.c.l.b16 %v211
  %v635 = vunpack.c.l.b16 %v212
  %v636 = vunpack.c.l.b16 %v213
  %v637 = vunpack.c.l.b16 %v214
  %v638 = vunpack.c.l.b16 %v215
  %v639 = vunpack.c.l.b16 %v216
  %v640 = vunpack.c.l.b16 %v217
  %v641 = vunpack.c.l.b16 %v218
  %v642 = vunpack.c.l.b16 %v219
  %v643 = vunpack.c.l.b16 %v220
  %v644 = vunpack.c.l.b16 %v221
  %v645 = vunpack.c.l.b16 %v222
  %v646 = vunpack.c.l.b16 %v223
  %v647 = vunpack.c.l.b16 %v224
  %v648 = vunpack.c.l.b16 %v225
  %v649 = vunpack.c.l.b16 %v226
  %v650 = vunpack.c.l.b16 %v227
  %v651 = vunpack.c.l.b16 %v228
  %v652 = vunpack.c.l.b16 %v229
  %v653 = vunpack.c.l.b16 %v230
  %v654 = vunpack.c.l.b16 %v231
  %v655 = vunpack.c.l.b16 %v232
  %v656 = vunpack.c.l.b16 %v233
  %v657 = vunpack.c.l.b16 %v234
  %v658 = vpack.c.b16 %v459, %v458
  %v659 = vpack.c.b16 %v461, %v460
  %v660 = vpack.c.b16 %v463, %v462
  %v661 = vpack.c.b16 %v465, %v464
  %v662 = vpack.c.b16 %v467, %v466
  %v663 = vpack.c.b16 %v469, %v468
  %v664 = vpack.c.b16 %v471, %v470
  %v665 = vpack.c.b16 %v473, %v472
  %v666 = vpack.c.b16 %v475, %v474
  %v667 = vpack.c.b16 %v477, %v476
  %v668 = vpack.c.b16 %v479, %v478
  %v669 = vpack.c.b16 %v481, %v480
  %v670 = vpack.c.b16 %v483, %v482
  %v671 = vpack.c.b16 %v485, %v484
  %v672 = vpack.c.b16 %v487, %v486
  %v673 = vpack.c.b16 %v489, %v488
  %v674 = vpack.c.b16 %v491, %v490
  %v675 = vpack.c.b16 %v493, %v492
  %v676 = vpack.c.b16 %v495, %v494
  %v677 = vpack.c.b16 %v497, %v496
  %v678 = vpack.c.b16 %v499, %v498
  %v679 = vpack.c.b16 %v501, %v500
  %v680 = vpack.c.b16 %v503, %v502
  %v681 = vpack.c.b16 %v505, %v504
  %v682 = vpack.c.b16 %v507, %v506
  %v683 = vpack.c.b16 %v509, %v508
  %v684 = vpack.c.b16 %v511, %v510
  %v685 = vpack.c.b16 %v513, %v512
  %v686 = vpack.c.b16 %v515, %v514
  %v687 = vpack.c.b16 %v517, %v516
  %v688 = vpack.c.b16 %v519, %v518
  %v689 = vpack.c.b16 %v521, %v520
  %v690 = vpack.c.b16 %v523, %v522
  %v691 = vpack.c.b16 %v525, %v524
  %v692 = vpack.c.b16 %v527, %v526
  %v693 = vpack.c.b16 %v529, %v528
  %v694 = vpack.c.b16 %v531, %v530
  %v695 = vpack.c.b16 %v533, %v532
  %v696 = vpack.c.b16 %v535, %v534
  %v697 = vpack.c.b16 %v537, %v536
  %v698 = vpack.c.b16 %v539, %v538
  %v699 = vpack.c.b16 %v541, %v540
  %v700 = vpack.c.b16 %v543, %v542
  %v701 = vpack.c.b16 %v545, %v544
  %v702 = vpack.c.b16 %v547, %v546
  %v703 = vpack.c.b16 %v549, %v548
  %v704 = vpack.c.b16 %v551, %v550
  %v705 = vpack.c.b16 %v553, %v552
  %v706 = vpack.c.b16 %v555, %v554
  %v707 = vpack.c.b16 %v557, %v556
  %v708 = vpack.c.b16 %v559, %v558
  %v709 = vpack.c.b16 %v561, %v560
  %v710 = vpack.c.b16 %v563, %v562
  %v711 = vpack.c.b16 %v565, %v564
  %v712 = vpack.c.b16 %v567, %v566
  %v713 = vpack.c.b16 %v569, %v568
  %v714 = vpack.c.b16 %v571, %v570
  %v715 = vpack.c.b16 %v573, %v572
  %v716 = vpack.c.b16 %v575, %v574
  %v717 = vpack.c.b16 %v577, %v576
  %v718 = vpack.c.b16 %v579, %v578
  %v719 = vpack.c.b16 %v581, %v580
  %v720 = vpack.c.b16 %v583, %v582
  %v721 = vpack.c.b16 %v585, %v584
  %v722 = vpack.c.b16 %v587, %v586
  %v723 = vpack.c.b16 %v589, %v588
  %v724 = vpack.c.b16 %v591, %v590
  %v725 = vpack.c.b16 %v593, %v592
  %v726 = vpack.c.b16 %v595, %v594
  %v727 = vpack.c.b16 %v597, %v596
  %v728 = vpack.c.b16 %v599, %v598
  %v729 = vpack.c.b16 %v601, %v600
  %v730 = vpack.c.b16 %v603, %v602
  %v731 = vpack.c.b16 %v605, %v604
  %v732 = vpack.c.b16 %v607, %v606
  %v733 = vpack.c.b16 %v609, %v608
  %v734 = vpack.c.b16 %v611, %v610
  %v735 = vpack.c.b16 %v613, %v612
  %v736 = vpack.c.b16 %v615, %v614
  %v737 = vpack.c.b16 %v617, %v616
  %v738 = vpack.c.b16 %v619, %v618
  %v739 = vpack.c.b16 %v621, %v620
  %v740 = vpack.c.b16 %v623, %v622
  %v741 = vpack.c.b16 %v625, %v624
  %v742 = vpack.c.b16 %v627, %v626
  %v743 = vpack.c.b16 %v629, %v628
  %v744 = vpack.c.b16 %v631, %v630
  %v745 = vpack.c.b16 %v633, %v632
  %v746 = vpack.c.b16 %v635, %v634
  %v747 = vpack.c.b16 %v637, %v636
  %v748 = vpack.c.b16 %v639, %v638
  %v749 = vpack.c.b16 %v641, %v640
  %v750 = vpack.c.b16 %v643, %v642
  %v751 = vpack.c.b16 %v645, %v644
  %v752 = vpack.c.b16 %v647, %v646
  %v753 = vpack.c.b16 %v649, %v648
  %v754 = vpack.c.b16 %v651, %v650
  %v755 = vpack.c.b16 %v653, %v652
  %v756 = vpack.c.b16 %v655, %v654
  %v757 = vpack.c.b16 %v657, %v656
  %v874 = vunpack.c.l.b16 %v235
  %v875 = vunpack.c.l.b16 %v236
  %v876 = vunpack.c.l.b16 %v237
  %v877 = vunpack.c.l.b16 %v238
  %v878 = vunpack.c.l.b16 %v239
  %v879 = vunpack.c.l.b16 %v240
  %v880 = vunpack.c.l.b16 %v241
  %v881 = vunpack.c.l.b16 %v242
  %v882 = vunpack.c.l.b16 %v243
  %v883 = vunpack.c.l.b16 %v244
  %v884 = vunpack.c.l.b16 %v245
  %v885 = vunpack.c.l.b16 %v246
  %v886 = vunpack.c.l.b16 %v247
  %v887 = vunpack.c.l.b16 %v248
  %v888 = vunpack.c.l.b16 %v249
  %v889 = vunpack.c.l.b16 %v250
  %v890 = vpack.c.b16 %v875, %v874
  %v891 = vpack.c.b16 %v877, %v876
  %v892 = vpack.c.b16 %v879, %v878
  %v893 = vpack.c.b16 %v881, %v880
  %v894 = vpack.c.b16 %v883, %v882
  %v895 = vpack.c.b16 %v885, %v884
  %v896 = vpack.c.b16 %v887, %v886
  %v897 = vpack.c.b16 %v889, %v888
  %906 = vmatprep.subr.bf16.mxu0 0
  %907 = vmatpush1.bf16.msra.mxu0 %v897
  %908 = vmatprep.subr.bf16.mxu0 0
  %909 = vmatpush1.bf16.msra.mxu0 %v896
  %910 = vmatprep.subr.bf16.mxu0 0
  %911 = vmatpush1.bf16.msra.mxu0 %v895
  %912 = vmatprep.subr.bf16.mxu0 0
  %913 = vmatpush1.bf16.msra.mxu0 %v894
  %914 = vmatprep.subr.bf16.mxu0 0
  %915 = vmatpush1.bf16.msra.mxu0 %v893
  %916 = vmatprep.subr.bf16.mxu0 0
  %917 = vmatpush1.bf16.msra.mxu0 %v892
  %918 = vmatprep.subr.bf16.mxu0 0
  %919 = vmatpush1.bf16.msra.mxu0 %v891
  %920 = vmatprep.subr.bf16.mxu0 0
  %921 = vmatpush1.bf16.msra.mxu0 %v890
  %922 = vmatprep.subr.bf16.mxu0 0
  %923 = vmatpush2.bf16.msra.mxu0 0
  %924 = vmatprep.subr.bf16.mxu0 0
  %925 = vmatpush2.bf16.msra.mxu0 0
  %926 = vmatprep.subr.bf16.mxu0 0
  %927 = vmatpush2.bf16.msra.mxu0 0
  %928 = vmatprep.subr.bf16.mxu0 0
  %929 = vmatpush2.bf16.msra.mxu0 0
  %930 = vmatprep.subr.bf16.mxu0 0
  %931 = vmatpush2.bf16.msra.mxu0 0
  %932 = vmatprep.subr.bf16.mxu0 0
  %933 = vmatpush2.bf16.msra.mxu0 0
  %934 = vmatprep.subr.bf16.mxu0 0
  %935 = vmatpush2.bf16.msra.mxu0 0
  %936 = vmatprep.subr.bf16.mxu0 0
  %937 = vmatpush2.bf16.msra.mxu0 0
  %938 = vmatprep.mubr.bf16.mxu0 0
  %939 = vmatmul.mubr.bf16.gmra.mxu0 %v658
  %v940 = vpop.f32.mrf.mxu0
  %v941 = vadd.f32 %v256, %v940
  %v942 = vpop.f32.mrf.mxu0
  %v943 = vpop.f32.mrf.mxu0
  %v944 = vadd.f32 %v256, %v943
  %v945 = vpop.f32.mrf.mxu0
  %946 = vmatprep.mubr.bf16.mxu0 0
  %947 = vmatmul.mubr.bf16.gmra.mxu0 %v659
  %v948 = vpop.f32.mrf.mxu0
  %v949 = vadd.f32 %v256, %v948
  %v950 = vpop.f32.mrf.mxu0
  %v951 = vpop.f32.mrf.mxu0
  %v952 = vadd.f32 %v256, %v951
  %v953 = vpop.f32.mrf.mxu0
  %954 = vmatprep.mubr.bf16.mxu0 0
  %955 = vmatmul.mubr.bf16.gmra.mxu0 %v660
  %v956 = vpop.f32.mrf.mxu0
  %v957 = vadd.f32 %v256, %v956
  %v958 = vpop.f32.mrf.mxu0
  %v959 = vpop.f32.mrf.mxu0
  %v960 = vadd.f32 %v256, %v959
  %v961 = vpop.f32.mrf.mxu0
  %962 = vmatprep.mubr.bf16.mxu0 0
  %963 = vmatmul.mubr.bf16.gmra.mxu0 %v661
  %v964 = vpop.f32.mrf.mxu0
  %v965 = vadd.f32 %v256, %v964
  %v966 = vpop.f32.mrf.mxu0
  %v967 = vpop.f32.mrf.mxu0
  %v968 = vadd.f32 %v256, %v967
  %v969 = vpop.f32.mrf.mxu0
  %970 = vmatprep.mubr.bf16.mxu0 0
  %971 = vmatmul.mubr.bf16.gmra.mxu0 %v662
  %v972 = vpop.f32.mrf.mxu0
  %v973 = vadd.f32 %v256, %v972
  %v974 = vpop.f32.mrf.mxu0
  %v975 = vpop.f32.mrf.mxu0
  %v976 = vadd.f32 %v256, %v975
  %v977 = vpop.f32.mrf.mxu0
  %978 = vmatprep.mubr.bf16.mxu0 0
  %979 = vmatmul.mubr.bf16.gmra.mxu0 %v663
  %v980 = vpop.f32.mrf.mxu0
  %v981 = vadd.f32 %v256, %v980
  %v982 = vpop.f32.mrf.mxu0
  %v983 = vpop.f32.mrf.mxu0
  %v984 = vadd.f32 %v256, %v983
  %v985 = vpop.f32.mrf.mxu0
  %986 = vmatprep.mubr.bf16.mxu0 0
  %987 = vmatmul.mubr.bf16.gmra.mxu0 %v664
  %v988 = vpop.f32.mrf.mxu0
  %v989 = vadd.f32 %v256, %v988
  %v990 = vpop.f32.mrf.mxu0
  %v991 = vpop.f32.mrf.mxu0
  %v992 = vadd.f32 %v256, %v991
  %v993 = vpop.f32.mrf.mxu0
  %994 = vmatprep.mubr.bf16.mxu0 0
  %995 = vmatmul.mubr.bf16.gmra.mxu0 %v665
  %v996 = vpop.f32.mrf.mxu0
  %v997 = vadd.f32 %v256, %v996
  %v998 = vpop.f32.mrf.mxu0
  %v999 = vpop.f32.mrf.mxu0
  %v1000 = vadd.f32 %v256, %v999
  %v1001 = vpop.f32.mrf.mxu0
  %1002 = vmatprep.mubr.bf16.mxu0 0
  %1003 = vmatmul.mubr.bf16.gmra.mxu0 %v666
  %v1004 = vpop.f32.mrf.mxu0
  %v1005 = vadd.f32 %v256, %v1004
  %v1006 = vpop.f32.mrf.mxu0
  %v1007 = vpop.f32.mrf.mxu0
  %v1008 = vadd.f32 %v256, %v1007
  %v1009 = vpop.f32.mrf.mxu0
  %1010 = vmatprep.mubr.bf16.mxu0 0
  %1011 = vmatmul.mubr.bf16.gmra.mxu0 %v667
  %v1012 = vpop.f32.mrf.mxu0
  %v1013 = vadd.f32 %v256, %v1012
  %v1014 = vpop.f32.mrf.mxu0
  %v1015 = vpop.f32.mrf.mxu0
  %v1016 = vadd.f32 %v256, %v1015
  %v1017 = vpop.f32.mrf.mxu0
  %1018 = vmatprep.mubr.bf16.mxu0 0
  %1019 = vmatmul.mubr.bf16.gmra.mxu0 %v668
  %v1020 = vpop.f32.mrf.mxu0
  %v1021 = vadd.f32 %v256, %v1020
  %v1022 = vpop.f32.mrf.mxu0
  %v1023 = vpop.f32.mrf.mxu0
  %v1024 = vadd.f32 %v256, %v1023
  %v1025 = vpop.f32.mrf.mxu0
  %1026 = vmatprep.mubr.bf16.mxu0 0
  %1027 = vmatmul.mubr.bf16.gmra.mxu0 %v669
  %v1028 = vpop.f32.mrf.mxu0
  %v1029 = vadd.f32 %v256, %v1028
  %v1030 = vpop.f32.mrf.mxu0
  %v1031 = vpop.f32.mrf.mxu0
  %v1032 = vadd.f32 %v256, %v1031
  %v1033 = vpop.f32.mrf.mxu0
  %1034 = vmatprep.mubr.bf16.mxu0 0
  %1035 = vmatmul.mubr.bf16.gmra.mxu0 %v670
  %v1036 = vpop.f32.mrf.mxu0
  %v1037 = vadd.f32 %v256, %v1036
  %v1038 = vpop.f32.mrf.mxu0
  %v1039 = vpop.f32.mrf.mxu0
  %v1040 = vadd.f32 %v256, %v1039
  %v1041 = vpop.f32.mrf.mxu0
  %1042 = vmatprep.mubr.bf16.mxu0 0
  %1043 = vmatmul.mubr.bf16.gmra.mxu0 %v671
  %v1044 = vpop.f32.mrf.mxu0
  %v1045 = vadd.f32 %v256, %v1044
  %v1046 = vpop.f32.mrf.mxu0
  %v1047 = vpop.f32.mrf.mxu0
  %v1048 = vadd.f32 %v256, %v1047
  %v1049 = vpop.f32.mrf.mxu0
  %1050 = vmatprep.mubr.bf16.mxu0 0
  %1051 = vmatmul.mubr.bf16.gmra.mxu0 %v672
  %v1052 = vpop.f32.mrf.mxu0
  %v1053 = vadd.f32 %v256, %v1052
  %v1054 = vpop.f32.mrf.mxu0
  %v1055 = vpop.f32.mrf.mxu0
  %v1056 = vadd.f32 %v256, %v1055
  %v1057 = vpop.f32.mrf.mxu0
  %1058 = vmatprep.mubr.bf16.mxu0 0
  %1059 = vmatmul.mubr.bf16.gmra.mxu0 %v673
  %v1060 = vpop.f32.mrf.mxu0
  %v1061 = vadd.f32 %v256, %v1060
  %v1062 = vpop.f32.mrf.mxu0
  %v1063 = vpop.f32.mrf.mxu0
  %v1064 = vadd.f32 %v256, %v1063
  %v1065 = vpop.f32.mrf.mxu0
  %1066 = vmatprep.mubr.bf16.mxu0 0
  %1067 = vmatmul.mubr.bf16.gmra.mxu0 %v674
  %v1068 = vpop.f32.mrf.mxu0
  %v1069 = vadd.f32 %v256, %v1068
  %v1070 = vpop.f32.mrf.mxu0
  %v1071 = vpop.f32.mrf.mxu0
  %v1072 = vadd.f32 %v256, %v1071
  %v1073 = vpop.f32.mrf.mxu0
  %1074 = vmatprep.mubr.bf16.mxu0 0
  %1075 = vmatmul.mubr.bf16.gmra.mxu0 %v675
  %v1076 = vpop.f32.mrf.mxu0
  %v1077 = vadd.f32 %v256, %v1076
  %v1078 = vpop.f32.mrf.mxu0
  %v1079 = vpop.f32.mrf.mxu0
  %v1080 = vadd.f32 %v256, %v1079
  %v1081 = vpop.f32.mrf.mxu0
  %1082 = vmatprep.mubr.bf16.mxu0 0
  %1083 = vmatmul.mubr.bf16.gmra.mxu0 %v676
  %v1084 = vpop.f32.mrf.mxu0
  %v1085 = vadd.f32 %v256, %v1084
  %v1086 = vpop.f32.mrf.mxu0
  %v1087 = vpop.f32.mrf.mxu0
  %v1088 = vadd.f32 %v256, %v1087
  %v1089 = vpop.f32.mrf.mxu0
  %1090 = vmatprep.mubr.bf16.mxu0 0
  %1091 = vmatmul.mubr.bf16.gmra.mxu0 %v677
  %v1092 = vpop.f32.mrf.mxu0
  %v1093 = vadd.f32 %v256, %v1092
  %v1094 = vpop.f32.mrf.mxu0
  %v1095 = vpop.f32.mrf.mxu0
  %v1096 = vadd.f32 %v256, %v1095
  %v1097 = vpop.f32.mrf.mxu0
  %1098 = vmatprep.mubr.bf16.mxu0 0
  %1099 = vmatmul.mubr.bf16.gmra.mxu0 %v678
  %v1100 = vpop.f32.mrf.mxu0
  %v1101 = vadd.f32 %v256, %v1100
  %v1102 = vpop.f32.mrf.mxu0
  %v1103 = vpop.f32.mrf.mxu0
  %v1104 = vadd.f32 %v256, %v1103
  %v1105 = vpop.f32.mrf.mxu0
  %1106 = vmatprep.mubr.bf16.mxu0 0
  %1107 = vmatmul.mubr.bf16.gmra.mxu0 %v679
  %v1108 = vpop.f32.mrf.mxu0
  %v1109 = vadd.f32 %v256, %v1108
  %v1110 = vpop.f32.mrf.mxu0
  %v1111 = vpop.f32.mrf.mxu0
  %v1112 = vadd.f32 %v256, %v1111
  %v1113 = vpop.f32.mrf.mxu0
  %1114 = vmatprep.mubr.bf16.mxu0 0
  %1115 = vmatmul.mubr.bf16.gmra.mxu0 %v680
  %v1116 = vpop.f32.mrf.mxu0
  %v1117 = vadd.f32 %v256, %v1116
  %v1118 = vpop.f32.mrf.mxu0
  %v1119 = vpop.f32.mrf.mxu0
  %v1120 = vadd.f32 %v256, %v1119
  %v1121 = vpop.f32.mrf.mxu0
  %1122 = vmatprep.mubr.bf16.mxu0 0
  %1123 = vmatmul.mubr.bf16.gmra.mxu0 %v681
  %v1124 = vpop.f32.mrf.mxu0
  %v1125 = vadd.f32 %v256, %v1124
  %v1126 = vpop.f32.mrf.mxu0
  %v1127 = vpop.f32.mrf.mxu0
  %v1128 = vadd.f32 %v256, %v1127
  %v1129 = vpop.f32.mrf.mxu0
  %1130 = vmatprep.mubr.bf16.mxu0 0
  %1131 = vmatmul.mubr.bf16.gmra.mxu0 %v682
  %v1132 = vpop.f32.mrf.mxu0
  %v1133 = vadd.f32 %v256, %v1132
  %v1134 = vpop.f32.mrf.mxu0
  %v1135 = vpop.f32.mrf.mxu0
  %v1136 = vadd.f32 %v256, %v1135
  %v1137 = vpop.f32.mrf.mxu0
  %1138 = vmatprep.mubr.bf16.mxu0 0
  %1139 = vmatmul.mubr.bf16.gmra.mxu0 %v683
  %v1140 = vpop.f32.mrf.mxu0
  %v1141 = vadd.f32 %v256, %v1140
  %v1142 = vpop.f32.mrf.mxu0
  %v1143 = vpop.f32.mrf.mxu0
  %v1144 = vadd.f32 %v256, %v1143
  %v1145 = vpop.f32.mrf.mxu0
  %1146 = vmatprep.mubr.bf16.mxu0 0
  %1147 = vmatmul.mubr.bf16.gmra.mxu0 %v684
  %v1148 = vpop.f32.mrf.mxu0
  %v1149 = vadd.f32 %v256, %v1148
  %v1150 = vpop.f32.mrf.mxu0
  %v1151 = vpop.f32.mrf.mxu0
  %v1152 = vadd.f32 %v256, %v1151
  %v1153 = vpop.f32.mrf.mxu0
  %1154 = vmatprep.mubr.bf16.mxu0 0
  %1155 = vmatmul.mubr.bf16.gmra.mxu0 %v685
  %v1156 = vpop.f32.mrf.mxu0
  %v1157 = vadd.f32 %v256, %v1156
  %v1158 = vpop.f32.mrf.mxu0
  %v1159 = vpop.f32.mrf.mxu0
  %v1160 = vadd.f32 %v256, %v1159
  %v1161 = vpop.f32.mrf.mxu0
  %1162 = vmatprep.mubr.bf16.mxu0 0
  %1163 = vmatmul.mubr.bf16.gmra.mxu0 %v686
  %v1164 = vpop.f32.mrf.mxu0
  %v1165 = vadd.f32 %v256, %v1164
  %v1166 = vpop.f32.mrf.mxu0
  %v1167 = vpop.f32.mrf.mxu0
  %v1168 = vadd.f32 %v256, %v1167
  %v1169 = vpop.f32.mrf.mxu0
  %1170 = vmatprep.mubr.bf16.mxu0 0
  %1171 = vmatmul.mubr.bf16.gmra.mxu0 %v687
  %v1172 = vpop.f32.mrf.mxu0
  %v1173 = vadd.f32 %v256, %v1172
  %v1174 = vpop.f32.mrf.mxu0
  %v1175 = vpop.f32.mrf.mxu0
  %v1176 = vadd.f32 %v256, %v1175
  %v1177 = vpop.f32.mrf.mxu0
  %1178 = vmatprep.mubr.bf16.mxu0 0
  %1179 = vmatmul.mubr.bf16.gmra.mxu0 %v688
  %v1180 = vpop.f32.mrf.mxu0
  %v1181 = vadd.f32 %v256, %v1180
  %v1182 = vpop.f32.mrf.mxu0
  %v1183 = vpop.f32.mrf.mxu0
  %v1184 = vadd.f32 %v256, %v1183
  %v1185 = vpop.f32.mrf.mxu0
  %1186 = vmatprep.mubr.bf16.mxu0 0
  %1187 = vmatmul.mubr.bf16.gmra.mxu0 %v689
  %v1188 = vpop.f32.mrf.mxu0
  %v1189 = vadd.f32 %v256, %v1188
  %v1190 = vpop.f32.mrf.mxu0
  %v1191 = vpop.f32.mrf.mxu0
  %v1192 = vadd.f32 %v256, %v1191
  %v1193 = vpop.f32.mrf.mxu0
  %1194 = vmatprep.mubr.bf16.mxu0 0
  %1195 = vmatmul.mubr.bf16.gmra.mxu0 %v690
  %v1196 = vpop.f32.mrf.mxu0
  %v1197 = vadd.f32 %v256, %v1196
  %v1198 = vpop.f32.mrf.mxu0
  %v1199 = vpop.f32.mrf.mxu0
  %v1200 = vadd.f32 %v256, %v1199
  %v1201 = vpop.f32.mrf.mxu0
  %1202 = vmatprep.mubr.bf16.mxu0 0
  %1203 = vmatmul.mubr.bf16.gmra.mxu0 %v691
  %v1204 = vpop.f32.mrf.mxu0
  %v1205 = vadd.f32 %v256, %v1204
  %v1206 = vpop.f32.mrf.mxu0
  %v1207 = vpop.f32.mrf.mxu0
  %v1208 = vadd.f32 %v256, %v1207
  %v1209 = vpop.f32.mrf.mxu0
  %1210 = vmatprep.mubr.bf16.mxu0 0
  %1211 = vmatmul.mubr.bf16.gmra.mxu0 %v692
  %v1212 = vpop.f32.mrf.mxu0
  %v1213 = vadd.f32 %v256, %v1212
  %v1214 = vpop.f32.mrf.mxu0
  %v1215 = vpop.f32.mrf.mxu0
  %v1216 = vadd.f32 %v256, %v1215
  %v1217 = vpop.f32.mrf.mxu0
  %1218 = vmatprep.mubr.bf16.mxu0 0
  %1219 = vmatmul.mubr.bf16.gmra.mxu0 %v693
  %v1220 = vpop.f32.mrf.mxu0
  %v1221 = vadd.f32 %v256, %v1220
  %v1222 = vpop.f32.mrf.mxu0
  %v1223 = vpop.f32.mrf.mxu0
  %v1224 = vadd.f32 %v256, %v1223
  %v1225 = vpop.f32.mrf.mxu0
  %1226 = vmatprep.mubr.bf16.mxu0 0
  %1227 = vmatmul.mubr.bf16.gmra.mxu0 %v694
  %v1228 = vpop.f32.mrf.mxu0
  %v1229 = vadd.f32 %v256, %v1228
  %v1230 = vpop.f32.mrf.mxu0
  %v1231 = vpop.f32.mrf.mxu0
  %v1232 = vadd.f32 %v256, %v1231
  %v1233 = vpop.f32.mrf.mxu0
  %1234 = vmatprep.mubr.bf16.mxu0 0
  %1235 = vmatmul.mubr.bf16.gmra.mxu0 %v695
  %v1236 = vpop.f32.mrf.mxu0
  %v1237 = vadd.f32 %v256, %v1236
  %v1238 = vpop.f32.mrf.mxu0
  %v1239 = vpop.f32.mrf.mxu0
  %v1240 = vadd.f32 %v256, %v1239
  %v1241 = vpop.f32.mrf.mxu0
  %1242 = vmatprep.mubr.bf16.mxu0 0
  %1243 = vmatmul.mubr.bf16.gmra.mxu0 %v696
  %v1244 = vpop.f32.mrf.mxu0
  %v1245 = vadd.f32 %v256, %v1244
  %v1246 = vpop.f32.mrf.mxu0
  %v1247 = vpop.f32.mrf.mxu0
  %v1248 = vadd.f32 %v256, %v1247
  %v1249 = vpop.f32.mrf.mxu0
  %1250 = vmatprep.mubr.bf16.mxu0 0
  %1251 = vmatmul.mubr.bf16.gmra.mxu0 %v697
  %v1252 = vpop.f32.mrf.mxu0
  %v1253 = vadd.f32 %v256, %v1252
  %v1254 = vpop.f32.mrf.mxu0
  %v1255 = vpop.f32.mrf.mxu0
  %v1256 = vadd.f32 %v256, %v1255
  %v1257 = vpop.f32.mrf.mxu0
  %1258 = vmatprep.mubr.bf16.mxu0 0
  %1259 = vmatmul.mubr.bf16.gmra.mxu0 %v698
  %v1260 = vpop.f32.mrf.mxu0
  %v1261 = vadd.f32 %v256, %v1260
  %v1262 = vpop.f32.mrf.mxu0
  %v1263 = vpop.f32.mrf.mxu0
  %v1264 = vadd.f32 %v256, %v1263
  %v1265 = vpop.f32.mrf.mxu0
  %1266 = vmatprep.mubr.bf16.mxu0 0
  %1267 = vmatmul.mubr.bf16.gmra.mxu0 %v699
  %v1268 = vpop.f32.mrf.mxu0
  %v1269 = vadd.f32 %v256, %v1268
  %v1270 = vpop.f32.mrf.mxu0
  %v1271 = vpop.f32.mrf.mxu0
  %v1272 = vadd.f32 %v256, %v1271
  %v1273 = vpop.f32.mrf.mxu0
  %1274 = vmatprep.mubr.bf16.mxu0 0
  %1275 = vmatmul.mubr.bf16.gmra.mxu0 %v700
  %v1276 = vpop.f32.mrf.mxu0
  %v1277 = vadd.f32 %v256, %v1276
  %v1278 = vpop.f32.mrf.mxu0
  %v1279 = vpop.f32.mrf.mxu0
  %v1280 = vadd.f32 %v256, %v1279
  %v1281 = vpop.f32.mrf.mxu0
  %1282 = vmatprep.mubr.bf16.mxu0 0
  %1283 = vmatmul.mubr.bf16.gmra.mxu0 %v701
  %v1284 = vpop.f32.mrf.mxu0
  %v1285 = vadd.f32 %v256, %v1284
  %v1286 = vpop.f32.mrf.mxu0
  %v1287 = vpop.f32.mrf.mxu0
  %v1288 = vadd.f32 %v256, %v1287
  %v1289 = vpop.f32.mrf.mxu0
  %1290 = vmatprep.mubr.bf16.mxu0 0
  %1291 = vmatmul.mubr.bf16.gmra.mxu0 %v702
  %v1292 = vpop.f32.mrf.mxu0
  %v1293 = vadd.f32 %v256, %v1292
  %v1294 = vpop.f32.mrf.mxu0
  %v1295 = vpop.f32.mrf.mxu0
  %v1296 = vadd.f32 %v256, %v1295
  %v1297 = vpop.f32.mrf.mxu0
  %1298 = vmatprep.mubr.bf16.mxu0 0
  %1299 = vmatmul.mubr.bf16.gmra.mxu0 %v703
  %v1300 = vpop.f32.mrf.mxu0
  %v1301 = vadd.f32 %v256, %v1300
  %v1302 = vpop.f32.mrf.mxu0
  %v1303 = vpop.f32.mrf.mxu0
  %v1304 = vadd.f32 %v256, %v1303
  %v1305 = vpop.f32.mrf.mxu0
  %1306 = vmatprep.mubr.bf16.mxu0 0
  %1307 = vmatmul.mubr.bf16.gmra.mxu0 %v704
  %v1308 = vpop.f32.mrf.mxu0
  %v1309 = vadd.f32 %v256, %v1308
  %v1310 = vpop.f32.mrf.mxu0
  %v1311 = vpop.f32.mrf.mxu0
  %v1312 = vadd.f32 %v256, %v1311
  %v1313 = vpop.f32.mrf.mxu0
  %1314 = vmatprep.mubr.bf16.mxu0 0
  %1315 = vmatmul.mubr.bf16.gmra.mxu0 %v705
  %v1316 = vpop.f32.mrf.mxu0
  %v1317 = vadd.f32 %v256, %v1316
  %v1318 = vpop.f32.mrf.mxu0
  %v1319 = vpop.f32.mrf.mxu0
  %v1320 = vadd.f32 %v256, %v1319
  %v1321 = vpop.f32.mrf.mxu0
  %1322 = vmatprep.mubr.bf16.mxu0 0
  %1323 = vmatmul.mubr.bf16.gmra.mxu0 %v706
  %v1324 = vpop.f32.mrf.mxu0
  %v1325 = vadd.f32 %v256, %v1324
  %v1326 = vpop.f32.mrf.mxu0
  %v1327 = vpop.f32.mrf.mxu0
  %v1328 = vadd.f32 %v256, %v1327
  %v1329 = vpop.f32.mrf.mxu0
  %1330 = vmatprep.mubr.bf16.mxu0 0
  %1331 = vmatmul.mubr.bf16.gmra.mxu0 %v707
  %v1332 = vpop.f32.mrf.mxu0
  %v1333 = vadd.f32 %v256, %v1332
  %v1334 = vpop.f32.mrf.mxu0
  %v1335 = vpop.f32.mrf.mxu0
  %v1336 = vadd.f32 %v256, %v1335
  %v1337 = vpop.f32.mrf.mxu0
  %1338 = vmatprep.mubr.bf16.mxu0 0
  %1339 = vmatmul.mubr.bf16.gmra.mxu0 %v708
  %v1340 = vpop.f32.mrf.mxu0
  %v1341 = vadd.f32 %v256, %v1340
  %v1342 = vpop.f32.mrf.mxu0
  %v1343 = vpop.f32.mrf.mxu0
  %v1344 = vadd.f32 %v256, %v1343
  %v1345 = vpop.f32.mrf.mxu0
  %1346 = vmatprep.mubr.bf16.mxu0 0
  %1347 = vmatmul.mubr.bf16.gmra.mxu0 %v709
  %v1348 = vpop.f32.mrf.mxu0
  %v1349 = vadd.f32 %v256, %v1348
  %v1350 = vpop.f32.mrf.mxu0
  %v1351 = vpop.f32.mrf.mxu0
  %v1352 = vadd.f32 %v256, %v1351
  %v1353 = vpop.f32.mrf.mxu0
  %1354 = vmatprep.mubr.bf16.mxu0 0
  %1355 = vmatmul.mubr.bf16.gmra.mxu0 %v710
  %v1356 = vpop.f32.mrf.mxu0
  %v1357 = vadd.f32 %v256, %v1356
  %v1358 = vpop.f32.mrf.mxu0
  %v1359 = vpop.f32.mrf.mxu0
  %v1360 = vadd.f32 %v256, %v1359
  %v1361 = vpop.f32.mrf.mxu0
  %1362 = vmatprep.mubr.bf16.mxu0 0
  %1363 = vmatmul.mubr.bf16.gmra.mxu0 %v711
  %v1364 = vpop.f32.mrf.mxu0
  %v1365 = vadd.f32 %v256, %v1364
  %v1366 = vpop.f32.mrf.mxu0
  %v1367 = vpop.f32.mrf.mxu0
  %v1368 = vadd.f32 %v256, %v1367
  %v1369 = vpop.f32.mrf.mxu0
  %1370 = vmatprep.mubr.bf16.mxu0 0
  %1371 = vmatmul.mubr.bf16.gmra.mxu0 %v712
  %v1372 = vpop.f32.mrf.mxu0
  %v1373 = vadd.f32 %v256, %v1372
  %v1374 = vpop.f32.mrf.mxu0
  %v1375 = vpop.f32.mrf.mxu0
  %v1376 = vadd.f32 %v256, %v1375
  %v1377 = vpop.f32.mrf.mxu0
  %1378 = vmatprep.mubr.bf16.mxu0 0
  %1379 = vmatmul.mubr.bf16.gmra.mxu0 %v713
  %v1380 = vpop.f32.mrf.mxu0
  %v1381 = vadd.f32 %v256, %v1380
  %v1382 = vpop.f32.mrf.mxu0
  %v1383 = vpop.f32.mrf.mxu0
  %v1384 = vadd.f32 %v256, %v1383
  %v1385 = vpop.f32.mrf.mxu0
  %1386 = vmatprep.mubr.bf16.mxu0 0
  %1387 = vmatmul.mubr.bf16.gmra.mxu0 %v714
  %v1388 = vpop.f32.mrf.mxu0
  %v1389 = vadd.f32 %v256, %v1388
  %v1390 = vpop.f32.mrf.mxu0
  %v1391 = vpop.f32.mrf.mxu0
  %v1392 = vadd.f32 %v256, %v1391
  %v1393 = vpop.f32.mrf.mxu0
  %1394 = vmatprep.mubr.bf16.mxu0 0
  %1395 = vmatmul.mubr.bf16.gmra.mxu0 %v715
  %v1396 = vpop.f32.mrf.mxu0
  %v1397 = vadd.f32 %v256, %v1396
  %v1398 = vpop.f32.mrf.mxu0
  %v1399 = vpop.f32.mrf.mxu0
  %v1400 = vadd.f32 %v256, %v1399
  %v1401 = vpop.f32.mrf.mxu0
  %1402 = vmatprep.mubr.bf16.mxu0 0
  %1403 = vmatmul.mubr.bf16.gmra.mxu0 %v716
  %v1404 = vpop.f32.mrf.mxu0
  %v1405 = vadd.f32 %v256, %v1404
  %v1406 = vpop.f32.mrf.mxu0
  %v1407 = vpop.f32.mrf.mxu0
  %v1408 = vadd.f32 %v256, %v1407
  %v1409 = vpop.f32.mrf.mxu0
  %1410 = vmatprep.mubr.bf16.mxu0 0
  %1411 = vmatmul.mubr.bf16.gmra.mxu0 %v717
  %v1412 = vpop.f32.mrf.mxu0
  %v1413 = vadd.f32 %v256, %v1412
  %v1414 = vpop.f32.mrf.mxu0
  %v1415 = vpop.f32.mrf.mxu0
  %v1416 = vadd.f32 %v256, %v1415
  %v1417 = vpop.f32.mrf.mxu0
  %1418 = vmatprep.mubr.bf16.mxu0 0
  %1419 = vmatmul.mubr.bf16.gmra.mxu0 %v718
  %v1420 = vpop.f32.mrf.mxu0
  %v1421 = vadd.f32 %v256, %v1420
  %v1422 = vpop.f32.mrf.mxu0
  %v1423 = vpop.f32.mrf.mxu0
  %v1424 = vadd.f32 %v256, %v1423
  %v1425 = vpop.f32.mrf.mxu0
  %1426 = vmatprep.mubr.bf16.mxu0 0
  %1427 = vmatmul.mubr.bf16.gmra.mxu0 %v719
  %v1428 = vpop.f32.mrf.mxu0
  %v1429 = vadd.f32 %v256, %v1428
  %v1430 = vpop.f32.mrf.mxu0
  %v1431 = vpop.f32.mrf.mxu0
  %v1432 = vadd.f32 %v256, %v1431
  %v1433 = vpop.f32.mrf.mxu0
  %1434 = vmatprep.mubr.bf16.mxu0 0
  %1435 = vmatmul.mubr.bf16.gmra.mxu0 %v720
  %v1436 = vpop.f32.mrf.mxu0
  %v1437 = vadd.f32 %v256, %v1436
  %v1438 = vpop.f32.mrf.mxu0
  %v1439 = vpop.f32.mrf.mxu0
  %v1440 = vadd.f32 %v256, %v1439
  %v1441 = vpop.f32.mrf.mxu0
  %1442 = vmatprep.mubr.bf16.mxu0 0
  %1443 = vmatmul.mubr.bf16.gmra.mxu0 %v721
  %v1444 = vpop.f32.mrf.mxu0
  %v1445 = vadd.f32 %v256, %v1444
  %v1446 = vpop.f32.mrf.mxu0
  %v1447 = vpop.f32.mrf.mxu0
  %v1448 = vadd.f32 %v256, %v1447
  %v1449 = vpop.f32.mrf.mxu0
  %1450 = vmatprep.mubr.bf16.mxu0 0
  %1451 = vmatmul.mubr.bf16.gmra.mxu0 %v722
  %v1452 = vpop.f32.mrf.mxu0
  %v1453 = vadd.f32 %v256, %v1452
  %v1454 = vpop.f32.mrf.mxu0
  %v1455 = vpop.f32.mrf.mxu0
  %v1456 = vadd.f32 %v256, %v1455
  %v1457 = vpop.f32.mrf.mxu0
  %1458 = vmatprep.mubr.bf16.mxu0 0
  %1459 = vmatmul.mubr.bf16.gmra.mxu0 %v723
  %v1460 = vpop.f32.mrf.mxu0
  %v1461 = vadd.f32 %v256, %v1460
  %v1462 = vpop.f32.mrf.mxu0
  %v1463 = vpop.f32.mrf.mxu0
  %v1464 = vadd.f32 %v256, %v1463
  %v1465 = vpop.f32.mrf.mxu0
  %1466 = vmatprep.mubr.bf16.mxu0 0
  %1467 = vmatmul.mubr.bf16.gmra.mxu0 %v724
  %v1468 = vpop.f32.mrf.mxu0
  %v1469 = vadd.f32 %v256, %v1468
  %v1470 = vpop.f32.mrf.mxu0
  %v1471 = vpop.f32.mrf.mxu0
  %v1472 = vadd.f32 %v256, %v1471
  %v1473 = vpop.f32.mrf.mxu0
  %1474 = vmatprep.mubr.bf16.mxu0 0
  %1475 = vmatmul.mubr.bf16.gmra.mxu0 %v725
  %v1476 = vpop.f32.mrf.mxu0
  %v1477 = vadd.f32 %v256, %v1476
  %v1478 = vpop.f32.mrf.mxu0
  %v1479 = vpop.f32.mrf.mxu0
  %v1480 = vadd.f32 %v256, %v1479
  %v1481 = vpop.f32.mrf.mxu0
  %1482 = vmatprep.mubr.bf16.mxu0 0
  %1483 = vmatmul.mubr.bf16.gmra.mxu0 %v726
  %v1484 = vpop.f32.mrf.mxu0
  %v1485 = vadd.f32 %v256, %v1484
  %v1486 = vpop.f32.mrf.mxu0
  %v1487 = vpop.f32.mrf.mxu0
  %v1488 = vadd.f32 %v256, %v1487
  %v1489 = vpop.f32.mrf.mxu0
  %1490 = vmatprep.mubr.bf16.mxu0 0
  %1491 = vmatmul.mubr.bf16.gmra.mxu0 %v727
  %v1492 = vpop.f32.mrf.mxu0
  %v1493 = vadd.f32 %v256, %v1492
  %v1494 = vpop.f32.mrf.mxu0
  %v1495 = vpop.f32.mrf.mxu0
  %v1496 = vadd.f32 %v256, %v1495
  %v1497 = vpop.f32.mrf.mxu0
  %1498 = vmatprep.mubr.bf16.mxu0 0
  %1499 = vmatmul.mubr.bf16.gmra.mxu0 %v728
  %v1500 = vpop.f32.mrf.mxu0
  %v1501 = vadd.f32 %v256, %v1500
  %v1502 = vpop.f32.mrf.mxu0
  %v1503 = vpop.f32.mrf.mxu0
  %v1504 = vadd.f32 %v256, %v1503
  %v1505 = vpop.f32.mrf.mxu0
  %1506 = vmatprep.mubr.bf16.mxu0 0
  %1507 = vmatmul.mubr.bf16.gmra.mxu0 %v729
  %v1508 = vpop.f32.mrf.mxu0
  %v1509 = vadd.f32 %v256, %v1508
  %v1510 = vpop.f32.mrf.mxu0
  %v1511 = vpop.f32.mrf.mxu0
  %v1512 = vadd.f32 %v256, %v1511
  %v1513 = vpop.f32.mrf.mxu0
  %1514 = vmatprep.mubr.bf16.mxu0 0
  %1515 = vmatmul.mubr.bf16.gmra.mxu0 %v730
  %v1516 = vpop.f32.mrf.mxu0
  %v1517 = vadd.f32 %v256, %v1516
  %v1518 = vpop.f32.mrf.mxu0
  %v1519 = vpop.f32.mrf.mxu0
  %v1520 = vadd.f32 %v256, %v1519
  %v1521 = vpop.f32.mrf.mxu0
  %1522 = vmatprep.mubr.bf16.mxu0 0
  %1523 = vmatmul.mubr.bf16.gmra.mxu0 %v731
  %v1524 = vpop.f32.mrf.mxu0
  %v1525 = vadd.f32 %v256, %v1524
  %v1526 = vpop.f32.mrf.mxu0
  %v1527 = vpop.f32.mrf.mxu0
  %v1528 = vadd.f32 %v256, %v1527
  %v1529 = vpop.f32.mrf.mxu0
  %1530 = vmatprep.mubr.bf16.mxu0 0
  %1531 = vmatmul.mubr.bf16.gmra.mxu0 %v732
  %v1532 = vpop.f32.mrf.mxu0
  %v1533 = vadd.f32 %v256, %v1532
  %v1534 = vpop.f32.mrf.mxu0
  %v1535 = vpop.f32.mrf.mxu0
  %v1536 = vadd.f32 %v256, %v1535
  %v1537 = vpop.f32.mrf.mxu0
  %1538 = vmatprep.mubr.bf16.mxu0 0
  %1539 = vmatmul.mubr.bf16.gmra.mxu0 %v733
  %v1540 = vpop.f32.mrf.mxu0
  %v1541 = vadd.f32 %v256, %v1540
  %v1542 = vpop.f32.mrf.mxu0
  %v1543 = vpop.f32.mrf.mxu0
  %v1544 = vadd.f32 %v256, %v1543
  %v1545 = vpop.f32.mrf.mxu0
  %1546 = vmatprep.mubr.bf16.mxu0 0
  %1547 = vmatmul.mubr.bf16.gmra.mxu0 %v734
  %v1548 = vpop.f32.mrf.mxu0
  %v1549 = vadd.f32 %v256, %v1548
  %v1550 = vpop.f32.mrf.mxu0
  %v1551 = vpop.f32.mrf.mxu0
  %v1552 = vadd.f32 %v256, %v1551
  %v1553 = vpop.f32.mrf.mxu0
  %1554 = vmatprep.mubr.bf16.mxu0 0
  %1555 = vmatmul.mubr.bf16.gmra.mxu0 %v735
  %v1556 = vpop.f32.mrf.mxu0
  %v1557 = vadd.f32 %v256, %v1556
  %v1558 = vpop.f32.mrf.mxu0
  %v1559 = vpop.f32.mrf.mxu0
  %v1560 = vadd.f32 %v256, %v1559
  %v1561 = vpop.f32.mrf.mxu0
  %1562 = vmatprep.mubr.bf16.mxu0 0
  %1563 = vmatmul.mubr.bf16.gmra.mxu0 %v736
  %v1564 = vpop.f32.mrf.mxu0
  %v1565 = vadd.f32 %v256, %v1564
  %v1566 = vpop.f32.mrf.mxu0
  %v1567 = vpop.f32.mrf.mxu0
  %v1568 = vadd.f32 %v256, %v1567
  %v1569 = vpop.f32.mrf.mxu0
  %1570 = vmatprep.mubr.bf16.mxu0 0
  %1571 = vmatmul.mubr.bf16.gmra.mxu0 %v737
  %v1572 = vpop.f32.mrf.mxu0
  %v1573 = vadd.f32 %v256, %v1572
  %v1574 = vpop.f32.mrf.mxu0
  %v1575 = vpop.f32.mrf.mxu0
  %v1576 = vadd.f32 %v256, %v1575
  %v1577 = vpop.f32.mrf.mxu0
  %1578 = vmatprep.mubr.bf16.mxu0 0
  %1579 = vmatmul.mubr.bf16.gmra.mxu0 %v738
  %v1580 = vpop.f32.mrf.mxu0
  %v1581 = vadd.f32 %v256, %v1580
  %v1582 = vpop.f32.mrf.mxu0
  %v1583 = vpop.f32.mrf.mxu0
  %v1584 = vadd.f32 %v256, %v1583
  %v1585 = vpop.f32.mrf.mxu0
  %1586 = vmatprep.mubr.bf16.mxu0 0
  %1587 = vmatmul.mubr.bf16.gmra.mxu0 %v739
  %v1588 = vpop.f32.mrf.mxu0
  %v1589 = vadd.f32 %v256, %v1588
  %v1590 = vpop.f32.mrf.mxu0
  %v1591 = vpop.f32.mrf.mxu0
  %v1592 = vadd.f32 %v256, %v1591
  %v1593 = vpop.f32.mrf.mxu0
  %1594 = vmatprep.mubr.bf16.mxu0 0
  %1595 = vmatmul.mubr.bf16.gmra.mxu0 %v740
  %v1596 = vpop.f32.mrf.mxu0
  %v1597 = vadd.f32 %v256, %v1596
  %v1598 = vpop.f32.mrf.mxu0
  %v1599 = vpop.f32.mrf.mxu0
  %v1600 = vadd.f32 %v256, %v1599
  %v1601 = vpop.f32.mrf.mxu0
  %1602 = vmatprep.mubr.bf16.mxu0 0
  %1603 = vmatmul.mubr.bf16.gmra.mxu0 %v741
  %v1604 = vpop.f32.mrf.mxu0
  %v1605 = vadd.f32 %v256, %v1604
  %v1606 = vpop.f32.mrf.mxu0
  %v1607 = vpop.f32.mrf.mxu0
  %v1608 = vadd.f32 %v256, %v1607
  %v1609 = vpop.f32.mrf.mxu0
  %1610 = vmatprep.mubr.bf16.mxu0 0
  %1611 = vmatmul.mubr.bf16.gmra.mxu0 %v742
  %v1612 = vpop.f32.mrf.mxu0
  %v1613 = vadd.f32 %v256, %v1612
  %v1614 = vpop.f32.mrf.mxu0
  %v1615 = vpop.f32.mrf.mxu0
  %v1616 = vadd.f32 %v256, %v1615
  %v1617 = vpop.f32.mrf.mxu0
  %1618 = vmatprep.mubr.bf16.mxu0 0
  %1619 = vmatmul.mubr.bf16.gmra.mxu0 %v743
  %v1620 = vpop.f32.mrf.mxu0
  %v1621 = vadd.f32 %v256, %v1620
  %v1622 = vpop.f32.mrf.mxu0
  %v1623 = vpop.f32.mrf.mxu0
  %v1624 = vadd.f32 %v256, %v1623
  %v1625 = vpop.f32.mrf.mxu0
  %1626 = vmatprep.mubr.bf16.mxu0 0
  %1627 = vmatmul.mubr.bf16.gmra.mxu0 %v744
  %v1628 = vpop.f32.mrf.mxu0
  %v1629 = vadd.f32 %v256, %v1628
  %v1630 = vpop.f32.mrf.mxu0
  %v1631 = vpop.f32.mrf.mxu0
  %v1632 = vadd.f32 %v256, %v1631
  %v1633 = vpop.f32.mrf.mxu0
  %1634 = vmatprep.mubr.bf16.mxu0 0
  %1635 = vmatmul.mubr.bf16.gmra.mxu0 %v745
  %v1636 = vpop.f32.mrf.mxu0
  %v1637 = vadd.f32 %v256, %v1636
  %v1638 = vpop.f32.mrf.mxu0
  %v1639 = vpop.f32.mrf.mxu0
  %v1640 = vadd.f32 %v256, %v1639
  %v1641 = vpop.f32.mrf.mxu0
  %1642 = vmatprep.mubr.bf16.mxu0 0
  %1643 = vmatmul.mubr.bf16.gmra.mxu0 %v746
  %v1644 = vpop.f32.mrf.mxu0
  %v1645 = vadd.f32 %v256, %v1644
  %v1646 = vpop.f32.mrf.mxu0
  %v1647 = vpop.f32.mrf.mxu0
  %v1648 = vadd.f32 %v256, %v1647
  %v1649 = vpop.f32.mrf.mxu0
  %1650 = vmatprep.mubr.bf16.mxu0 0
  %1651 = vmatmul.mubr.bf16.gmra.mxu0 %v747
  %v1652 = vpop.f32.mrf.mxu0
  %v1653 = vadd.f32 %v256, %v1652
  %v1654 = vpop.f32.mrf.mxu0
  %v1655 = vpop.f32.mrf.mxu0
  %v1656 = vadd.f32 %v256, %v1655
  %v1657 = vpop.f32.mrf.mxu0
  %1658 = vmatprep.mubr.bf16.mxu0 0
  %1659 = vmatmul.mubr.bf16.gmra.mxu0 %v748
  %v1660 = vpop.f32.mrf.mxu0
  %v1661 = vadd.f32 %v256, %v1660
  %v1662 = vpop.f32.mrf.mxu0
  %v1663 = vpop.f32.mrf.mxu0
  %v1664 = vadd.f32 %v256, %v1663
  %v1665 = vpop.f32.mrf.mxu0
  %1666 = vmatprep.mubr.bf16.mxu0 0
  %1667 = vmatmul.mubr.bf16.gmra.mxu0 %v749
  %v1668 = vpop.f32.mrf.mxu0
  %v1669 = vadd.f32 %v256, %v1668
  %v1670 = vpop.f32.mrf.mxu0
  %v1671 = vpop.f32.mrf.mxu0
  %v1672 = vadd.f32 %v256, %v1671
  %v1673 = vpop.f32.mrf.mxu0
  %1674 = vmatprep.mubr.bf16.mxu0 0
  %1675 = vmatmul.mubr.bf16.gmra.mxu0 %v750
  %v1676 = vpop.f32.mrf.mxu0
  %v1677 = vadd.f32 %v256, %v1676
  %v1678 = vpop.f32.mrf.mxu0
  %v1679 = vpop.f32.mrf.mxu0
  %v1680 = vadd.f32 %v256, %v1679
  %v1681 = vpop.f32.mrf.mxu0
  %1682 = vmatprep.mubr.bf16.mxu0 0
  %1683 = vmatmul.mubr.bf16.gmra.mxu0 %v751
  %v1684 = vpop.f32.mrf.mxu0
  %v1685 = vadd.f32 %v256, %v1684
  %v1686 = vpop.f32.mrf.mxu0
  %v1687 = vpop.f32.mrf.mxu0
  %v1688 = vadd.f32 %v256, %v1687
  %v1689 = vpop.f32.mrf.mxu0
  %1690 = vmatprep.mubr.bf16.mxu0 0
  %1691 = vmatmul.mubr.bf16.gmra.mxu0 %v752
  %v1692 = vpop.f32.mrf.mxu0
  %v1693 = vadd.f32 %v256, %v1692
  %v1694 = vpop.f32.mrf.mxu0
  %v1695 = vpop.f32.mrf.mxu0
  %v1696 = vadd.f32 %v256, %v1695
  %v1697 = vpop.f32.mrf.mxu0
  %1698 = vmatprep.mubr.bf16.mxu0 0
  %1699 = vmatmul.mubr.bf16.gmra.mxu0 %v753
  %v1700 = vpop.f32.mrf.mxu0
  %v1701 = vadd.f32 %v256, %v1700
  %v1702 = vpop.f32.mrf.mxu0
  %v1703 = vpop.f32.mrf.mxu0
  %v1704 = vadd.f32 %v256, %v1703
  %v1705 = vpop.f32.mrf.mxu0
  %1706 = vmatprep.mubr.bf16.mxu0 0
  %1707 = vmatmul.mubr.bf16.gmra.mxu0 %v754
  %v1708 = vpop.f32.mrf.mxu0
  %v1709 = vadd.f32 %v256, %v1708
  %v1710 = vpop.f32.mrf.mxu0
  %v1711 = vpop.f32.mrf.mxu0
  %v1712 = vadd.f32 %v256, %v1711
  %v1713 = vpop.f32.mrf.mxu0
  %1714 = vmatprep.mubr.bf16.mxu0 0
  %1715 = vmatmul.mubr.bf16.gmra.mxu0 %v755
  %v1716 = vpop.f32.mrf.mxu0
  %v1717 = vadd.f32 %v256, %v1716
  %v1718 = vpop.f32.mrf.mxu0
  %v1719 = vpop.f32.mrf.mxu0
  %v1720 = vadd.f32 %v256, %v1719
  %v1721 = vpop.f32.mrf.mxu0
  %1722 = vmatprep.mubr.bf16.mxu0 0
  %1723 = vmatmul.mubr.bf16.gmra.mxu0 %v756
  %v1724 = vpop.f32.mrf.mxu0
  %v1725 = vadd.f32 %v256, %v1724
  %v1726 = vpop.f32.mrf.mxu0
  %v1727 = vpop.f32.mrf.mxu0
  %v1728 = vadd.f32 %v256, %v1727
  %v1729 = vpop.f32.mrf.mxu0
  %1730 = vmatprep.mubr.bf16.mxu0 0
  %1731 = vmatmul.mubr.bf16.gmra.mxu0 %v757
  %v1732 = vpop.f32.mrf.mxu0
  %v1733 = vadd.f32 %v256, %v1732
  %v1734 = vpop.f32.mrf.mxu0
  %v1735 = vpop.f32.mrf.mxu0
  %v1736 = vadd.f32 %v256, %v1735
  %v1737 = vpop.f32.mrf.mxu0
  %1738 = vdwg.mxu0
  %v1739 = vsub.f32 0.0, %v941
  %v1740 = vsub.f32 0.0, %v944
  %v1741 = vsub.f32 0.0, %v949
  %v1742 = vsub.f32 0.0, %v952
  %v1743 = vsub.f32 0.0, %v957
  %v1744 = vsub.f32 0.0, %v960
  %v1745 = vsub.f32 0.0, %v965
  %v1746 = vsub.f32 0.0, %v968
  %v1747 = vsub.f32 0.0, %v973
  %v1748 = vsub.f32 0.0, %v976
  %v1749 = vsub.f32 0.0, %v981
  %v1750 = vsub.f32 0.0, %v984
  %v1751 = vsub.f32 0.0, %v989
  %v1752 = vsub.f32 0.0, %v992
  %v1753 = vsub.f32 0.0, %v997
  %v1754 = vsub.f32 0.0, %v1000
  %v1755 = vsub.f32 0.0, %v1005
  %v1756 = vsub.f32 0.0, %v1008
  %v1757 = vsub.f32 0.0, %v1013
  %v1758 = vsub.f32 0.0, %v1016
  %v1759 = vsub.f32 0.0, %v1021
  %v1760 = vsub.f32 0.0, %v1024
  %v1761 = vsub.f32 0.0, %v1029
  %v1762 = vsub.f32 0.0, %v1032
  %v1763 = vsub.f32 0.0, %v1037
  %v1764 = vsub.f32 0.0, %v1040
  %v1765 = vsub.f32 0.0, %v1045
  %v1766 = vsub.f32 0.0, %v1048
  %v1767 = vsub.f32 0.0, %v1053
  %v1768 = vsub.f32 0.0, %v1056
  %v1769 = vsub.f32 0.0, %v1061
  %v1770 = vsub.f32 0.0, %v1064
  %v1771 = vsub.f32 0.0, %v1069
  %v1772 = vsub.f32 0.0, %v1072
  %v1773 = vsub.f32 0.0, %v1077
  %v1774 = vsub.f32 0.0, %v1080
  %v1775 = vsub.f32 0.0, %v1085
  %v1776 = vsub.f32 0.0, %v1088
  %v1777 = vsub.f32 0.0, %v1093
  %v1778 = vsub.f32 0.0, %v1096
  %v1779 = vsub.f32 0.0, %v1101
  %v1780 = vsub.f32 0.0, %v1104
  %v1781 = vsub.f32 0.0, %v1109
  %v1782 = vsub.f32 0.0, %v1112
  %v1783 = vsub.f32 0.0, %v1117
  %v1784 = vsub.f32 0.0, %v1120
  %v1785 = vsub.f32 0.0, %v1125
  %v1786 = vsub.f32 0.0, %v1128
  %v1787 = vsub.f32 0.0, %v1133
  %v1788 = vsub.f32 0.0, %v1136
  %v1789 = vsub.f32 0.0, %v1141
  %v1790 = vsub.f32 0.0, %v1144
  %v1791 = vsub.f32 0.0, %v1149
  %v1792 = vsub.f32 0.0, %v1152
  %v1793 = vsub.f32 0.0, %v1157
  %v1794 = vsub.f32 0.0, %v1160
  %v1795 = vsub.f32 0.0, %v1165
  %v1796 = vsub.f32 0.0, %v1168
  %v1797 = vsub.f32 0.0, %v1173
  %v1798 = vsub.f32 0.0, %v1176
  %v1799 = vsub.f32 0.0, %v1181
  %v1800 = vsub.f32 0.0, %v1184
  %v1801 = vsub.f32 0.0, %v1189
  %v1802 = vsub.f32 0.0, %v1192
  %v1803 = vsub.f32 0.0, %v1197
  %v1804 = vsub.f32 0.0, %v1200
  %v1805 = vsub.f32 0.0, %v1205
  %v1806 = vsub.f32 0.0, %v1208
  %v1807 = vsub.f32 0.0, %v1213
  %v1808 = vsub.f32 0.0, %v1216
  %v1809 = vsub.f32 0.0, %v1221
  %v1810 = vsub.f32 0.0, %v1224
  %v1811 = vsub.f32 0.0, %v1229
  %v1812 = vsub.f32 0.0, %v1232
  %v1813 = vsub.f32 0.0, %v1237
  %v1814 = vsub.f32 0.0, %v1240
  %v1815 = vsub.f32 0.0, %v1245
  %v1816 = vsub.f32 0.0, %v1248
  %v1817 = vsub.f32 0.0, %v1253
  %v1818 = vsub.f32 0.0, %v1256
  %v1819 = vsub.f32 0.0, %v1261
  %v1820 = vsub.f32 0.0, %v1264
  %v1821 = vsub.f32 0.0, %v1269
  %v1822 = vsub.f32 0.0, %v1272
  %v1823 = vsub.f32 0.0, %v1277
  %v1824 = vsub.f32 0.0, %v1280
  %v1825 = vsub.f32 0.0, %v1285
  %v1826 = vsub.f32 0.0, %v1288
  %v1827 = vsub.f32 0.0, %v1293
  %v1828 = vsub.f32 0.0, %v1296
  %v1829 = vsub.f32 0.0, %v1301
  %v1830 = vsub.f32 0.0, %v1304
  %v1831 = vsub.f32 0.0, %v1309
  %v1832 = vsub.f32 0.0, %v1312
  %v1833 = vsub.f32 0.0, %v1317
  %v1834 = vsub.f32 0.0, %v1320
  %v1835 = vsub.f32 0.0, %v1325
  %v1836 = vsub.f32 0.0, %v1328
  %v1837 = vsub.f32 0.0, %v1333
  %v1838 = vsub.f32 0.0, %v1336
  %v1839 = vsub.f32 0.0, %v1341
  %v1840 = vsub.f32 0.0, %v1344
  %v1841 = vsub.f32 0.0, %v1349
  %v1842 = vsub.f32 0.0, %v1352
  %v1843 = vsub.f32 0.0, %v1357
  %v1844 = vsub.f32 0.0, %v1360
  %v1845 = vsub.f32 0.0, %v1365
  %v1846 = vsub.f32 0.0, %v1368
  %v1847 = vsub.f32 0.0, %v1373
  %v1848 = vsub.f32 0.0, %v1376
  %v1849 = vsub.f32 0.0, %v1381
  %v1850 = vsub.f32 0.0, %v1384
  %v1851 = vsub.f32 0.0, %v1389
  %v1852 = vsub.f32 0.0, %v1392
  %v1853 = vsub.f32 0.0, %v1397
  %v1854 = vsub.f32 0.0, %v1400
  %v1855 = vsub.f32 0.0, %v1405
  %v1856 = vsub.f32 0.0, %v1408
  %v1857 = vsub.f32 0.0, %v1413
  %v1858 = vsub.f32 0.0, %v1416
  %v1859 = vsub.f32 0.0, %v1421
  %v1860 = vsub.f32 0.0, %v1424
  %v1861 = vsub.f32 0.0, %v1429
  %v1862 = vsub.f32 0.0, %v1432
  %v1863 = vsub.f32 0.0, %v1437
  %v1864 = vsub.f32 0.0, %v1440
  %v1865 = vsub.f32 0.0, %v1445
  %v1866 = vsub.f32 0.0, %v1448
  %v1867 = vsub.f32 0.0, %v1453
  %v1868 = vsub.f32 0.0, %v1456
  %v1869 = vsub.f32 0.0, %v1461
  %v1870 = vsub.f32 0.0, %v1464
  %v1871 = vsub.f32 0.0, %v1469
  %v1872 = vsub.f32 0.0, %v1472
  %v1873 = vsub.f32 0.0, %v1477
  %v1874 = vsub.f32 0.0, %v1480
  %v1875 = vsub.f32 0.0, %v1485
  %v1876 = vsub.f32 0.0, %v1488
  %v1877 = vsub.f32 0.0, %v1493
  %v1878 = vsub.f32 0.0, %v1496
  %v1879 = vsub.f32 0.0, %v1501
  %v1880 = vsub.f32 0.0, %v1504
  %v1881 = vsub.f32 0.0, %v1509
  %v1882 = vsub.f32 0.0, %v1512
  %v1883 = vsub.f32 0.0, %v1517
  %v1884 = vsub.f32 0.0, %v1520
  %v1885 = vsub.f32 0.0, %v1525
  %v1886 = vsub.f32 0.0, %v1528
  %v1887 = vsub.f32 0.0, %v1533
  %v1888 = vsub.f32 0.0, %v1536
  %v1889 = vsub.f32 0.0, %v1541
  %v1890 = vsub.f32 0.0, %v1544
  %v1891 = vsub.f32 0.0, %v1549
  %v1892 = vsub.f32 0.0, %v1552
  %v1893 = vsub.f32 0.0, %v1557
  %v1894 = vsub.f32 0.0, %v1560
  %v1895 = vsub.f32 0.0, %v1565
  %v1896 = vsub.f32 0.0, %v1568
  %v1897 = vsub.f32 0.0, %v1573
  %v1898 = vsub.f32 0.0, %v1576
  %v1899 = vsub.f32 0.0, %v1581
  %v1900 = vsub.f32 0.0, %v1584
  %v1901 = vsub.f32 0.0, %v1589
  %v1902 = vsub.f32 0.0, %v1592
  %v1903 = vsub.f32 0.0, %v1597
  %v1904 = vsub.f32 0.0, %v1600
  %v1905 = vsub.f32 0.0, %v1605
  %v1906 = vsub.f32 0.0, %v1608
  %v1907 = vsub.f32 0.0, %v1613
  %v1908 = vsub.f32 0.0, %v1616
  %v1909 = vsub.f32 0.0, %v1621
  %v1910 = vsub.f32 0.0, %v1624
  %v1911 = vsub.f32 0.0, %v1629
  %v1912 = vsub.f32 0.0, %v1632
  %v1913 = vsub.f32 0.0, %v1637
  %v1914 = vsub.f32 0.0, %v1640
  %v1915 = vsub.f32 0.0, %v1645
  %v1916 = vsub.f32 0.0, %v1648
  %v1917 = vsub.f32 0.0, %v1653
  %v1918 = vsub.f32 0.0, %v1656
  %v1919 = vsub.f32 0.0, %v1661
  %v1920 = vsub.f32 0.0, %v1664
  %v1921 = vsub.f32 0.0, %v1669
  %v1922 = vsub.f32 0.0, %v1672
  %v1923 = vsub.f32 0.0, %v1677
  %v1924 = vsub.f32 0.0, %v1680
  %v1925 = vsub.f32 0.0, %v1685
  %v1926 = vsub.f32 0.0, %v1688
  %v1927 = vsub.f32 0.0, %v1693
  %v1928 = vsub.f32 0.0, %v1696
  %v1929 = vsub.f32 0.0, %v1701
  %v1930 = vsub.f32 0.0, %v1704
  %v1931 = vsub.f32 0.0, %v1709
  %v1932 = vsub.f32 0.0, %v1712
  %v1933 = vsub.f32 0.0, %v1717
  %v1934 = vsub.f32 0.0, %v1720
  %v1935 = vsub.f32 0.0, %v1725
  %v1936 = vsub.f32 0.0, %v1728
  %v1937 = vsub.f32 0.0, %v1733
  %v1938 = vsub.f32 0.0, %v1736
  %v1939 = vmul.f32 %v1739, 1.442695
  %v1940 = vpow.pop %v1939
  %v1941 = vmul.f32 %v1740, 1.442695
  %v1942 = vpow.pop %v1941
  %v1943 = vmul.f32 %v1741, 1.442695
  %v1944 = vpow.pop %v1943
  %v1945 = vmul.f32 %v1742, 1.442695
  %v1946 = vpow.pop %v1945
  %v1947 = vmul.f32 %v1743, 1.442695
  %v1948 = vpow.pop %v1947
  %v1949 = vmul.f32 %v1744, 1.442695
  %v1950 = vpow.pop %v1949
  %v1951 = vmul.f32 %v1745, 1.442695
  %v1952 = vpow.pop %v1951
  %v1953 = vmul.f32 %v1746, 1.442695
  %v1954 = vpow.pop %v1953
  %v1955 = vmul.f32 %v1747, 1.442695
  %v1956 = vpow.pop %v1955
  %v1957 = vmul.f32 %v1748, 1.442695
  %v1958 = vpow.pop %v1957
  %v1959 = vmul.f32 %v1749, 1.442695
  %v1960 = vpow.pop %v1959
  %v1961 = vmul.f32 %v1750, 1.442695
  %v1962 = vpow.pop %v1961
  %v1963 = vmul.f32 %v1751, 1.442695
  %v1964 = vpow.pop %v1963
  %v1965 = vmul.f32 %v1752, 1.442695
  %v1966 = vpow.pop %v1965
  %v1967 = vmul.f32 %v1753, 1.442695
  %v1968 = vpow.pop %v1967
  %v1969 = vmul.f32 %v1754, 1.442695
  %v1970 = vpow.pop %v1969
  %v1971 = vmul.f32 %v1755, 1.442695
  %v1972 = vpow.pop %v1971
  %v1973 = vmul.f32 %v1756, 1.442695
  %v1974 = vpow.pop %v1973
  %v1975 = vmul.f32 %v1757, 1.442695
  %v1976 = vpow.pop %v1975
  %v1977 = vmul.f32 %v1758, 1.442695
  %v1978 = vpow.pop %v1977
  %v1979 = vmul.f32 %v1759, 1.442695
  %v1980 = vpow.pop %v1979
  %v1981 = vmul.f32 %v1760, 1.442695
  %v1982 = vpow.pop %v1981
  %v1983 = vmul.f32 %v1761, 1.442695
  %v1984 = vpow.pop %v1983
  %v1985 = vmul.f32 %v1762, 1.442695
  %v1986 = vpow.pop %v1985
  %v1987 = vmul.f32 %v1763, 1.442695
  %v1988 = vpow.pop %v1987
  %v1989 = vmul.f32 %v1764, 1.442695
  %v1990 = vpow.pop %v1989
  %v1991 = vmul.f32 %v1765, 1.442695
  %v1992 = vpow.pop %v1991
  %v1993 = vmul.f32 %v1766, 1.442695
  %v1994 = vpow.pop %v1993
  %v1995 = vmul.f32 %v1767, 1.442695
  %v1996 = vpow.pop %v1995
  %v1997 = vmul.f32 %v1768, 1.442695
  %v1998 = vpow.pop %v1997
  %v1999 = vmul.f32 %v1769, 1.442695
  %v2000 = vpow.pop %v1999
  %v2001 = vmul.f32 %v1770, 1.442695
  %v2002 = vpow.pop %v2001
  %v2003 = vmul.f32 %v1771, 1.442695
  %v2004 = vpow.pop %v2003
  %v2005 = vmul.f32 %v1772, 1.442695
  %v2006 = vpow.pop %v2005
  %v2007 = vmul.f32 %v1773, 1.442695
  %v2008 = vpow.pop %v2007
  %v2009 = vmul.f32 %v1774, 1.442695
  %v2010 = vpow.pop %v2009
  %v2011 = vmul.f32 %v1775, 1.442695
  %v2012 = vpow.pop %v2011
  %v2013 = vmul.f32 %v1776, 1.442695
  %v2014 = vpow.pop %v2013
  %v2015 = vmul.f32 %v1777, 1.442695
  %v2016 = vpow.pop %v2015
  %v2017 = vmul.f32 %v1778, 1.442695
  %v2018 = vpow.pop %v2017
  %v2019 = vmul.f32 %v1779, 1.442695
  %v2020 = vpow.pop %v2019
  %v2021 = vmul.f32 %v1780, 1.442695
  %v2022 = vpow.pop %v2021
  %v2023 = vmul.f32 %v1781, 1.442695
  %v2024 = vpow.pop %v2023
  %v2025 = vmul.f32 %v1782, 1.442695
  %v2026 = vpow.pop %v2025
  %v2027 = vmul.f32 %v1783, 1.442695
  %v2028 = vpow.pop %v2027
  %v2029 = vmul.f32 %v1784, 1.442695
  %v2030 = vpow.pop %v2029
  %v2031 = vmul.f32 %v1785, 1.442695
  %v2032 = vpow.pop %v2031
  %v2033 = vmul.f32 %v1786, 1.442695
  %v2034 = vpow.pop %v2033
  %v2035 = vmul.f32 %v1787, 1.442695
  %v2036 = vpow.pop %v2035
  %v2037 = vmul.f32 %v1788, 1.442695
  %v2038 = vpow.pop %v2037
  %v2039 = vmul.f32 %v1789, 1.442695
  %v2040 = vpow.pop %v2039
  %v2041 = vmul.f32 %v1790, 1.442695
  %v2042 = vpow.pop %v2041
  %v2043 = vmul.f32 %v1791, 1.442695
  %v2044 = vpow.pop %v2043
  %v2045 = vmul.f32 %v1792, 1.442695
  %v2046 = vpow.pop %v2045
  %v2047 = vmul.f32 %v1793, 1.442695
  %v2048 = vpow.pop %v2047
  %v2049 = vmul.f32 %v1794, 1.442695
  %v2050 = vpow.pop %v2049
  %v2051 = vmul.f32 %v1795, 1.442695
  %v2052 = vpow.pop %v2051
  %v2053 = vmul.f32 %v1796, 1.442695
  %v2054 = vpow.pop %v2053
  %v2055 = vmul.f32 %v1797, 1.442695
  %v2056 = vpow.pop %v2055
  %v2057 = vmul.f32 %v1798, 1.442695
  %v2058 = vpow.pop %v2057
  %v2059 = vmul.f32 %v1799, 1.442695
  %v2060 = vpow.pop %v2059
  %v2061 = vmul.f32 %v1800, 1.442695
  %v2062 = vpow.pop %v2061
  %v2063 = vmul.f32 %v1801, 1.442695
  %v2064 = vpow.pop %v2063
  %v2065 = vmul.f32 %v1802, 1.442695
  %v2066 = vpow.pop %v2065
  %v2067 = vmul.f32 %v1803, 1.442695
  %v2068 = vpow.pop %v2067
  %v2069 = vmul.f32 %v1804, 1.442695
  %v2070 = vpow.pop %v2069
  %v2071 = vmul.f32 %v1805, 1.442695
  %v2072 = vpow.pop %v2071
  %v2073 = vmul.f32 %v1806, 1.442695
  %v2074 = vpow.pop %v2073
  %v2075 = vmul.f32 %v1807, 1.442695
  %v2076 = vpow.pop %v2075
  %v2077 = vmul.f32 %v1808, 1.442695
  %v2078 = vpow.pop %v2077
  %v2079 = vmul.f32 %v1809, 1.442695
  %v2080 = vpow.pop %v2079
  %v2081 = vmul.f32 %v1810, 1.442695
  %v2082 = vpow.pop %v2081
  %v2083 = vmul.f32 %v1811, 1.442695
  %v2084 = vpow.pop %v2083
  %v2085 = vmul.f32 %v1812, 1.442695
  %v2086 = vpow.pop %v2085
  %v2087 = vmul.f32 %v1813, 1.442695
  %v2088 = vpow.pop %v2087
  %v2089 = vmul.f32 %v1814, 1.442695
  %v2090 = vpow.pop %v2089
  %v2091 = vmul.f32 %v1815, 1.442695
  %v2092 = vpow.pop %v2091
  %v2093 = vmul.f32 %v1816, 1.442695
  %v2094 = vpow.pop %v2093
  %v2095 = vmul.f32 %v1817, 1.442695
  %v2096 = vpow.pop %v2095
  %v2097 = vmul.f32 %v1818, 1.442695
  %v2098 = vpow.pop %v2097
  %v2099 = vmul.f32 %v1819, 1.442695
  %v2100 = vpow.pop %v2099
  %v2101 = vmul.f32 %v1820, 1.442695
  %v2102 = vpow.pop %v2101
  %v2103 = vmul.f32 %v1821, 1.442695
  %v2104 = vpow.pop %v2103
  %v2105 = vmul.f32 %v1822, 1.442695
  %v2106 = vpow.pop %v2105
  %v2107 = vmul.f32 %v1823, 1.442695
  %v2108 = vpow.pop %v2107
  %v2109 = vmul.f32 %v1824, 1.442695
  %v2110 = vpow.pop %v2109
  %v2111 = vmul.f32 %v1825, 1.442695
  %v2112 = vpow.pop %v2111
  %v2113 = vmul.f32 %v1826, 1.442695
  %v2114 = vpow.pop %v2113
  %v2115 = vmul.f32 %v1827, 1.442695
  %v2116 = vpow.pop %v2115
  %v2117 = vmul.f32 %v1828, 1.442695
  %v2118 = vpow.pop %v2117
  %v2119 = vmul.f32 %v1829, 1.442695
  %v2120 = vpow.pop %v2119
  %v2121 = vmul.f32 %v1830, 1.442695
  %v2122 = vpow.pop %v2121
  %v2123 = vmul.f32 %v1831, 1.442695
  %v2124 = vpow.pop %v2123
  %v2125 = vmul.f32 %v1832, 1.442695
  %v2126 = vpow.pop %v2125
  %v2127 = vmul.f32 %v1833, 1.442695
  %v2128 = vpow.pop %v2127
  %v2129 = vmul.f32 %v1834, 1.442695
  %v2130 = vpow.pop %v2129
  %v2131 = vmul.f32 %v1835, 1.442695
  %v2132 = vpow.pop %v2131
  %v2133 = vmul.f32 %v1836, 1.442695
  %v2134 = vpow.pop %v2133
  %v2135 = vmul.f32 %v1837, 1.442695
  %v2136 = vpow.pop %v2135
  %v2137 = vmul.f32 %v1838, 1.442695
  %v2138 = vpow.pop %v2137
  %v2139 = vmul.f32 %v1839, 1.442695
  %v2140 = vpow.pop %v2139
  %v2141 = vmul.f32 %v1840, 1.442695
  %v2142 = vpow.pop %v2141
  %v2143 = vmul.f32 %v1841, 1.442695
  %v2144 = vpow.pop %v2143
  %v2145 = vmul.f32 %v1842, 1.442695
  %v2146 = vpow.pop %v2145
  %v2147 = vmul.f32 %v1843, 1.442695
  %v2148 = vpow.pop %v2147
  %v2149 = vmul.f32 %v1844, 1.442695
  %v2150 = vpow.pop %v2149
  %v2151 = vmul.f32 %v1845, 1.442695
  %v2152 = vpow.pop %v2151
  %v2153 = vmul.f32 %v1846, 1.442695
  %v2154 = vpow.pop %v2153
  %v2155 = vmul.f32 %v1847, 1.442695
  %v2156 = vpow.pop %v2155
  %v2157 = vmul.f32 %v1848, 1.442695
  %v2158 = vpow.pop %v2157
  %v2159 = vmul.f32 %v1849, 1.442695
  %v2160 = vpow.pop %v2159
  %v2161 = vmul.f32 %v1850, 1.442695
  %v2162 = vpow.pop %v2161
  %v2163 = vmul.f32 %v1851, 1.442695
  %v2164 = vpow.pop %v2163
  %v2165 = vmul.f32 %v1852, 1.442695
  %v2166 = vpow.pop %v2165
  %v2167 = vmul.f32 %v1853, 1.442695
  %v2168 = vpow.pop %v2167
  %v2169 = vmul.f32 %v1854, 1.442695
  %v2170 = vpow.pop %v2169
  %v2171 = vmul.f32 %v1855, 1.442695
  %v2172 = vpow.pop %v2171
  %v2173 = vmul.f32 %v1856, 1.442695
  %v2174 = vpow.pop %v2173
  %v2175 = vmul.f32 %v1857, 1.442695
  %v2176 = vpow.pop %v2175
  %v2177 = vmul.f32 %v1858, 1.442695
  %v2178 = vpow.pop %v2177
  %v2179 = vmul.f32 %v1859, 1.442695
  %v2180 = vpow.pop %v2179
  %v2181 = vmul.f32 %v1860, 1.442695
  %v2182 = vpow.pop %v2181
  %v2183 = vmul.f32 %v1861, 1.442695
  %v2184 = vpow.pop %v2183
  %v2185 = vmul.f32 %v1862, 1.442695
  %v2186 = vpow.pop %v2185
  %v2187 = vmul.f32 %v1863, 1.442695
  %v2188 = vpow.pop %v2187
  %v2189 = vmul.f32 %v1864, 1.442695
  %v2190 = vpow.pop %v2189
  %v2191 = vmul.f32 %v1865, 1.442695
  %v2192 = vpow.pop %v2191
  %v2193 = vmul.f32 %v1866, 1.442695
  %v2194 = vpow.pop %v2193
  %v2195 = vmul.f32 %v1867, 1.442695
  %v2196 = vpow.pop %v2195
  %v2197 = vmul.f32 %v1868, 1.442695
  %v2198 = vpow.pop %v2197
  %v2199 = vmul.f32 %v1869, 1.442695
  %v2200 = vpow.pop %v2199
  %v2201 = vmul.f32 %v1870, 1.442695
  %v2202 = vpow.pop %v2201
  %v2203 = vmul.f32 %v1871, 1.442695
  %v2204 = vpow.pop %v2203
  %v2205 = vmul.f32 %v1872, 1.442695
  %v2206 = vpow.pop %v2205
  %v2207 = vmul.f32 %v1873, 1.442695
  %v2208 = vpow.pop %v2207
  %v2209 = vmul.f32 %v1874, 1.442695
  %v2210 = vpow.pop %v2209
  %v2211 = vmul.f32 %v1875, 1.442695
  %v2212 = vpow.pop %v2211
  %v2213 = vmul.f32 %v1876, 1.442695
  %v2214 = vpow.pop %v2213
  %v2215 = vmul.f32 %v1877, 1.442695
  %v2216 = vpow.pop %v2215
  %v2217 = vmul.f32 %v1878, 1.442695
  %v2218 = vpow.pop %v2217
  %v2219 = vmul.f32 %v1879, 1.442695
  %v2220 = vpow.pop %v2219
  %v2221 = vmul.f32 %v1880, 1.442695
  %v2222 = vpow.pop %v2221
  %v2223 = vmul.f32 %v1881, 1.442695
  %v2224 = vpow.pop %v2223
  %v2225 = vmul.f32 %v1882, 1.442695
  %v2226 = vpow.pop %v2225
  %v2227 = vmul.f32 %v1883, 1.442695
  %v2228 = vpow.pop %v2227
  %v2229 = vmul.f32 %v1884, 1.442695
  %v2230 = vpow.pop %v2229
  %v2231 = vmul.f32 %v1885, 1.442695
  %v2232 = vpow.pop %v2231
  %v2233 = vmul.f32 %v1886, 1.442695
  %v2234 = vpow.pop %v2233
  %v2235 = vmul.f32 %v1887, 1.442695
  %v2236 = vpow.pop %v2235
  %v2237 = vmul.f32 %v1888, 1.442695
  %v2238 = vpow.pop %v2237
  %v2239 = vmul.f32 %v1889, 1.442695
  %v2240 = vpow.pop %v2239
  %v2241 = vmul.f32 %v1890, 1.442695
  %v2242 = vpow.pop %v2241
  %v2243 = vmul.f32 %v1891, 1.442695
  %v2244 = vpow.pop %v2243
  %v2245 = vmul.f32 %v1892, 1.442695
  %v2246 = vpow.pop %v2245
  %v2247 = vmul.f32 %v1893, 1.442695
  %v2248 = vpow.pop %v2247
  %v2249 = vmul.f32 %v1894, 1.442695
  %v2250 = vpow.pop %v2249
  %v2251 = vmul.f32 %v1895, 1.442695
  %v2252 = vpow.pop %v2251
  %v2253 = vmul.f32 %v1896, 1.442695
  %v2254 = vpow.pop %v2253
  %v2255 = vmul.f32 %v1897, 1.442695
  %v2256 = vpow.pop %v2255
  %v2257 = vmul.f32 %v1898, 1.442695
  %v2258 = vpow.pop %v2257
  %v2259 = vmul.f32 %v1899, 1.442695
  %v2260 = vpow.pop %v2259
  %v2261 = vmul.f32 %v1900, 1.442695
  %v2262 = vpow.pop %v2261
  %v2263 = vmul.f32 %v1901, 1.442695
  %v2264 = vpow.pop %v2263
  %v2265 = vmul.f32 %v1902, 1.442695
  %v2266 = vpow.pop %v2265
  %v2267 = vmul.f32 %v1903, 1.442695
  %v2268 = vpow.pop %v2267
  %v2269 = vmul.f32 %v1904, 1.442695
  %v2270 = vpow.pop %v2269
  %v2271 = vmul.f32 %v1905, 1.442695
  %v2272 = vpow.pop %v2271
  %v2273 = vmul.f32 %v1906, 1.442695
  %v2274 = vpow.pop %v2273
  %v2275 = vmul.f32 %v1907, 1.442695
  %v2276 = vpow.pop %v2275
  %v2277 = vmul.f32 %v1908, 1.442695
  %v2278 = vpow.pop %v2277
  %v2279 = vmul.f32 %v1909, 1.442695
  %v2280 = vpow.pop %v2279
  %v2281 = vmul.f32 %v1910, 1.442695
  %v2282 = vpow.pop %v2281
  %v2283 = vmul.f32 %v1911, 1.442695
  %v2284 = vpow.pop %v2283
  %v2285 = vmul.f32 %v1912, 1.442695
  %v2286 = vpow.pop %v2285
  %v2287 = vmul.f32 %v1913, 1.442695
  %v2288 = vpow.pop %v2287
  %v2289 = vmul.f32 %v1914, 1.442695
  %v2290 = vpow.pop %v2289
  %v2291 = vmul.f32 %v1915, 1.442695
  %v2292 = vpow.pop %v2291
  %v2293 = vmul.f32 %v1916, 1.442695
  %v2294 = vpow.pop %v2293
  %v2295 = vmul.f32 %v1917, 1.442695
  %v2296 = vpow.pop %v2295
  %v2297 = vmul.f32 %v1918, 1.442695
  %v2298 = vpow.pop %v2297
  %v2299 = vmul.f32 %v1919, 1.442695
  %v2300 = vpow.pop %v2299
  %v2301 = vmul.f32 %v1920, 1.442695
  %v2302 = vpow.pop %v2301
  %v2303 = vmul.f32 %v1921, 1.442695
  %v2304 = vpow.pop %v2303
  %v2305 = vmul.f32 %v1922, 1.442695
  %v2306 = vpow.pop %v2305
  %v2307 = vmul.f32 %v1923, 1.442695
  %v2308 = vpow.pop %v2307
  %v2309 = vmul.f32 %v1924, 1.442695
  %v2310 = vpow.pop %v2309
  %v2311 = vmul.f32 %v1925, 1.442695
  %v2312 = vpow.pop %v2311
  %v2313 = vmul.f32 %v1926, 1.442695
  %v2314 = vpow.pop %v2313
  %v2315 = vmul.f32 %v1927, 1.442695
  %v2316 = vpow.pop %v2315
  %v2317 = vmul.f32 %v1928, 1.442695
  %v2318 = vpow.pop %v2317
  %v2319 = vmul.f32 %v1929, 1.442695
  %v2320 = vpow.pop %v2319
  %v2321 = vmul.f32 %v1930, 1.442695
  %v2322 = vpow.pop %v2321
  %v2323 = vmul.f32 %v1931, 1.442695
  %v2324 = vpow.pop %v2323
  %v2325 = vmul.f32 %v1932, 1.442695
  %v2326 = vpow.pop %v2325
  %v2327 = vmul.f32 %v1933, 1.442695
  %v2328 = vpow.pop %v2327
  %v2329 = vmul.f32 %v1934, 1.442695
  %v2330 = vpow.pop %v2329
  %v2331 = vmul.f32 %v1935, 1.442695
  %v2332 = vpow.pop %v2331
  %v2333 = vmul.f32 %v1936, 1.442695
  %v2334 = vpow.pop %v2333
  %v2335 = vmul.f32 %v1937, 1.442695
  %v2336 = vpow.pop %v2335
  %v2337 = vmul.f32 %v1938, 1.442695
  %v2338 = vpow.pop %v2337
  %v2339 = vadd.f32 %v1940, 1.0
  %v2340 = vadd.f32 %v1942, 1.0
  %v2341 = vadd.f32 %v1944, 1.0
  %v2342 = vadd.f32 %v1946, 1.0
  %v2343 = vadd.f32 %v1948, 1.0
  %v2344 = vadd.f32 %v1950, 1.0
  %v2345 = vadd.f32 %v1952, 1.0
  %v2346 = vadd.f32 %v1954, 1.0
  %v2347 = vadd.f32 %v1956, 1.0
  %v2348 = vadd.f32 %v1958, 1.0
  %v2349 = vadd.f32 %v1960, 1.0
  %v2350 = vadd.f32 %v1962, 1.0
  %v2351 = vadd.f32 %v1964, 1.0
  %v2352 = vadd.f32 %v1966, 1.0
  %v2353 = vadd.f32 %v1968, 1.0
  %v2354 = vadd.f32 %v1970, 1.0
  %v2355 = vadd.f32 %v1972, 1.0
  %v2356 = vadd.f32 %v1974, 1.0
  %v2357 = vadd.f32 %v1976, 1.0
  %v2358 = vadd.f32 %v1978, 1.0
  %v2359 = vadd.f32 %v1980, 1.0
  %v2360 = vadd.f32 %v1982, 1.0
  %v2361 = vadd.f32 %v1984, 1.0
  %v2362 = vadd.f32 %v1986, 1.0
  %v2363 = vadd.f32 %v1988, 1.0
  %v2364 = vadd.f32 %v1990, 1.0
  %v2365 = vadd.f32 %v1992, 1.0
  %v2366 = vadd.f32 %v1994, 1.0
  %v2367 = vadd.f32 %v1996, 1.0
  %v2368 = vadd.f32 %v1998, 1.0
  %v2369 = vadd.f32 %v2000, 1.0
  %v2370 = vadd.f32 %v2002, 1.0
  %v2371 = vadd.f32 %v2004, 1.0
  %v2372 = vadd.f32 %v2006, 1.0
  %v2373 = vadd.f32 %v2008, 1.0
  %v2374 = vadd.f32 %v2010, 1.0
  %v2375 = vadd.f32 %v2012, 1.0
  %v2376 = vadd.f32 %v2014, 1.0
  %v2377 = vadd.f32 %v2016, 1.0
  %v2378 = vadd.f32 %v2018, 1.0
  %v2379 = vadd.f32 %v2020, 1.0
  %v2380 = vadd.f32 %v2022, 1.0
  %v2381 = vadd.f32 %v2024, 1.0
  %v2382 = vadd.f32 %v2026, 1.0
  %v2383 = vadd.f32 %v2028, 1.0
  %v2384 = vadd.f32 %v2030, 1.0
  %v2385 = vadd.f32 %v2032, 1.0
  %v2386 = vadd.f32 %v2034, 1.0
  %v2387 = vadd.f32 %v2036, 1.0
  %v2388 = vadd.f32 %v2038, 1.0
  %v2389 = vadd.f32 %v2040, 1.0
  %v2390 = vadd.f32 %v2042, 1.0
  %v2391 = vadd.f32 %v2044, 1.0
  %v2392 = vadd.f32 %v2046, 1.0
  %v2393 = vadd.f32 %v2048, 1.0
  %v2394 = vadd.f32 %v2050, 1.0
  %v2395 = vadd.f32 %v2052, 1.0
  %v2396 = vadd.f32 %v2054, 1.0
  %v2397 = vadd.f32 %v2056, 1.0
  %v2398 = vadd.f32 %v2058, 1.0
  %v2399 = vadd.f32 %v2060, 1.0
  %v2400 = vadd.f32 %v2062, 1.0
  %v2401 = vadd.f32 %v2064, 1.0
  %v2402 = vadd.f32 %v2066, 1.0
  %v2403 = vadd.f32 %v2068, 1.0
  %v2404 = vadd.f32 %v2070, 1.0
  %v2405 = vadd.f32 %v2072, 1.0
  %v2406 = vadd.f32 %v2074, 1.0
  %v2407 = vadd.f32 %v2076, 1.0
  %v2408 = vadd.f32 %v2078, 1.0
  %v2409 = vadd.f32 %v2080, 1.0
  %v2410 = vadd.f32 %v2082, 1.0
  %v2411 = vadd.f32 %v2084, 1.0
  %v2412 = vadd.f32 %v2086, 1.0
  %v2413 = vadd.f32 %v2088, 1.0
  %v2414 = vadd.f32 %v2090, 1.0
  %v2415 = vadd.f32 %v2092, 1.0
  %v2416 = vadd.f32 %v2094, 1.0
  %v2417 = vadd.f32 %v2096, 1.0
  %v2418 = vadd.f32 %v2098, 1.0
  %v2419 = vadd.f32 %v2100, 1.0
  %v2420 = vadd.f32 %v2102, 1.0
  %v2421 = vadd.f32 %v2104, 1.0
  %v2422 = vadd.f32 %v2106, 1.0
  %v2423 = vadd.f32 %v2108, 1.0
  %v2424 = vadd.f32 %v2110, 1.0
  %v2425 = vadd.f32 %v2112, 1.0
  %v2426 = vadd.f32 %v2114, 1.0
  %v2427 = vadd.f32 %v2116, 1.0
  %v2428 = vadd.f32 %v2118, 1.0
  %v2429 = vadd.f32 %v2120, 1.0
  %v2430 = vadd.f32 %v2122, 1.0
  %v2431 = vadd.f32 %v2124, 1.0
  %v2432 = vadd.f32 %v2126, 1.0
  %v2433 = vadd.f32 %v2128, 1.0
  %v2434 = vadd.f32 %v2130, 1.0
  %v2435 = vadd.f32 %v2132, 1.0
  %v2436 = vadd.f32 %v2134, 1.0
  %v2437 = vadd.f32 %v2136, 1.0
  %v2438 = vadd.f32 %v2138, 1.0
  %v2439 = vadd.f32 %v2140, 1.0
  %v2440 = vadd.f32 %v2142, 1.0
  %v2441 = vadd.f32 %v2144, 1.0
  %v2442 = vadd.f32 %v2146, 1.0
  %v2443 = vadd.f32 %v2148, 1.0
  %v2444 = vadd.f32 %v2150, 1.0
  %v2445 = vadd.f32 %v2152, 1.0
  %v2446 = vadd.f32 %v2154, 1.0
  %v2447 = vadd.f32 %v2156, 1.0
  %v2448 = vadd.f32 %v2158, 1.0
  %v2449 = vadd.f32 %v2160, 1.0
  %v2450 = vadd.f32 %v2162, 1.0
  %v2451 = vadd.f32 %v2164, 1.0
  %v2452 = vadd.f32 %v2166, 1.0
  %v2453 = vadd.f32 %v2168, 1.0
  %v2454 = vadd.f32 %v2170, 1.0
  %v2455 = vadd.f32 %v2172, 1.0
  %v2456 = vadd.f32 %v2174, 1.0
  %v2457 = vadd.f32 %v2176, 1.0
  %v2458 = vadd.f32 %v2178, 1.0
  %v2459 = vadd.f32 %v2180, 1.0
  %v2460 = vadd.f32 %v2182, 1.0
  %v2461 = vadd.f32 %v2184, 1.0
  %v2462 = vadd.f32 %v2186, 1.0
  %v2463 = vadd.f32 %v2188, 1.0
  %v2464 = vadd.f32 %v2190, 1.0
  %v2465 = vadd.f32 %v2192, 1.0
  %v2466 = vadd.f32 %v2194, 1.0
  %v2467 = vadd.f32 %v2196, 1.0
  %v2468 = vadd.f32 %v2198, 1.0
  %v2469 = vadd.f32 %v2200, 1.0
  %v2470 = vadd.f32 %v2202, 1.0
  %v2471 = vadd.f32 %v2204, 1.0
  %v2472 = vadd.f32 %v2206, 1.0
  %v2473 = vadd.f32 %v2208, 1.0
  %v2474 = vadd.f32 %v2210, 1.0
  %v2475 = vadd.f32 %v2212, 1.0
  %v2476 = vadd.f32 %v2214, 1.0
  %v2477 = vadd.f32 %v2216, 1.0
  %v2478 = vadd.f32 %v2218, 1.0
  %v2479 = vadd.f32 %v2220, 1.0
  %v2480 = vadd.f32 %v2222, 1.0
  %v2481 = vadd.f32 %v2224, 1.0
  %v2482 = vadd.f32 %v2226, 1.0
  %v2483 = vadd.f32 %v2228, 1.0
  %v2484 = vadd.f32 %v2230, 1.0
  %v2485 = vadd.f32 %v2232, 1.0
  %v2486 = vadd.f32 %v2234, 1.0
  %v2487 = vadd.f32 %v2236, 1.0
  %v2488 = vadd.f32 %v2238, 1.0
  %v2489 = vadd.f32 %v2240, 1.0
  %v2490 = vadd.f32 %v2242, 1.0
  %v2491 = vadd.f32 %v2244, 1.0
  %v2492 = vadd.f32 %v2246, 1.0
  %v2493 = vadd.f32 %v2248, 1.0
  %v2494 = vadd.f32 %v2250, 1.0
  %v2495 = vadd.f32 %v2252, 1.0
  %v2496 = vadd.f32 %v2254, 1.0
  %v2497 = vadd.f32 %v2256, 1.0
  %v2498 = vadd.f32 %v2258, 1.0
  %v2499 = vadd.f32 %v2260, 1.0
  %v2500 = vadd.f32 %v2262, 1.0
  %v2501 = vadd.f32 %v2264, 1.0
  %v2502 = vadd.f32 %v2266, 1.0
  %v2503 = vadd.f32 %v2268, 1.0
  %v2504 = vadd.f32 %v2270, 1.0
  %v2505 = vadd.f32 %v2272, 1.0
  %v2506 = vadd.f32 %v2274, 1.0
  %v2507 = vadd.f32 %v2276, 1.0
  %v2508 = vadd.f32 %v2278, 1.0
  %v2509 = vadd.f32 %v2280, 1.0
  %v2510 = vadd.f32 %v2282, 1.0
  %v2511 = vadd.f32 %v2284, 1.0
  %v2512 = vadd.f32 %v2286, 1.0
  %v2513 = vadd.f32 %v2288, 1.0
  %v2514 = vadd.f32 %v2290, 1.0
  %v2515 = vadd.f32 %v2292, 1.0
  %v2516 = vadd.f32 %v2294, 1.0
  %v2517 = vadd.f32 %v2296, 1.0
  %v2518 = vadd.f32 %v2298, 1.0
  %v2519 = vadd.f32 %v2300, 1.0
  %v2520 = vadd.f32 %v2302, 1.0
  %v2521 = vadd.f32 %v2304, 1.0
  %v2522 = vadd.f32 %v2306, 1.0
  %v2523 = vadd.f32 %v2308, 1.0
  %v2524 = vadd.f32 %v2310, 1.0
  %v2525 = vadd.f32 %v2312, 1.0
  %v2526 = vadd.f32 %v2314, 1.0
  %v2527 = vadd.f32 %v2316, 1.0
  %v2528 = vadd.f32 %v2318, 1.0
  %v2529 = vadd.f32 %v2320, 1.0
  %v2530 = vadd.f32 %v2322, 1.0
  %v2531 = vadd.f32 %v2324, 1.0
  %v2532 = vadd.f32 %v2326, 1.0
  %v2533 = vadd.f32 %v2328, 1.0
  %v2534 = vadd.f32 %v2330, 1.0
  %v2535 = vadd.f32 %v2332, 1.0
  %v2536 = vadd.f32 %v2334, 1.0
  %v2537 = vadd.f32 %v2336, 1.0
  %v2538 = vadd.f32 %v2338, 1.0
  %v2539 = vrcp.pop %v2339
  %v2540 = vrcp.pop %v2340
  %v2541 = vrcp.pop %v2341
  %v2542 = vrcp.pop %v2342
  %v2543 = vrcp.pop %v2343
  %v2544 = vrcp.pop %v2344
  %v2545 = vrcp.pop %v2345
  %v2546 = vrcp.pop %v2346
  %v2547 = vrcp.pop %v2347
  %v2548 = vrcp.pop %v2348
  %v2549 = vrcp.pop %v2349
  %v2550 = vrcp.pop %v2350
  %v2551 = vrcp.pop %v2351
  %v2552 = vrcp.pop %v2352
  %v2553 = vrcp.pop %v2353
  %v2554 = vrcp.pop %v2354
  %v2555 = vrcp.pop %v2355
  %v2556 = vrcp.pop %v2356
  %v2557 = vrcp.pop %v2357
  %v2558 = vrcp.pop %v2358
  %v2559 = vrcp.pop %v2359
  %v2560 = vrcp.pop %v2360
  %v2561 = vrcp.pop %v2361
  %v2562 = vrcp.pop %v2362
  %v2563 = vrcp.pop %v2363
  %v2564 = vrcp.pop %v2364
  %v2565 = vrcp.pop %v2365
  %v2566 = vrcp.pop %v2366
  %v2567 = vrcp.pop %v2367
  %v2568 = vrcp.pop %v2368
  %v2569 = vrcp.pop %v2369
  %v2570 = vrcp.pop %v2370
  %v2571 = vrcp.pop %v2371
  %v2572 = vrcp.pop %v2372
  %v2573 = vrcp.pop %v2373
  %v2574 = vrcp.pop %v2374
  %v2575 = vrcp.pop %v2375
  %v2576 = vrcp.pop %v2376
  %v2577 = vrcp.pop %v2377
  %v2578 = vrcp.pop %v2378
  %v2579 = vrcp.pop %v2379
  %v2580 = vrcp.pop %v2380
  %v2581 = vrcp.pop %v2381
  %v2582 = vrcp.pop %v2382
  %v2583 = vrcp.pop %v2383
  %v2584 = vrcp.pop %v2384
  %v2585 = vrcp.pop %v2385
  %v2586 = vrcp.pop %v2386
  %v2587 = vrcp.pop %v2387
  %v2588 = vrcp.pop %v2388
  %v2589 = vrcp.pop %v2389
  %v2590 = vrcp.pop %v2390
  %v2591 = vrcp.pop %v2391
  %v2592 = vrcp.pop %v2392
  %v2593 = vrcp.pop %v2393
  %v2594 = vrcp.pop %v2394
  %v2595 = vrcp.pop %v2395
  %v2596 = vrcp.pop %v2396
  %v2597 = vrcp.pop %v2397
  %v2598 = vrcp.pop %v2398
  %v2599 = vrcp.pop %v2399
  %v2600 = vrcp.pop %v2400
  %v2601 = vrcp.pop %v2401
  %v2602 = vrcp.pop %v2402
  %v2603 = vrcp.pop %v2403
  %v2604 = vrcp.pop %v2404
  %v2605 = vrcp.pop %v2405
  %v2606 = vrcp.pop %v2406
  %v2607 = vrcp.pop %v2407
  %v2608 = vrcp.pop %v2408
  %v2609 = vrcp.pop %v2409
  %v2610 = vrcp.pop %v2410
  %v2611 = vrcp.pop %v2411
  %v2612 = vrcp.pop %v2412
  %v2613 = vrcp.pop %v2413
  %v2614 = vrcp.pop %v2414
  %v2615 = vrcp.pop %v2415
  %v2616 = vrcp.pop %v2416
  %v2617 = vrcp.pop %v2417
  %v2618 = vrcp.pop %v2418
  %v2619 = vrcp.pop %v2419
  %v2620 = vrcp.pop %v2420
  %v2621 = vrcp.pop %v2421
  %v2622 = vrcp.pop %v2422
  %v2623 = vrcp.pop %v2423
  %v2624 = vrcp.pop %v2424
  %v2625 = vrcp.pop %v2425
  %v2626 = vrcp.pop %v2426
  %v2627 = vrcp.pop %v2427
  %v2628 = vrcp.pop %v2428
  %v2629 = vrcp.pop %v2429
  %v2630 = vrcp.pop %v2430
  %v2631 = vrcp.pop %v2431
  %v2632 = vrcp.pop %v2432
  %v2633 = vrcp.pop %v2433
  %v2634 = vrcp.pop %v2434
  %v2635 = vrcp.pop %v2435
  %v2636 = vrcp.pop %v2436
  %v2637 = vrcp.pop %v2437
  %v2638 = vrcp.pop %v2438
  %v2639 = vrcp.pop %v2439
  %v2640 = vrcp.pop %v2440
  %v2641 = vrcp.pop %v2441
  %v2642 = vrcp.pop %v2442
  %v2643 = vrcp.pop %v2443
  %v2644 = vrcp.pop %v2444
  %v2645 = vrcp.pop %v2445
  %v2646 = vrcp.pop %v2446
  %v2647 = vrcp.pop %v2447
  %v2648 = vrcp.pop %v2448
  %v2649 = vrcp.pop %v2449
  %v2650 = vrcp.pop %v2450
  %v2651 = vrcp.pop %v2451
  %v2652 = vrcp.pop %v2452
  %v2653 = vrcp.pop %v2453
  %v2654 = vrcp.pop %v2454
  %v2655 = vrcp.pop %v2455
  %v2656 = vrcp.pop %v2456
  %v2657 = vrcp.pop %v2457
  %v2658 = vrcp.pop %v2458
  %v2659 = vrcp.pop %v2459
  %v2660 = vrcp.pop %v2460
  %v2661 = vrcp.pop %v2461
  %v2662 = vrcp.pop %v2462
  %v2663 = vrcp.pop %v2463
  %v2664 = vrcp.pop %v2464
  %v2665 = vrcp.pop %v2465
  %v2666 = vrcp.pop %v2466
  %v2667 = vrcp.pop %v2467
  %v2668 = vrcp.pop %v2468
  %v2669 = vrcp.pop %v2469
  %v2670 = vrcp.pop %v2470
  %v2671 = vrcp.pop %v2471
  %v2672 = vrcp.pop %v2472
  %v2673 = vrcp.pop %v2473
  %v2674 = vrcp.pop %v2474
  %v2675 = vrcp.pop %v2475
  %v2676 = vrcp.pop %v2476
  %v2677 = vrcp.pop %v2477
  %v2678 = vrcp.pop %v2478
  %v2679 = vrcp.pop %v2479
  %v2680 = vrcp.pop %v2480
  %v2681 = vrcp.pop %v2481
  %v2682 = vrcp.pop %v2482
  %v2683 = vrcp.pop %v2483
  %v2684 = vrcp.pop %v2484
  %v2685 = vrcp.pop %v2485
  %v2686 = vrcp.pop %v2486
  %v2687 = vrcp.pop %v2487
  %v2688 = vrcp.pop %v2488
  %v2689 = vrcp.pop %v2489
  %v2690 = vrcp.pop %v2490
  %v2691 = vrcp.pop %v2491
  %v2692 = vrcp.pop %v2492
  %v2693 = vrcp.pop %v2493
  %v2694 = vrcp.pop %v2494
  %v2695 = vrcp.pop %v2495
  %v2696 = vrcp.pop %v2496
  %v2697 = vrcp.pop %v2497
  %v2698 = vrcp.pop %v2498
  %v2699 = vrcp.pop %v2499
  %v2700 = vrcp.pop %v2500
  %v2701 = vrcp.pop %v2501
  %v2702 = vrcp.pop %v2502
  %v2703 = vrcp.pop %v2503
  %v2704 = vrcp.pop %v2504
  %v2705 = vrcp.pop %v2505
  %v2706 = vrcp.pop %v2506
  %v2707 = vrcp.pop %v2507
  %v2708 = vrcp.pop %v2508
  %v2709 = vrcp.pop %v2509
  %v2710 = vrcp.pop %v2510
  %v2711 = vrcp.pop %v2511
  %v2712 = vrcp.pop %v2512
  %v2713 = vrcp.pop %v2513
  %v2714 = vrcp.pop %v2514
  %v2715 = vrcp.pop %v2515
  %v2716 = vrcp.pop %v2516
  %v2717 = vrcp.pop %v2517
  %v2718 = vrcp.pop %v2518
  %v2719 = vrcp.pop %v2519
  %v2720 = vrcp.pop %v2520
  %v2721 = vrcp.pop %v2521
  %v2722 = vrcp.pop %v2522
  %v2723 = vrcp.pop %v2523
  %v2724 = vrcp.pop %v2524
  %v2725 = vrcp.pop %v2525
  %v2726 = vrcp.pop %v2526
  %v2727 = vrcp.pop %v2527
  %v2728 = vrcp.pop %v2528
  %v2729 = vrcp.pop %v2529
  %v2730 = vrcp.pop %v2530
  %v2731 = vrcp.pop %v2531
  %v2732 = vrcp.pop %v2532
  %v2733 = vrcp.pop %v2533
  %v2734 = vrcp.pop %v2534
  %v2735 = vrcp.pop %v2535
  %v2736 = vrcp.pop %v2536
  %v2737 = vrcp.pop %v2537
  %v2738 = vrcp.pop %v2538
  %v2739 = vpack.c.bf16 %v2540, %v2539
  %v2740 = vpack.c.bf16 %v2542, %v2541
  %v2741 = vpack.c.bf16 %v2544, %v2543
  %v2742 = vpack.c.bf16 %v2546, %v2545
  %v2743 = vpack.c.bf16 %v2548, %v2547
  %v2744 = vpack.c.bf16 %v2550, %v2549
  %v2745 = vpack.c.bf16 %v2552, %v2551
  %v2746 = vpack.c.bf16 %v2554, %v2553
  %v2747 = vpack.c.bf16 %v2556, %v2555
  %v2748 = vpack.c.bf16 %v2558, %v2557
  %v2749 = vpack.c.bf16 %v2560, %v2559
  %v2750 = vpack.c.bf16 %v2562, %v2561
  %v2751 = vpack.c.bf16 %v2564, %v2563
  %v2752 = vpack.c.bf16 %v2566, %v2565
  %v2753 = vpack.c.bf16 %v2568, %v2567
  %v2754 = vpack.c.bf16 %v2570, %v2569
  %v2755 = vpack.c.bf16 %v2572, %v2571
  %v2756 = vpack.c.bf16 %v2574, %v2573
  %v2757 = vpack.c.bf16 %v2576, %v2575
  %v2758 = vpack.c.bf16 %v2578, %v2577
  %v2759 = vpack.c.bf16 %v2580, %v2579
  %v2760 = vpack.c.bf16 %v2582, %v2581
  %v2761 = vpack.c.bf16 %v2584, %v2583
  %v2762 = vpack.c.bf16 %v2586, %v2585
  %v2763 = vpack.c.bf16 %v2588, %v2587
  %v2764 = vpack.c.bf16 %v2590, %v2589
  %v2765 = vpack.c.bf16 %v2592, %v2591
  %v2766 = vpack.c.bf16 %v2594, %v2593
  %v2767 = vpack.c.bf16 %v2596, %v2595
  %v2768 = vpack.c.bf16 %v2598, %v2597
  %v2769 = vpack.c.bf16 %v2600, %v2599
  %v2770 = vpack.c.bf16 %v2602, %v2601
  %v2771 = vpack.c.bf16 %v2604, %v2603
  %v2772 = vpack.c.bf16 %v2606, %v2605
  %v2773 = vpack.c.bf16 %v2608, %v2607
  %v2774 = vpack.c.bf16 %v2610, %v2609
  %v2775 = vpack.c.bf16 %v2612, %v2611
  %v2776 = vpack.c.bf16 %v2614, %v2613
  %v2777 = vpack.c.bf16 %v2616, %v2615
  %v2778 = vpack.c.bf16 %v2618, %v2617
  %v2779 = vpack.c.bf16 %v2620, %v2619
  %v2780 = vpack.c.bf16 %v2622, %v2621
  %v2781 = vpack.c.bf16 %v2624, %v2623
  %v2782 = vpack.c.bf16 %v2626, %v2625
  %v2783 = vpack.c.bf16 %v2628, %v2627
  %v2784 = vpack.c.bf16 %v2630, %v2629
  %v2785 = vpack.c.bf16 %v2632, %v2631
  %v2786 = vpack.c.bf16 %v2634, %v2633
  %v2787 = vpack.c.bf16 %v2636, %v2635
  %v2788 = vpack.c.bf16 %v2638, %v2637
  %v2789 = vpack.c.bf16 %v2640, %v2639
  %v2790 = vpack.c.bf16 %v2642, %v2641
  %v2791 = vpack.c.bf16 %v2644, %v2643
  %v2792 = vpack.c.bf16 %v2646, %v2645
  %v2793 = vpack.c.bf16 %v2648, %v2647
  %v2794 = vpack.c.bf16 %v2650, %v2649
  %v2795 = vpack.c.bf16 %v2652, %v2651
  %v2796 = vpack.c.bf16 %v2654, %v2653
  %v2797 = vpack.c.bf16 %v2656, %v2655
  %v2798 = vpack.c.bf16 %v2658, %v2657
  %v2799 = vpack.c.bf16 %v2660, %v2659
  %v2800 = vpack.c.bf16 %v2662, %v2661
  %v2801 = vpack.c.bf16 %v2664, %v2663
  %v2802 = vpack.c.bf16 %v2666, %v2665
  %v2803 = vpack.c.bf16 %v2668, %v2667
  %v2804 = vpack.c.bf16 %v2670, %v2669
  %v2805 = vpack.c.bf16 %v2672, %v2671
  %v2806 = vpack.c.bf16 %v2674, %v2673
  %v2807 = vpack.c.bf16 %v2676, %v2675
  %v2808 = vpack.c.bf16 %v2678, %v2677
  %v2809 = vpack.c.bf16 %v2680, %v2679
  %v2810 = vpack.c.bf16 %v2682, %v2681
  %v2811 = vpack.c.bf16 %v2684, %v2683
  %v2812 = vpack.c.bf16 %v2686, %v2685
  %v2813 = vpack.c.bf16 %v2688, %v2687
  %v2814 = vpack.c.bf16 %v2690, %v2689
  %v2815 = vpack.c.bf16 %v2692, %v2691
  %v2816 = vpack.c.bf16 %v2694, %v2693
  %v2817 = vpack.c.bf16 %v2696, %v2695
  %v2818 = vpack.c.bf16 %v2698, %v2697
  %v2819 = vpack.c.bf16 %v2700, %v2699
  %v2820 = vpack.c.bf16 %v2702, %v2701
  %v2821 = vpack.c.bf16 %v2704, %v2703
  %v2822 = vpack.c.bf16 %v2706, %v2705
  %v2823 = vpack.c.bf16 %v2708, %v2707
  %v2824 = vpack.c.bf16 %v2710, %v2709
  %v2825 = vpack.c.bf16 %v2712, %v2711
  %v2826 = vpack.c.bf16 %v2714, %v2713
  %v2827 = vpack.c.bf16 %v2716, %v2715
  %v2828 = vpack.c.bf16 %v2718, %v2717
  %v2829 = vpack.c.bf16 %v2720, %v2719
  %v2830 = vpack.c.bf16 %v2722, %v2721
  %v2831 = vpack.c.bf16 %v2724, %v2723
  %v2832 = vpack.c.bf16 %v2726, %v2725
  %v2833 = vpack.c.bf16 %v2728, %v2727
  %v2834 = vpack.c.bf16 %v2730, %v2729
  %v2835 = vpack.c.bf16 %v2732, %v2731
  %v2836 = vpack.c.bf16 %v2734, %v2733
  %v2837 = vpack.c.bf16 %v2736, %v2735
  %v2838 = vpack.c.bf16 %v2738, %v2737
  %v2839 = vld [vmem:[%s3] sm:$0xf]
  %v2840 = vld [vmem:[%s3 + $0x4] sm:$0xf]
  %v2841 = vld [vmem:[%s3 + $0x8] sm:$0x3]
  %v2842 = vld [vmem:[%s4] sm:$0x1]
  %v2844 = vlaneseq
  %v2845 = vshrl.u32 %v2844, 7
  %v2846 = vsub.s32 0, %v2845
  %v2847 = vrot.slane %v2842, %v2846
  %v2852 = vunpack.c.l.b16 %v2839
  %v2853 = vunpack.c.l.b16 %v2840
  %v2854 = vunpack.c.l.b16 %v2841
  %v2855 = vpack.c.b16 %v2853, %v2852
  %v2856 = vpack.c.b16 %v2854, %v2854
  %vm2858 = vcmask 162816
  %v2860 = vsel %vm2858, %v2739, 0
  %v2863 = vsel %vm2858, %v2740, 0
  %v2866 = vsel %vm2858, %v2741, 0
  %v2869 = vsel %vm2858, %v2742, 0
  %v2872 = vsel %vm2858, %v2743, 0
  %v2875 = vsel %vm2858, %v2744, 0
  %v2878 = vsel %vm2858, %v2745, 0
  %v2881 = vsel %vm2858, %v2746, 0
  %v2884 = vsel %vm2858, %v2747, 0
  %v2887 = vsel %vm2858, %v2748, 0
  %v2890 = vsel %vm2858, %v2749, 0
  %v2893 = vsel %vm2858, %v2750, 0
  %v2896 = vsel %vm2858, %v2751, 0
  %v2899 = vsel %vm2858, %v2752, 0
  %v2902 = vsel %vm2858, %v2753, 0
  %v2905 = vsel %vm2858, %v2754, 0
  %v2908 = vsel %vm2858, %v2755, 0
  %v2911 = vsel %vm2858, %v2756, 0
  %v2914 = vsel %vm2858, %v2757, 0
  %v2917 = vsel %vm2858, %v2758, 0
  %v2920 = vsel %vm2858, %v2759, 0
  %v2923 = vsel %vm2858, %v2760, 0
  %v2926 = vsel %vm2858, %v2761, 0
  %v2929 = vsel %vm2858, %v2762, 0
  %v2932 = vsel %vm2858, %v2763, 0
  %v2935 = vsel %vm2858, %v2764, 0
  %v2938 = vsel %vm2858, %v2765, 0
  %v2941 = vsel %vm2858, %v2766, 0
  %v2944 = vsel %vm2858, %v2767, 0
  %v2947 = vsel %vm2858, %v2768, 0
  %v2950 = vsel %vm2858, %v2769, 0
  %v2953 = vsel %vm2858, %v2770, 0
  %v2956 = vsel %vm2858, %v2771, 0
  %v2959 = vsel %vm2858, %v2772, 0
  %v2962 = vsel %vm2858, %v2773, 0
  %v2965 = vsel %vm2858, %v2774, 0
  %v2968 = vsel %vm2858, %v2775, 0
  %v2971 = vsel %vm2858, %v2776, 0
  %v2974 = vsel %vm2858, %v2777, 0
  %v2977 = vsel %vm2858, %v2778, 0
  %v2980 = vsel %vm2858, %v2779, 0
  %v2983 = vsel %vm2858, %v2780, 0
  %v2986 = vsel %vm2858, %v2781, 0
  %v2989 = vsel %vm2858, %v2782, 0
  %v2992 = vsel %vm2858, %v2783, 0
  %v2995 = vsel %vm2858, %v2784, 0
  %v2998 = vsel %vm2858, %v2785, 0
  %v3001 = vsel %vm2858, %v2786, 0
  %v3004 = vsel %vm2858, %v2787, 0
  %v3007 = vsel %vm2858, %v2788, 0
  %v3010 = vsel %vm2858, %v2789, 0
  %v3013 = vsel %vm2858, %v2790, 0
  %v3016 = vsel %vm2858, %v2791, 0
  %v3019 = vsel %vm2858, %v2792, 0
  %v3022 = vsel %vm2858, %v2793, 0
  %v3025 = vsel %vm2858, %v2794, 0
  %v3028 = vsel %vm2858, %v2795, 0
  %v3031 = vsel %vm2858, %v2796, 0
  %v3034 = vsel %vm2858, %v2797, 0
  %v3037 = vsel %vm2858, %v2798, 0
  %v3040 = vsel %vm2858, %v2799, 0
  %v3043 = vsel %vm2858, %v2800, 0
  %v3046 = vsel %vm2858, %v2801, 0
  %v3049 = vsel %vm2858, %v2802, 0
  %v3052 = vsel %vm2858, %v2803, 0
  %v3055 = vsel %vm2858, %v2804, 0
  %v3058 = vsel %vm2858, %v2805, 0
  %v3061 = vsel %vm2858, %v2806, 0
  %v3064 = vsel %vm2858, %v2807, 0
  %v3067 = vsel %vm2858, %v2808, 0
  %v3070 = vsel %vm2858, %v2809, 0
  %v3073 = vsel %vm2858, %v2810, 0
  %v3076 = vsel %vm2858, %v2811, 0
  %v3079 = vsel %vm2858, %v2812, 0
  %v3082 = vsel %vm2858, %v2813, 0
  %v3085 = vsel %vm2858, %v2814, 0
  %v3088 = vsel %vm2858, %v2815, 0
  %v3091 = vsel %vm2858, %v2816, 0
  %v3094 = vsel %vm2858, %v2817, 0
  %v3097 = vsel %vm2858, %v2818, 0
  %v3100 = vsel %vm2858, %v2819, 0
  %v3103 = vsel %vm2858, %v2820, 0
  %v3106 = vsel %vm2858, %v2821, 0
  %v3109 = vsel %vm2858, %v2822, 0
  %v3112 = vsel %vm2858, %v2823, 0
  %v3115 = vsel %vm2858, %v2824, 0
  %v3118 = vsel %vm2858, %v2825, 0
  %v3121 = vsel %vm2858, %v2826, 0
  %v3124 = vsel %vm2858, %v2827, 0
  %v3127 = vsel %vm2858, %v2828, 0
  %v3130 = vsel %vm2858, %v2829, 0
  %v3133 = vsel %vm2858, %v2830, 0
  %v3136 = vsel %vm2858, %v2831, 0
  %v3139 = vsel %vm2858, %v2832, 0
  %v3142 = vsel %vm2858, %v2833, 0
  %v3145 = vsel %vm2858, %v2834, 0
  %v3148 = vsel %vm2858, %v2835, 0
  %v3151 = vsel %vm2858, %v2836, 0
  %v3154 = vsel %vm2858, %v2837, 0
  %v3157 = vsel %vm2858, %v2838, 0
  %vm3159 = vcmask 1041408
  %v3161 = vsel %vm3159, %v2856, 0
  %3163 = vmatprep.subr.bf16.mxu0 0
  %3164 = vmatpush1.bf16.msra.mxu0 0
  %3165 = vmatprep.subr.bf16.mxu0 0
  %3166 = vmatpush1.bf16.msra.mxu0 0
  %3167 = vmatprep.subr.bf16.mxu0 0
  %3168 = vmatpush1.bf16.msra.mxu0 0
  %3169 = vmatprep.subr.bf16.mxu0 0
  %3170 = vmatpush1.bf16.msra.mxu0 0
  %3171 = vmatprep.subr.bf16.mxu0 0
  %3172 = vmatpush1.bf16.msra.mxu0 0
  %3173 = vmatprep.subr.bf16.mxu0 0
  %3174 = vmatpush1.bf16.msra.mxu0 0
  %3175 = vmatprep.subr.bf16.mxu0 0
  %3176 = vmatpush1.bf16.msra.mxu0 %v3161
  %3177 = vmatprep.subr.bf16.mxu0 0
  %3178 = vmatpush1.bf16.msra.mxu0 %v2855
  %3179 = vmatprep.subr.bf16.mxu0 0
  %3180 = vmatpush2.bf16.msra.mxu0 0
  %3181 = vmatprep.subr.bf16.mxu0 0
  %3182 = vmatpush2.bf16.msra.mxu0 0
  %3183 = vmatprep.subr.bf16.mxu0 0
  %3184 = vmatpush2.bf16.msra.mxu0 0
  %3185 = vmatprep.subr.bf16.mxu0 0
  %3186 = vmatpush2.bf16.msra.mxu0 0
  %3187 = vmatprep.subr.bf16.mxu0 0
  %3188 = vmatpush2.bf16.msra.mxu0 0
  %3189 = vmatprep.subr.bf16.mxu0 0
  %3190 = vmatpush2.bf16.msra.mxu0 0
  %3191 = vmatprep.subr.bf16.mxu0 0
  %3192 = vmatpush2.bf16.msra.mxu0 0
  %3193 = vmatprep.subr.bf16.mxu0 0
  %3194 = vmatpush2.bf16.msra.mxu0 0
  %3195 = vmatprep.mubr.bf16.mxu0 0
  %3196 = vmatmul.mubr.bf16.gmra.mxu0 %v2860
  %v3197 = vpop.f32.mrf.mxu0
  %v3198 = vadd.f32 %v2847, %v3197
  %v3199 = vpop.f32.mrf.mxu0
  %v3200 = vpop.f32.mrf.mxu0
  %v3201 = vadd.f32 %v2847, %v3200
  %v3202 = vpop.f32.mrf.mxu0
  %3203 = vmatprep.mubr.bf16.mxu0 0
  %3204 = vmatmul.mubr.bf16.gmra.mxu0 %v2863
  %v3205 = vpop.f32.mrf.mxu0
  %v3206 = vadd.f32 %v2847, %v3205
  %v3207 = vpop.f32.mrf.mxu0
  %v3208 = vpop.f32.mrf.mxu0
  %v3209 = vadd.f32 %v2847, %v3208
  %v3210 = vpop.f32.mrf.mxu0
  %3211 = vmatprep.mubr.bf16.mxu0 0
  %3212 = vmatmul.mubr.bf16.gmra.mxu0 %v2866
  %v3213 = vpop.f32.mrf.mxu0
  %v3214 = vadd.f32 %v2847, %v3213
  %v3215 = vpop.f32.mrf.mxu0
  %v3216 = vpop.f32.mrf.mxu0
  %v3217 = vadd.f32 %v2847, %v3216
  %v3218 = vpop.f32.mrf.mxu0
  %3219 = vmatprep.mubr.bf16.mxu0 0
  %3220 = vmatmul.mubr.bf16.gmra.mxu0 %v2869
  %v3221 = vpop.f32.mrf.mxu0
  %v3222 = vadd.f32 %v2847, %v3221
  %v3223 = vpop.f32.mrf.mxu0
  %v3224 = vpop.f32.mrf.mxu0
  %v3225 = vadd.f32 %v2847, %v3224
  %v3226 = vpop.f32.mrf.mxu0
  %3227 = vmatprep.mubr.bf16.mxu0 0
  %3228 = vmatmul.mubr.bf16.gmra.mxu0 %v2872
  %v3229 = vpop.f32.mrf.mxu0
  %v3230 = vadd.f32 %v2847, %v3229
  %v3231 = vpop.f32.mrf.mxu0
  %v3232 = vpop.f32.mrf.mxu0
  %v3233 = vadd.f32 %v2847, %v3232
  %v3234 = vpop.f32.mrf.mxu0
  %3235 = vmatprep.mubr.bf16.mxu0 0
  %3236 = vmatmul.mubr.bf16.gmra.mxu0 %v2875
  %v3237 = vpop.f32.mrf.mxu0
  %v3238 = vadd.f32 %v2847, %v3237
  %v3239 = vpop.f32.mrf.mxu0
  %v3240 = vpop.f32.mrf.mxu0
  %v3241 = vadd.f32 %v2847, %v3240
  %v3242 = vpop.f32.mrf.mxu0
  %3243 = vmatprep.mubr.bf16.mxu0 0
  %3244 = vmatmul.mubr.bf16.gmra.mxu0 %v2878
  %v3245 = vpop.f32.mrf.mxu0
  %v3246 = vadd.f32 %v2847, %v3245
  %v3247 = vpop.f32.mrf.mxu0
  %v3248 = vpop.f32.mrf.mxu0
  %v3249 = vadd.f32 %v2847, %v3248
  %v3250 = vpop.f32.mrf.mxu0
  %3251 = vmatprep.mubr.bf16.mxu0 0
  %3252 = vmatmul.mubr.bf16.gmra.mxu0 %v2881
  %v3253 = vpop.f32.mrf.mxu0
  %v3254 = vadd.f32 %v2847, %v3253
  %v3255 = vpop.f32.mrf.mxu0
  %v3256 = vpop.f32.mrf.mxu0
  %v3257 = vadd.f32 %v2847, %v3256
  %v3258 = vpop.f32.mrf.mxu0
  %3259 = vmatprep.mubr.bf16.mxu0 0
  %3260 = vmatmul.mubr.bf16.gmra.mxu0 %v2884
  %v3261 = vpop.f32.mrf.mxu0
  %v3262 = vadd.f32 %v2847, %v3261
  %v3263 = vpop.f32.mrf.mxu0
  %v3264 = vpop.f32.mrf.mxu0
  %v3265 = vadd.f32 %v2847, %v3264
  %v3266 = vpop.f32.mrf.mxu0
  %3267 = vmatprep.mubr.bf16.mxu0 0
  %3268 = vmatmul.mubr.bf16.gmra.mxu0 %v2887
  %v3269 = vpop.f32.mrf.mxu0
  %v3270 = vadd.f32 %v2847, %v3269
  %v3271 = vpop.f32.mrf.mxu0
  %v3272 = vpop.f32.mrf.mxu0
  %v3273 = vadd.f32 %v2847, %v3272
  %v3274 = vpop.f32.mrf.mxu0
  %3275 = vmatprep.mubr.bf16.mxu0 0
  %3276 = vmatmul.mubr.bf16.gmra.mxu0 %v2890
  %v3277 = vpop.f32.mrf.mxu0
  %v3278 = vadd.f32 %v2847, %v3277
  %v3279 = vpop.f32.mrf.mxu0
  %v3280 = vpop.f32.mrf.mxu0
  %v3281 = vadd.f32 %v2847, %v3280
  %v3282 = vpop.f32.mrf.mxu0
  %3283 = vmatprep.mubr.bf16.mxu0 0
  %3284 = vmatmul.mubr.bf16.gmra.mxu0 %v2893
  %v3285 = vpop.f32.mrf.mxu0
  %v3286 = vadd.f32 %v2847, %v3285
  %v3287 = vpop.f32.mrf.mxu0
  %v3288 = vpop.f32.mrf.mxu0
  %v3289 = vadd.f32 %v2847, %v3288
  %v3290 = vpop.f32.mrf.mxu0
  %3291 = vmatprep.mubr.bf16.mxu0 0
  %3292 = vmatmul.mubr.bf16.gmra.mxu0 %v2896
  %v3293 = vpop.f32.mrf.mxu0
  %v3294 = vadd.f32 %v2847, %v3293
  %v3295 = vpop.f32.mrf.mxu0
  %v3296 = vpop.f32.mrf.mxu0
  %v3297 = vadd.f32 %v2847, %v3296
  %v3298 = vpop.f32.mrf.mxu0
  %3299 = vmatprep.mubr.bf16.mxu0 0
  %3300 = vmatmul.mubr.bf16.gmra.mxu0 %v2899
  %v3301 = vpop.f32.mrf.mxu0
  %v3302 = vadd.f32 %v2847, %v3301
  %v3303 = vpop.f32.mrf.mxu0
  %v3304 = vpop.f32.mrf.mxu0
  %v3305 = vadd.f32 %v2847, %v3304
  %v3306 = vpop.f32.mrf.mxu0
  %3307 = vmatprep.mubr.bf16.mxu0 0
  %3308 = vmatmul.mubr.bf16.gmra.mxu0 %v2902
  %v3309 = vpop.f32.mrf.mxu0
  %v3310 = vadd.f32 %v2847, %v3309
  %v3311 = vpop.f32.mrf.mxu0
  %v3312 = vpop.f32.mrf.mxu0
  %v3313 = vadd.f32 %v2847, %v3312
  %v3314 = vpop.f32.mrf.mxu0
  %3315 = vmatprep.mubr.bf16.mxu0 0
  %3316 = vmatmul.mubr.bf16.gmra.mxu0 %v2905
  %v3317 = vpop.f32.mrf.mxu0
  %v3318 = vadd.f32 %v2847, %v3317
  %v3319 = vpop.f32.mrf.mxu0
  %v3320 = vpop.f32.mrf.mxu0
  %v3321 = vadd.f32 %v2847, %v3320
  %v3322 = vpop.f32.mrf.mxu0
  %3323 = vmatprep.mubr.bf16.mxu0 0
  %3324 = vmatmul.mubr.bf16.gmra.mxu0 %v2908
  %v3325 = vpop.f32.mrf.mxu0
  %v3326 = vadd.f32 %v2847, %v3325
  %v3327 = vpop.f32.mrf.mxu0
  %v3328 = vpop.f32.mrf.mxu0
  %v3329 = vadd.f32 %v2847, %v3328
  %v3330 = vpop.f32.mrf.mxu0
  %3331 = vmatprep.mubr.bf16.mxu0 0
  %3332 = vmatmul.mubr.bf16.gmra.mxu0 %v2911
  %v3333 = vpop.f32.mrf.mxu0
  %v3334 = vadd.f32 %v2847, %v3333
  %v3335 = vpop.f32.mrf.mxu0
  %v3336 = vpop.f32.mrf.mxu0
  %v3337 = vadd.f32 %v2847, %v3336
  %v3338 = vpop.f32.mrf.mxu0
  %3339 = vmatprep.mubr.bf16.mxu0 0
  %3340 = vmatmul.mubr.bf16.gmra.mxu0 %v2914
  %v3341 = vpop.f32.mrf.mxu0
  %v3342 = vadd.f32 %v2847, %v3341
  %v3343 = vpop.f32.mrf.mxu0
  %v3344 = vpop.f32.mrf.mxu0
  %v3345 = vadd.f32 %v2847, %v3344
  %v3346 = vpop.f32.mrf.mxu0
  %3347 = vmatprep.mubr.bf16.mxu0 0
  %3348 = vmatmul.mubr.bf16.gmra.mxu0 %v2917
  %v3349 = vpop.f32.mrf.mxu0
  %v3350 = vadd.f32 %v2847, %v3349
  %v3351 = vpop.f32.mrf.mxu0
  %v3352 = vpop.f32.mrf.mxu0
  %v3353 = vadd.f32 %v2847, %v3352
  %v3354 = vpop.f32.mrf.mxu0
  %3355 = vmatprep.mubr.bf16.mxu0 0
  %3356 = vmatmul.mubr.bf16.gmra.mxu0 %v2920
  %v3357 = vpop.f32.mrf.mxu0
  %v3358 = vadd.f32 %v2847, %v3357
  %v3359 = vpop.f32.mrf.mxu0
  %v3360 = vpop.f32.mrf.mxu0
  %v3361 = vadd.f32 %v2847, %v3360
  %v3362 = vpop.f32.mrf.mxu0
  %3363 = vmatprep.mubr.bf16.mxu0 0
  %3364 = vmatmul.mubr.bf16.gmra.mxu0 %v2923
  %v3365 = vpop.f32.mrf.mxu0
  %v3366 = vadd.f32 %v2847, %v3365
  %v3367 = vpop.f32.mrf.mxu0
  %v3368 = vpop.f32.mrf.mxu0
  %v3369 = vadd.f32 %v2847, %v3368
  %v3370 = vpop.f32.mrf.mxu0
  %3371 = vmatprep.mubr.bf16.mxu0 0
  %3372 = vmatmul.mubr.bf16.gmra.mxu0 %v2926
  %v3373 = vpop.f32.mrf.mxu0
  %v3374 = vadd.f32 %v2847, %v3373
  %v3375 = vpop.f32.mrf.mxu0
  %v3376 = vpop.f32.mrf.mxu0
  %v3377 = vadd.f32 %v2847, %v3376
  %v3378 = vpop.f32.mrf.mxu0
  %3379 = vmatprep.mubr.bf16.mxu0 0
  %3380 = vmatmul.mubr.bf16.gmra.mxu0 %v2929
  %v3381 = vpop.f32.mrf.mxu0
  %v3382 = vadd.f32 %v2847, %v3381
  %v3383 = vpop.f32.mrf.mxu0
  %v3384 = vpop.f32.mrf.mxu0
  %v3385 = vadd.f32 %v2847, %v3384
  %v3386 = vpop.f32.mrf.mxu0
  %3387 = vmatprep.mubr.bf16.mxu0 0
  %3388 = vmatmul.mubr.bf16.gmra.mxu0 %v2932
  %v3389 = vpop.f32.mrf.mxu0
  %v3390 = vadd.f32 %v2847, %v3389
  %v3391 = vpop.f32.mrf.mxu0
  %v3392 = vpop.f32.mrf.mxu0
  %v3393 = vadd.f32 %v2847, %v3392
  %v3394 = vpop.f32.mrf.mxu0
  %3395 = vmatprep.mubr.bf16.mxu0 0
  %3396 = vmatmul.mubr.bf16.gmra.mxu0 %v2935
  %v3397 = vpop.f32.mrf.mxu0
  %v3398 = vadd.f32 %v2847, %v3397
  %v3399 = vpop.f32.mrf.mxu0
  %v3400 = vpop.f32.mrf.mxu0
  %v3401 = vadd.f32 %v2847, %v3400
  %v3402 = vpop.f32.mrf.mxu0
  %3403 = vmatprep.mubr.bf16.mxu0 0
  %3404 = vmatmul.mubr.bf16.gmra.mxu0 %v2938
  %v3405 = vpop.f32.mrf.mxu0
  %v3406 = vadd.f32 %v2847, %v3405
  %v3407 = vpop.f32.mrf.mxu0
  %v3408 = vpop.f32.mrf.mxu0
  %v3409 = vadd.f32 %v2847, %v3408
  %v3410 = vpop.f32.mrf.mxu0
  %3411 = vmatprep.mubr.bf16.mxu0 0
  %3412 = vmatmul.mubr.bf16.gmra.mxu0 %v2941
  %v3413 = vpop.f32.mrf.mxu0
  %v3414 = vadd.f32 %v2847, %v3413
  %v3415 = vpop.f32.mrf.mxu0
  %v3416 = vpop.f32.mrf.mxu0
  %v3417 = vadd.f32 %v2847, %v3416
  %v3418 = vpop.f32.mrf.mxu0
  %3419 = vmatprep.mubr.bf16.mxu0 0
  %3420 = vmatmul.mubr.bf16.gmra.mxu0 %v2944
  %v3421 = vpop.f32.mrf.mxu0
  %v3422 = vadd.f32 %v2847, %v3421
  %v3423 = vpop.f32.mrf.mxu0
  %v3424 = vpop.f32.mrf.mxu0
  %v3425 = vadd.f32 %v2847, %v3424
  %v3426 = vpop.f32.mrf.mxu0
  %3427 = vmatprep.mubr.bf16.mxu0 0
  %3428 = vmatmul.mubr.bf16.gmra.mxu0 %v2947
  %v3429 = vpop.f32.mrf.mxu0
  %v3430 = vadd.f32 %v2847, %v3429
  %v3431 = vpop.f32.mrf.mxu0
  %v3432 = vpop.f32.mrf.mxu0
  %v3433 = vadd.f32 %v2847, %v3432
  %v3434 = vpop.f32.mrf.mxu0
  %3435 = vmatprep.mubr.bf16.mxu0 0
  %3436 = vmatmul.mubr.bf16.gmra.mxu0 %v2950
  %v3437 = vpop.f32.mrf.mxu0
  %v3438 = vadd.f32 %v2847, %v3437
  %v3439 = vpop.f32.mrf.mxu0
  %v3440 = vpop.f32.mrf.mxu0
  %v3441 = vadd.f32 %v2847, %v3440
  %v3442 = vpop.f32.mrf.mxu0
  %3443 = vmatprep.mubr.bf16.mxu0 0
  %3444 = vmatmul.mubr.bf16.gmra.mxu0 %v2953
  %v3445 = vpop.f32.mrf.mxu0
  %v3446 = vadd.f32 %v2847, %v3445
  %v3447 = vpop.f32.mrf.mxu0
  %v3448 = vpop.f32.mrf.mxu0
  %v3449 = vadd.f32 %v2847, %v3448
  %v3450 = vpop.f32.mrf.mxu0
  %3451 = vmatprep.mubr.bf16.mxu0 0
  %3452 = vmatmul.mubr.bf16.gmra.mxu0 %v2956
  %v3453 = vpop.f32.mrf.mxu0
  %v3454 = vadd.f32 %v2847, %v3453
  %v3455 = vpop.f32.mrf.mxu0
  %v3456 = vpop.f32.mrf.mxu0
  %v3457 = vadd.f32 %v2847, %v3456
  %v3458 = vpop.f32.mrf.mxu0
  %3459 = vmatprep.mubr.bf16.mxu0 0
  %3460 = vmatmul.mubr.bf16.gmra.mxu0 %v2959
  %v3461 = vpop.f32.mrf.mxu0
  %v3462 = vadd.f32 %v2847, %v3461
  %v3463 = vpop.f32.mrf.mxu0
  %v3464 = vpop.f32.mrf.mxu0
  %v3465 = vadd.f32 %v2847, %v3464
  %v3466 = vpop.f32.mrf.mxu0
  %3467 = vmatprep.mubr.bf16.mxu0 0
  %3468 = vmatmul.mubr.bf16.gmra.mxu0 %v2962
  %v3469 = vpop.f32.mrf.mxu0
  %v3470 = vadd.f32 %v2847, %v3469
  %v3471 = vpop.f32.mrf.mxu0
  %v3472 = vpop.f32.mrf.mxu0
  %v3473 = vadd.f32 %v2847, %v3472
  %v3474 = vpop.f32.mrf.mxu0
  %3475 = vmatprep.mubr.bf16.mxu0 0
  %3476 = vmatmul.mubr.bf16.gmra.mxu0 %v2965
  %v3477 = vpop.f32.mrf.mxu0
  %v3478 = vadd.f32 %v2847, %v3477
  %v3479 = vpop.f32.mrf.mxu0
  %v3480 = vpop.f32.mrf.mxu0
  %v3481 = vadd.f32 %v2847, %v3480
  %v3482 = vpop.f32.mrf.mxu0
  %3483 = vmatprep.mubr.bf16.mxu0 0
  %3484 = vmatmul.mubr.bf16.gmra.mxu0 %v2968
  %v3485 = vpop.f32.mrf.mxu0
  %v3486 = vadd.f32 %v2847, %v3485
  %v3487 = vpop.f32.mrf.mxu0
  %v3488 = vpop.f32.mrf.mxu0
  %v3489 = vadd.f32 %v2847, %v3488
  %v3490 = vpop.f32.mrf.mxu0
  %3491 = vmatprep.mubr.bf16.mxu0 0
  %3492 = vmatmul.mubr.bf16.gmra.mxu0 %v2971
  %v3493 = vpop.f32.mrf.mxu0
  %v3494 = vadd.f32 %v2847, %v3493
  %v3495 = vpop.f32.mrf.mxu0
  %v3496 = vpop.f32.mrf.mxu0
  %v3497 = vadd.f32 %v2847, %v3496
  %v3498 = vpop.f32.mrf.mxu0
  %3499 = vmatprep.mubr.bf16.mxu0 0
  %3500 = vmatmul.mubr.bf16.gmra.mxu0 %v2974
  %v3501 = vpop.f32.mrf.mxu0
  %v3502 = vadd.f32 %v2847, %v3501
  %v3503 = vpop.f32.mrf.mxu0
  %v3504 = vpop.f32.mrf.mxu0
  %v3505 = vadd.f32 %v2847, %v3504
  %v3506 = vpop.f32.mrf.mxu0
  %3507 = vmatprep.mubr.bf16.mxu0 0
  %3508 = vmatmul.mubr.bf16.gmra.mxu0 %v2977
  %v3509 = vpop.f32.mrf.mxu0
  %v3510 = vadd.f32 %v2847, %v3509
  %v3511 = vpop.f32.mrf.mxu0
  %v3512 = vpop.f32.mrf.mxu0
  %v3513 = vadd.f32 %v2847, %v3512
  %v3514 = vpop.f32.mrf.mxu0
  %3515 = vmatprep.mubr.bf16.mxu0 0
  %3516 = vmatmul.mubr.bf16.gmra.mxu0 %v2980
  %v3517 = vpop.f32.mrf.mxu0
  %v3518 = vadd.f32 %v2847, %v3517
  %v3519 = vpop.f32.mrf.mxu0
  %v3520 = vpop.f32.mrf.mxu0
  %v3521 = vadd.f32 %v2847, %v3520
  %v3522 = vpop.f32.mrf.mxu0
  %3523 = vmatprep.mubr.bf16.mxu0 0
  %3524 = vmatmul.mubr.bf16.gmra.mxu0 %v2983
  %v3525 = vpop.f32.mrf.mxu0
  %v3526 = vadd.f32 %v2847, %v3525
  %v3527 = vpop.f32.mrf.mxu0
  %v3528 = vpop.f32.mrf.mxu0
  %v3529 = vadd.f32 %v2847, %v3528
  %v3530 = vpop.f32.mrf.mxu0
  %3531 = vmatprep.mubr.bf16.mxu0 0
  %3532 = vmatmul.mubr.bf16.gmra.mxu0 %v2986
  %v3533 = vpop.f32.mrf.mxu0
  %v3534 = vadd.f32 %v2847, %v3533
  %v3535 = vpop.f32.mrf.mxu0
  %v3536 = vpop.f32.mrf.mxu0
  %v3537 = vadd.f32 %v2847, %v3536
  %v3538 = vpop.f32.mrf.mxu0
  %3539 = vmatprep.mubr.bf16.mxu0 0
  %3540 = vmatmul.mubr.bf16.gmra.mxu0 %v2989
  %v3541 = vpop.f32.mrf.mxu0
  %v3542 = vadd.f32 %v2847, %v3541
  %v3543 = vpop.f32.mrf.mxu0
  %v3544 = vpop.f32.mrf.mxu0
  %v3545 = vadd.f32 %v2847, %v3544
  %v3546 = vpop.f32.mrf.mxu0
  %3547 = vmatprep.mubr.bf16.mxu0 0
  %3548 = vmatmul.mubr.bf16.gmra.mxu0 %v2992
  %v3549 = vpop.f32.mrf.mxu0
  %v3550 = vadd.f32 %v2847, %v3549
  %v3551 = vpop.f32.mrf.mxu0
  %v3552 = vpop.f32.mrf.mxu0
  %v3553 = vadd.f32 %v2847, %v3552
  %v3554 = vpop.f32.mrf.mxu0
  %3555 = vmatprep.mubr.bf16.mxu0 0
  %3556 = vmatmul.mubr.bf16.gmra.mxu0 %v2995
  %v3557 = vpop.f32.mrf.mxu0
  %v3558 = vadd.f32 %v2847, %v3557
  %v3559 = vpop.f32.mrf.mxu0
  %v3560 = vpop.f32.mrf.mxu0
  %v3561 = vadd.f32 %v2847, %v3560
  %v3562 = vpop.f32.mrf.mxu0
  %3563 = vmatprep.mubr.bf16.mxu0 0
  %3564 = vmatmul.mubr.bf16.gmra.mxu0 %v2998
  %v3565 = vpop.f32.mrf.mxu0
  %v3566 = vadd.f32 %v2847, %v3565
  %v3567 = vpop.f32.mrf.mxu0
  %v3568 = vpop.f32.mrf.mxu0
  %v3569 = vadd.f32 %v2847, %v3568
  %v3570 = vpop.f32.mrf.mxu0
  %3571 = vmatprep.mubr.bf16.mxu0 0
  %3572 = vmatmul.mubr.bf16.gmra.mxu0 %v3001
  %v3573 = vpop.f32.mrf.mxu0
  %v3574 = vadd.f32 %v2847, %v3573
  %v3575 = vpop.f32.mrf.mxu0
  %v3576 = vpop.f32.mrf.mxu0
  %v3577 = vadd.f32 %v2847, %v3576
  %v3578 = vpop.f32.mrf.mxu0
  %3579 = vmatprep.mubr.bf16.mxu0 0
  %3580 = vmatmul.mubr.bf16.gmra.mxu0 %v3004
  %v3581 = vpop.f32.mrf.mxu0
  %v3582 = vadd.f32 %v2847, %v3581
  %v3583 = vpop.f32.mrf.mxu0
  %v3584 = vpop.f32.mrf.mxu0
  %v3585 = vadd.f32 %v2847, %v3584
  %v3586 = vpop.f32.mrf.mxu0
  %3587 = vmatprep.mubr.bf16.mxu0 0
  %3588 = vmatmul.mubr.bf16.gmra.mxu0 %v3007
  %v3589 = vpop.f32.mrf.mxu0
  %v3590 = vadd.f32 %v2847, %v3589
  %v3591 = vpop.f32.mrf.mxu0
  %v3592 = vpop.f32.mrf.mxu0
  %v3593 = vadd.f32 %v2847, %v3592
  %v3594 = vpop.f32.mrf.mxu0
  %3595 = vmatprep.mubr.bf16.mxu0 0
  %3596 = vmatmul.mubr.bf16.gmra.mxu0 %v3010
  %v3597 = vpop.f32.mrf.mxu0
  %v3598 = vadd.f32 %v2847, %v3597
  %v3599 = vpop.f32.mrf.mxu0
  %v3600 = vpop.f32.mrf.mxu0
  %v3601 = vadd.f32 %v2847, %v3600
  %v3602 = vpop.f32.mrf.mxu0
  %3603 = vmatprep.mubr.bf16.mxu0 0
  %3604 = vmatmul.mubr.bf16.gmra.mxu0 %v3013
  %v3605 = vpop.f32.mrf.mxu0
  %v3606 = vadd.f32 %v2847, %v3605
  %v3607 = vpop.f32.mrf.mxu0
  %v3608 = vpop.f32.mrf.mxu0
  %v3609 = vadd.f32 %v2847, %v3608
  %v3610 = vpop.f32.mrf.mxu0
  %3611 = vmatprep.mubr.bf16.mxu0 0
  %3612 = vmatmul.mubr.bf16.gmra.mxu0 %v3016
  %v3613 = vpop.f32.mrf.mxu0
  %v3614 = vadd.f32 %v2847, %v3613
  %v3615 = vpop.f32.mrf.mxu0
  %v3616 = vpop.f32.mrf.mxu0
  %v3617 = vadd.f32 %v2847, %v3616
  %v3618 = vpop.f32.mrf.mxu0
  %3619 = vmatprep.mubr.bf16.mxu0 0
  %3620 = vmatmul.mubr.bf16.gmra.mxu0 %v3019
  %v3621 = vpop.f32.mrf.mxu0
  %v3622 = vadd.f32 %v2847, %v3621
  %v3623 = vpop.f32.mrf.mxu0
  %v3624 = vpop.f32.mrf.mxu0
  %v3625 = vadd.f32 %v2847, %v3624
  %v3626 = vpop.f32.mrf.mxu0
  %3627 = vmatprep.mubr.bf16.mxu0 0
  %3628 = vmatmul.mubr.bf16.gmra.mxu0 %v3022
  %v3629 = vpop.f32.mrf.mxu0
  %v3630 = vadd.f32 %v2847, %v3629
  %v3631 = vpop.f32.mrf.mxu0
  %v3632 = vpop.f32.mrf.mxu0
  %v3633 = vadd.f32 %v2847, %v3632
  %v3634 = vpop.f32.mrf.mxu0
  %3635 = vmatprep.mubr.bf16.mxu0 0
  %3636 = vmatmul.mubr.bf16.gmra.mxu0 %v3025
  %v3637 = vpop.f32.mrf.mxu0
  %v3638 = vadd.f32 %v2847, %v3637
  %v3639 = vpop.f32.mrf.mxu0
  %v3640 = vpop.f32.mrf.mxu0
  %v3641 = vadd.f32 %v2847, %v3640
  %v3642 = vpop.f32.mrf.mxu0
  %3643 = vmatprep.mubr.bf16.mxu0 0
  %3644 = vmatmul.mubr.bf16.gmra.mxu0 %v3028
  %v3645 = vpop.f32.mrf.mxu0
  %v3646 = vadd.f32 %v2847, %v3645
  %v3647 = vpop.f32.mrf.mxu0
  %v3648 = vpop.f32.mrf.mxu0
  %v3649 = vadd.f32 %v2847, %v3648
  %v3650 = vpop.f32.mrf.mxu0
  %3651 = vmatprep.mubr.bf16.mxu0 0
  %3652 = vmatmul.mubr.bf16.gmra.mxu0 %v3031
  %v3653 = vpop.f32.mrf.mxu0
  %v3654 = vadd.f32 %v2847, %v3653
  %v3655 = vpop.f32.mrf.mxu0
  %v3656 = vpop.f32.mrf.mxu0
  %v3657 = vadd.f32 %v2847, %v3656
  %v3658 = vpop.f32.mrf.mxu0
  %3659 = vmatprep.mubr.bf16.mxu0 0
  %3660 = vmatmul.mubr.bf16.gmra.mxu0 %v3034
  %v3661 = vpop.f32.mrf.mxu0
  %v3662 = vadd.f32 %v2847, %v3661
  %v3663 = vpop.f32.mrf.mxu0
  %v3664 = vpop.f32.mrf.mxu0
  %v3665 = vadd.f32 %v2847, %v3664
  %v3666 = vpop.f32.mrf.mxu0
  %3667 = vmatprep.mubr.bf16.mxu0 0
  %3668 = vmatmul.mubr.bf16.gmra.mxu0 %v3037
  %v3669 = vpop.f32.mrf.mxu0
  %v3670 = vadd.f32 %v2847, %v3669
  %v3671 = vpop.f32.mrf.mxu0
  %v3672 = vpop.f32.mrf.mxu0
  %v3673 = vadd.f32 %v2847, %v3672
  %v3674 = vpop.f32.mrf.mxu0
  %3675 = vmatprep.mubr.bf16.mxu0 0
  %3676 = vmatmul.mubr.bf16.gmra.mxu0 %v3040
  %v3677 = vpop.f32.mrf.mxu0
  %v3678 = vadd.f32 %v2847, %v3677
  %v3679 = vpop.f32.mrf.mxu0
  %v3680 = vpop.f32.mrf.mxu0
  %v3681 = vadd.f32 %v2847, %v3680
  %v3682 = vpop.f32.mrf.mxu0
  %3683 = vmatprep.mubr.bf16.mxu0 0
  %3684 = vmatmul.mubr.bf16.gmra.mxu0 %v3043
  %v3685 = vpop.f32.mrf.mxu0
  %v3686 = vadd.f32 %v2847, %v3685
  %v3687 = vpop.f32.mrf.mxu0
  %v3688 = vpop.f32.mrf.mxu0
  %v3689 = vadd.f32 %v2847, %v3688
  %v3690 = vpop.f32.mrf.mxu0
  %3691 = vmatprep.mubr.bf16.mxu0 0
  %3692 = vmatmul.mubr.bf16.gmra.mxu0 %v3046
  %v3693 = vpop.f32.mrf.mxu0
  %v3694 = vadd.f32 %v2847, %v3693
  %v3695 = vpop.f32.mrf.mxu0
  %v3696 = vpop.f32.mrf.mxu0
  %v3697 = vadd.f32 %v2847, %v3696
  %v3698 = vpop.f32.mrf.mxu0
  %3699 = vmatprep.mubr.bf16.mxu0 0
  %3700 = vmatmul.mubr.bf16.gmra.mxu0 %v3049
  %v3701 = vpop.f32.mrf.mxu0
  %v3702 = vadd.f32 %v2847, %v3701
  %v3703 = vpop.f32.mrf.mxu0
  %v3704 = vpop.f32.mrf.mxu0
  %v3705 = vadd.f32 %v2847, %v3704
  %v3706 = vpop.f32.mrf.mxu0
  %3707 = vmatprep.mubr.bf16.mxu0 0
  %3708 = vmatmul.mubr.bf16.gmra.mxu0 %v3052
  %v3709 = vpop.f32.mrf.mxu0
  %v3710 = vadd.f32 %v2847, %v3709
  %v3711 = vpop.f32.mrf.mxu0
  %v3712 = vpop.f32.mrf.mxu0
  %v3713 = vadd.f32 %v2847, %v3712
  %v3714 = vpop.f32.mrf.mxu0
  %3715 = vmatprep.mubr.bf16.mxu0 0
  %3716 = vmatmul.mubr.bf16.gmra.mxu0 %v3055
  %v3717 = vpop.f32.mrf.mxu0
  %v3718 = vadd.f32 %v2847, %v3717
  %v3719 = vpop.f32.mrf.mxu0
  %v3720 = vpop.f32.mrf.mxu0
  %v3721 = vadd.f32 %v2847, %v3720
  %v3722 = vpop.f32.mrf.mxu0
  %3723 = vmatprep.mubr.bf16.mxu0 0
  %3724 = vmatmul.mubr.bf16.gmra.mxu0 %v3058
  %v3725 = vpop.f32.mrf.mxu0
  %v3726 = vadd.f32 %v2847, %v3725
  %v3727 = vpop.f32.mrf.mxu0
  %v3728 = vpop.f32.mrf.mxu0
  %v3729 = vadd.f32 %v2847, %v3728
  %v3730 = vpop.f32.mrf.mxu0
  %3731 = vmatprep.mubr.bf16.mxu0 0
  %3732 = vmatmul.mubr.bf16.gmra.mxu0 %v3061
  %v3733 = vpop.f32.mrf.mxu0
  %v3734 = vadd.f32 %v2847, %v3733
  %v3735 = vpop.f32.mrf.mxu0
  %v3736 = vpop.f32.mrf.mxu0
  %v3737 = vadd.f32 %v2847, %v3736
  %v3738 = vpop.f32.mrf.mxu0
  %3739 = vmatprep.mubr.bf16.mxu0 0
  %3740 = vmatmul.mubr.bf16.gmra.mxu0 %v3064
  %v3741 = vpop.f32.mrf.mxu0
  %v3742 = vadd.f32 %v2847, %v3741
  %v3743 = vpop.f32.mrf.mxu0
  %v3744 = vpop.f32.mrf.mxu0
  %v3745 = vadd.f32 %v2847, %v3744
  %v3746 = vpop.f32.mrf.mxu0
  %3747 = vmatprep.mubr.bf16.mxu0 0
  %3748 = vmatmul.mubr.bf16.gmra.mxu0 %v3067
  %v3749 = vpop.f32.mrf.mxu0
  %v3750 = vadd.f32 %v2847, %v3749
  %v3751 = vpop.f32.mrf.mxu0
  %v3752 = vpop.f32.mrf.mxu0
  %v3753 = vadd.f32 %v2847, %v3752
  %v3754 = vpop.f32.mrf.mxu0
  %3755 = vmatprep.mubr.bf16.mxu0 0
  %3756 = vmatmul.mubr.bf16.gmra.mxu0 %v3070
  %v3757 = vpop.f32.mrf.mxu0
  %v3758 = vadd.f32 %v2847, %v3757
  %v3759 = vpop.f32.mrf.mxu0
  %v3760 = vpop.f32.mrf.mxu0
  %v3761 = vadd.f32 %v2847, %v3760
  %v3762 = vpop.f32.mrf.mxu0
  %3763 = vmatprep.mubr.bf16.mxu0 0
  %3764 = vmatmul.mubr.bf16.gmra.mxu0 %v3073
  %v3765 = vpop.f32.mrf.mxu0
  %v3766 = vadd.f32 %v2847, %v3765
  %v3767 = vpop.f32.mrf.mxu0
  %v3768 = vpop.f32.mrf.mxu0
  %v3769 = vadd.f32 %v2847, %v3768
  %v3770 = vpop.f32.mrf.mxu0
  %3771 = vmatprep.mubr.bf16.mxu0 0
  %3772 = vmatmul.mubr.bf16.gmra.mxu0 %v3076
  %v3773 = vpop.f32.mrf.mxu0
  %v3774 = vadd.f32 %v2847, %v3773
  %v3775 = vpop.f32.mrf.mxu0
  %v3776 = vpop.f32.mrf.mxu0
  %v3777 = vadd.f32 %v2847, %v3776
  %v3778 = vpop.f32.mrf.mxu0
  %3779 = vmatprep.mubr.bf16.mxu0 0
  %3780 = vmatmul.mubr.bf16.gmra.mxu0 %v3079
  %v3781 = vpop.f32.mrf.mxu0
  %v3782 = vadd.f32 %v2847, %v3781
  %v3783 = vpop.f32.mrf.mxu0
  %v3784 = vpop.f32.mrf.mxu0
  %v3785 = vadd.f32 %v2847, %v3784
  %v3786 = vpop.f32.mrf.mxu0
  %3787 = vmatprep.mubr.bf16.mxu0 0
  %3788 = vmatmul.mubr.bf16.gmra.mxu0 %v3082
  %v3789 = vpop.f32.mrf.mxu0
  %v3790 = vadd.f32 %v2847, %v3789
  %v3791 = vpop.f32.mrf.mxu0
  %v3792 = vpop.f32.mrf.mxu0
  %v3793 = vadd.f32 %v2847, %v3792
  %v3794 = vpop.f32.mrf.mxu0
  %3795 = vmatprep.mubr.bf16.mxu0 0
  %3796 = vmatmul.mubr.bf16.gmra.mxu0 %v3085
  %v3797 = vpop.f32.mrf.mxu0
  %v3798 = vadd.f32 %v2847, %v3797
  %v3799 = vpop.f32.mrf.mxu0
  %v3800 = vpop.f32.mrf.mxu0
  %v3801 = vadd.f32 %v2847, %v3800
  %v3802 = vpop.f32.mrf.mxu0
  %3803 = vmatprep.mubr.bf16.mxu0 0
  %3804 = vmatmul.mubr.bf16.gmra.mxu0 %v3088
  %v3805 = vpop.f32.mrf.mxu0
  %v3806 = vadd.f32 %v2847, %v3805
  %v3807 = vpop.f32.mrf.mxu0
  %v3808 = vpop.f32.mrf.mxu0
  %v3809 = vadd.f32 %v2847, %v3808
  %v3810 = vpop.f32.mrf.mxu0
  %3811 = vmatprep.mubr.bf16.mxu0 0
  %3812 = vmatmul.mubr.bf16.gmra.mxu0 %v3091
  %v3813 = vpop.f32.mrf.mxu0
  %v3814 = vadd.f32 %v2847, %v3813
  %v3815 = vpop.f32.mrf.mxu0
  %v3816 = vpop.f32.mrf.mxu0
  %v3817 = vadd.f32 %v2847, %v3816
  %v3818 = vpop.f32.mrf.mxu0
  %3819 = vmatprep.mubr.bf16.mxu0 0
  %3820 = vmatmul.mubr.bf16.gmra.mxu0 %v3094
  %v3821 = vpop.f32.mrf.mxu0
  %v3822 = vadd.f32 %v2847, %v3821
  %v3823 = vpop.f32.mrf.mxu0
  %v3824 = vpop.f32.mrf.mxu0
  %v3825 = vadd.f32 %v2847, %v3824
  %v3826 = vpop.f32.mrf.mxu0
  %3827 = vmatprep.mubr.bf16.mxu0 0
  %3828 = vmatmul.mubr.bf16.gmra.mxu0 %v3097
  %v3829 = vpop.f32.mrf.mxu0
  %v3830 = vadd.f32 %v2847, %v3829
  %v3831 = vpop.f32.mrf.mxu0
  %v3832 = vpop.f32.mrf.mxu0
  %v3833 = vadd.f32 %v2847, %v3832
  %v3834 = vpop.f32.mrf.mxu0
  %3835 = vmatprep.mubr.bf16.mxu0 0
  %3836 = vmatmul.mubr.bf16.gmra.mxu0 %v3100
  %v3837 = vpop.f32.mrf.mxu0
  %v3838 = vadd.f32 %v2847, %v3837
  %v3839 = vpop.f32.mrf.mxu0
  %v3840 = vpop.f32.mrf.mxu0
  %v3841 = vadd.f32 %v2847, %v3840
  %v3842 = vpop.f32.mrf.mxu0
  %3843 = vmatprep.mubr.bf16.mxu0 0
  %3844 = vmatmul.mubr.bf16.gmra.mxu0 %v3103
  %v3845 = vpop.f32.mrf.mxu0
  %v3846 = vadd.f32 %v2847, %v3845
  %v3847 = vpop.f32.mrf.mxu0
  %v3848 = vpop.f32.mrf.mxu0
  %v3849 = vadd.f32 %v2847, %v3848
  %v3850 = vpop.f32.mrf.mxu0
  %3851 = vmatprep.mubr.bf16.mxu0 0
  %3852 = vmatmul.mubr.bf16.gmra.mxu0 %v3106
  %v3853 = vpop.f32.mrf.mxu0
  %v3854 = vadd.f32 %v2847, %v3853
  %v3855 = vpop.f32.mrf.mxu0
  %v3856 = vpop.f32.mrf.mxu0
  %v3857 = vadd.f32 %v2847, %v3856
  %v3858 = vpop.f32.mrf.mxu0
  %3859 = vmatprep.mubr.bf16.mxu0 0
  %3860 = vmatmul.mubr.bf16.gmra.mxu0 %v3109
  %v3861 = vpop.f32.mrf.mxu0
  %v3862 = vadd.f32 %v2847, %v3861
  %v3863 = vpop.f32.mrf.mxu0
  %v3864 = vpop.f32.mrf.mxu0
  %v3865 = vadd.f32 %v2847, %v3864
  %v3866 = vpop.f32.mrf.mxu0
  %3867 = vmatprep.mubr.bf16.mxu0 0
  %3868 = vmatmul.mubr.bf16.gmra.mxu0 %v3112
  %v3869 = vpop.f32.mrf.mxu0
  %v3870 = vadd.f32 %v2847, %v3869
  %v3871 = vpop.f32.mrf.mxu0
  %v3872 = vpop.f32.mrf.mxu0
  %v3873 = vadd.f32 %v2847, %v3872
  %v3874 = vpop.f32.mrf.mxu0
  %3875 = vmatprep.mubr.bf16.mxu0 0
  %3876 = vmatmul.mubr.bf16.gmra.mxu0 %v3115
  %v3877 = vpop.f32.mrf.mxu0
  %v3878 = vadd.f32 %v2847, %v3877
  %v3879 = vpop.f32.mrf.mxu0
  %v3880 = vpop.f32.mrf.mxu0
  %v3881 = vadd.f32 %v2847, %v3880
  %v3882 = vpop.f32.mrf.mxu0
  %3883 = vmatprep.mubr.bf16.mxu0 0
  %3884 = vmatmul.mubr.bf16.gmra.mxu0 %v3118
  %v3885 = vpop.f32.mrf.mxu0
  %v3886 = vadd.f32 %v2847, %v3885
  %v3887 = vpop.f32.mrf.mxu0
  %v3888 = vpop.f32.mrf.mxu0
  %v3889 = vadd.f32 %v2847, %v3888
  %v3890 = vpop.f32.mrf.mxu0
  %3891 = vmatprep.mubr.bf16.mxu0 0
  %3892 = vmatmul.mubr.bf16.gmra.mxu0 %v3121
  %v3893 = vpop.f32.mrf.mxu0
  %v3894 = vadd.f32 %v2847, %v3893
  %v3895 = vpop.f32.mrf.mxu0
  %v3896 = vpop.f32.mrf.mxu0
  %v3897 = vadd.f32 %v2847, %v3896
  %v3898 = vpop.f32.mrf.mxu0
  %3899 = vmatprep.mubr.bf16.mxu0 0
  %3900 = vmatmul.mubr.bf16.gmra.mxu0 %v3124
  %v3901 = vpop.f32.mrf.mxu0
  %v3902 = vadd.f32 %v2847, %v3901
  %v3903 = vpop.f32.mrf.mxu0
  %v3904 = vpop.f32.mrf.mxu0
  %v3905 = vadd.f32 %v2847, %v3904
  %v3906 = vpop.f32.mrf.mxu0
  %3907 = vmatprep.mubr.bf16.mxu0 0
  %3908 = vmatmul.mubr.bf16.gmra.mxu0 %v3127
  %v3909 = vpop.f32.mrf.mxu0
  %v3910 = vadd.f32 %v2847, %v3909
  %v3911 = vpop.f32.mrf.mxu0
  %v3912 = vpop.f32.mrf.mxu0
  %v3913 = vadd.f32 %v2847, %v3912
  %v3914 = vpop.f32.mrf.mxu0
  %3915 = vmatprep.mubr.bf16.mxu0 0
  %3916 = vmatmul.mubr.bf16.gmra.mxu0 %v3130
  %v3917 = vpop.f32.mrf.mxu0
  %v3918 = vadd.f32 %v2847, %v3917
  %v3919 = vpop.f32.mrf.mxu0
  %v3920 = vpop.f32.mrf.mxu0
  %v3921 = vadd.f32 %v2847, %v3920
  %v3922 = vpop.f32.mrf.mxu0
  %3923 = vmatprep.mubr.bf16.mxu0 0
  %3924 = vmatmul.mubr.bf16.gmra.mxu0 %v3133
  %v3925 = vpop.f32.mrf.mxu0
  %v3926 = vadd.f32 %v2847, %v3925
  %v3927 = vpop.f32.mrf.mxu0
  %v3928 = vpop.f32.mrf.mxu0
  %v3929 = vadd.f32 %v2847, %v3928
  %v3930 = vpop.f32.mrf.mxu0
  %3931 = vmatprep.mubr.bf16.mxu0 0
  %3932 = vmatmul.mubr.bf16.gmra.mxu0 %v3136
  %v3933 = vpop.f32.mrf.mxu0
  %v3934 = vadd.f32 %v2847, %v3933
  %v3935 = vpop.f32.mrf.mxu0
  %v3936 = vpop.f32.mrf.mxu0
  %v3937 = vadd.f32 %v2847, %v3936
  %v3938 = vpop.f32.mrf.mxu0
  %3939 = vmatprep.mubr.bf16.mxu0 0
  %3940 = vmatmul.mubr.bf16.gmra.mxu0 %v3139
  %v3941 = vpop.f32.mrf.mxu0
  %v3942 = vadd.f32 %v2847, %v3941
  %v3943 = vpop.f32.mrf.mxu0
  %v3944 = vpop.f32.mrf.mxu0
  %v3945 = vadd.f32 %v2847, %v3944
  %v3946 = vpop.f32.mrf.mxu0
  %3947 = vmatprep.mubr.bf16.mxu0 0
  %3948 = vmatmul.mubr.bf16.gmra.mxu0 %v3142
  %v3949 = vpop.f32.mrf.mxu0
  %v3950 = vadd.f32 %v2847, %v3949
  %v3951 = vpop.f32.mrf.mxu0
  %v3952 = vpop.f32.mrf.mxu0
  %v3953 = vadd.f32 %v2847, %v3952
  %v3954 = vpop.f32.mrf.mxu0
  %3955 = vmatprep.mubr.bf16.mxu0 0
  %3956 = vmatmul.mubr.bf16.gmra.mxu0 %v3145
  %v3957 = vpop.f32.mrf.mxu0
  %v3958 = vadd.f32 %v2847, %v3957
  %v3959 = vpop.f32.mrf.mxu0
  %v3960 = vpop.f32.mrf.mxu0
  %v3961 = vadd.f32 %v2847, %v3960
  %v3962 = vpop.f32.mrf.mxu0
  %3963 = vmatprep.mubr.bf16.mxu0 0
  %3964 = vmatmul.mubr.bf16.gmra.mxu0 %v3148
  %v3965 = vpop.f32.mrf.mxu0
  %v3966 = vadd.f32 %v2847, %v3965
  %v3967 = vpop.f32.mrf.mxu0
  %v3968 = vpop.f32.mrf.mxu0
  %v3969 = vadd.f32 %v2847, %v3968
  %v3970 = vpop.f32.mrf.mxu0
  %3971 = vmatprep.mubr.bf16.mxu0 0
  %3972 = vmatmul.mubr.bf16.gmra.mxu0 %v3151
  %v3973 = vpop.f32.mrf.mxu0
  %v3974 = vadd.f32 %v2847, %v3973
  %v3975 = vpop.f32.mrf.mxu0
  %v3976 = vpop.f32.mrf.mxu0
  %v3977 = vadd.f32 %v2847, %v3976
  %v3978 = vpop.f32.mrf.mxu0
  %3979 = vmatprep.mubr.bf16.mxu0 0
  %3980 = vmatmul.mubr.bf16.gmra.mxu0 %v3154
  %v3981 = vpop.f32.mrf.mxu0
  %v3982 = vadd.f32 %v2847, %v3981
  %v3983 = vpop.f32.mrf.mxu0
  %v3984 = vpop.f32.mrf.mxu0
  %v3985 = vadd.f32 %v2847, %v3984
  %v3986 = vpop.f32.mrf.mxu0
  %3987 = vmatprep.mubr.bf16.mxu0 0
  %3988 = vmatmul.mubr.bf16.gmra.mxu0 %v3157
  %v3989 = vpop.f32.mrf.mxu0
  %v3990 = vadd.f32 %v2847, %v3989
  %v3991 = vpop.f32.mrf.mxu0
  %v3992 = vpop.f32.mrf.mxu0
  %v3993 = vadd.f32 %v2847, %v3992
  %v3994 = vpop.f32.mrf.mxu0
  %3995 = vdwg.mxu0
  %v3996 = vsub.f32 0.0, %v3198
  %v3997 = vsub.f32 0.0, %v3201
  %v3998 = vsub.f32 0.0, %v3206
  %v3999 = vsub.f32 0.0, %v3209
  %v4000 = vsub.f32 0.0, %v3214
  %v4001 = vsub.f32 0.0, %v3217
  %v4002 = vsub.f32 0.0, %v3222
  %v4003 = vsub.f32 0.0, %v3225
  %v4004 = vsub.f32 0.0, %v3230
  %v4005 = vsub.f32 0.0, %v3233
  %v4006 = vsub.f32 0.0, %v3238
  %v4007 = vsub.f32 0.0, %v3241
  %v4008 = vsub.f32 0.0, %v3246
  %v4009 = vsub.f32 0.0, %v3249
  %v4010 = vsub.f32 0.0, %v3254
  %v4011 = vsub.f32 0.0, %v3257
  %v4012 = vsub.f32 0.0, %v3262
  %v4013 = vsub.f32 0.0, %v3265
  %v4014 = vsub.f32 0.0, %v3270
  %v4015 = vsub.f32 0.0, %v3273
  %v4016 = vsub.f32 0.0, %v3278
  %v4017 = vsub.f32 0.0, %v3281
  %v4018 = vsub.f32 0.0, %v3286
  %v4019 = vsub.f32 0.0, %v3289
  %v4020 = vsub.f32 0.0, %v3294
  %v4021 = vsub.f32 0.0, %v3297
  %v4022 = vsub.f32 0.0, %v3302
  %v4023 = vsub.f32 0.0, %v3305
  %v4024 = vsub.f32 0.0, %v3310
  %v4025 = vsub.f32 0.0, %v3313
  %v4026 = vsub.f32 0.0, %v3318
  %v4027 = vsub.f32 0.0, %v3321
  %v4028 = vsub.f32 0.0, %v3326
  %v4029 = vsub.f32 0.0, %v3329
  %v4030 = vsub.f32 0.0, %v3334
  %v4031 = vsub.f32 0.0, %v3337
  %v4032 = vsub.f32 0.0, %v3342
  %v4033 = vsub.f32 0.0, %v3345
  %v4034 = vsub.f32 0.0, %v3350
  %v4035 = vsub.f32 0.0, %v3353
  %v4036 = vsub.f32 0.0, %v3358
  %v4037 = vsub.f32 0.0, %v3361
  %v4038 = vsub.f32 0.0, %v3366
  %v4039 = vsub.f32 0.0, %v3369
  %v4040 = vsub.f32 0.0, %v3374
  %v4041 = vsub.f32 0.0, %v3377
  %v4042 = vsub.f32 0.0, %v3382
  %v4043 = vsub.f32 0.0, %v3385
  %v4044 = vsub.f32 0.0, %v3390
  %v4045 = vsub.f32 0.0, %v3393
  %v4046 = vsub.f32 0.0, %v3398
  %v4047 = vsub.f32 0.0, %v3401
  %v4048 = vsub.f32 0.0, %v3406
  %v4049 = vsub.f32 0.0, %v3409
  %v4050 = vsub.f32 0.0, %v3414
  %v4051 = vsub.f32 0.0, %v3417
  %v4052 = vsub.f32 0.0, %v3422
  %v4053 = vsub.f32 0.0, %v3425
  %v4054 = vsub.f32 0.0, %v3430
  %v4055 = vsub.f32 0.0, %v3433
  %v4056 = vsub.f32 0.0, %v3438
  %v4057 = vsub.f32 0.0, %v3441
  %v4058 = vsub.f32 0.0, %v3446
  %v4059 = vsub.f32 0.0, %v3449
  %v4060 = vsub.f32 0.0, %v3454
  %v4061 = vsub.f32 0.0, %v3457
  %v4062 = vsub.f32 0.0, %v3462
  %v4063 = vsub.f32 0.0, %v3465
  %v4064 = vsub.f32 0.0, %v3470
  %v4065 = vsub.f32 0.0, %v3473
  %v4066 = vsub.f32 0.0, %v3478
  %v4067 = vsub.f32 0.0, %v3481
  %v4068 = vsub.f32 0.0, %v3486
  %v4069 = vsub.f32 0.0, %v3489
  %v4070 = vsub.f32 0.0, %v3494
  %v4071 = vsub.f32 0.0, %v3497
  %v4072 = vsub.f32 0.0, %v3502
  %v4073 = vsub.f32 0.0, %v3505
  %v4074 = vsub.f32 0.0, %v3510
  %v4075 = vsub.f32 0.0, %v3513
  %v4076 = vsub.f32 0.0, %v3518
  %v4077 = vsub.f32 0.0, %v3521
  %v4078 = vsub.f32 0.0, %v3526
  %v4079 = vsub.f32 0.0, %v3529
  %v4080 = vsub.f32 0.0, %v3534
  %v4081 = vsub.f32 0.0, %v3537
  %v4082 = vsub.f32 0.0, %v3542
  %v4083 = vsub.f32 0.0, %v3545
  %v4084 = vsub.f32 0.0, %v3550
  %v4085 = vsub.f32 0.0, %v3553
  %v4086 = vsub.f32 0.0, %v3558
  %v4087 = vsub.f32 0.0, %v3561
  %v4088 = vsub.f32 0.0, %v3566
  %v4089 = vsub.f32 0.0, %v3569
  %v4090 = vsub.f32 0.0, %v3574
  %v4091 = vsub.f32 0.0, %v3577
  %v4092 = vsub.f32 0.0, %v3582
  %v4093 = vsub.f32 0.0, %v3585
  %v4094 = vsub.f32 0.0, %v3590
  %v4095 = vsub.f32 0.0, %v3593
  %v4096 = vsub.f32 0.0, %v3598
  %v4097 = vsub.f32 0.0, %v3601
  %v4098 = vsub.f32 0.0, %v3606
  %v4099 = vsub.f32 0.0, %v3609
  %v4100 = vsub.f32 0.0, %v3614
  %v4101 = vsub.f32 0.0, %v3617
  %v4102 = vsub.f32 0.0, %v3622
  %v4103 = vsub.f32 0.0, %v3625
  %v4104 = vsub.f32 0.0, %v3630
  %v4105 = vsub.f32 0.0, %v3633
  %v4106 = vsub.f32 0.0, %v3638
  %v4107 = vsub.f32 0.0, %v3641
  %v4108 = vsub.f32 0.0, %v3646
  %v4109 = vsub.f32 0.0, %v3649
  %v4110 = vsub.f32 0.0, %v3654
  %v4111 = vsub.f32 0.0, %v3657
  %v4112 = vsub.f32 0.0, %v3662
  %v4113 = vsub.f32 0.0, %v3665
  %v4114 = vsub.f32 0.0, %v3670
  %v4115 = vsub.f32 0.0, %v3673
  %v4116 = vsub.f32 0.0, %v3678
  %v4117 = vsub.f32 0.0, %v3681
  %v4118 = vsub.f32 0.0, %v3686
  %v4119 = vsub.f32 0.0, %v3689
  %v4120 = vsub.f32 0.0, %v3694
  %v4121 = vsub.f32 0.0, %v3697
  %v4122 = vsub.f32 0.0, %v3702
  %v4123 = vsub.f32 0.0, %v3705
  %v4124 = vsub.f32 0.0, %v3710
  %v4125 = vsub.f32 0.0, %v3713
  %v4126 = vsub.f32 0.0, %v3718
  %v4127 = vsub.f32 0.0, %v3721
  %v4128 = vsub.f32 0.0, %v3726
  %v4129 = vsub.f32 0.0, %v3729
  %v4130 = vsub.f32 0.0, %v3734
  %v4131 = vsub.f32 0.0, %v3737
  %v4132 = vsub.f32 0.0, %v3742
  %v4133 = vsub.f32 0.0, %v3745
  %v4134 = vsub.f32 0.0, %v3750
  %v4135 = vsub.f32 0.0, %v3753
  %v4136 = vsub.f32 0.0, %v3758
  %v4137 = vsub.f32 0.0, %v3761
  %v4138 = vsub.f32 0.0, %v3766
  %v4139 = vsub.f32 0.0, %v3769
  %v4140 = vsub.f32 0.0, %v3774
  %v4141 = vsub.f32 0.0, %v3777
  %v4142 = vsub.f32 0.0, %v3782
  %v4143 = vsub.f32 0.0, %v3785
  %v4144 = vsub.f32 0.0, %v3790
  %v4145 = vsub.f32 0.0, %v3793
  %v4146 = vsub.f32 0.0, %v3798
  %v4147 = vsub.f32 0.0, %v3801
  %v4148 = vsub.f32 0.0, %v3806
  %v4149 = vsub.f32 0.0, %v3809
  %v4150 = vsub.f32 0.0, %v3814
  %v4151 = vsub.f32 0.0, %v3817
  %v4152 = vsub.f32 0.0, %v3822
  %v4153 = vsub.f32 0.0, %v3825
  %v4154 = vsub.f32 0.0, %v3830
  %v4155 = vsub.f32 0.0, %v3833
  %v4156 = vsub.f32 0.0, %v3838
  %v4157 = vsub.f32 0.0, %v3841
  %v4158 = vsub.f32 0.0, %v3846
  %v4159 = vsub.f32 0.0, %v3849
  %v4160 = vsub.f32 0.0, %v3854
  %v4161 = vsub.f32 0.0, %v3857
  %v4162 = vsub.f32 0.0, %v3862
  %v4163 = vsub.f32 0.0, %v3865
  %v4164 = vsub.f32 0.0, %v3870
  %v4165 = vsub.f32 0.0, %v3873
  %v4166 = vsub.f32 0.0, %v3878
  %v4167 = vsub.f32 0.0, %v3881
  %v4168 = vsub.f32 0.0, %v3886
  %v4169 = vsub.f32 0.0, %v3889
  %v4170 = vsub.f32 0.0, %v3894
  %v4171 = vsub.f32 0.0, %v3897
  %v4172 = vsub.f32 0.0, %v3902
  %v4173 = vsub.f32 0.0, %v3905
  %v4174 = vsub.f32 0.0, %v3910
  %v4175 = vsub.f32 0.0, %v3913
  %v4176 = vsub.f32 0.0, %v3918
  %v4177 = vsub.f32 0.0, %v3921
  %v4178 = vsub.f32 0.0, %v3926
  %v4179 = vsub.f32 0.0, %v3929
  %v4180 = vsub.f32 0.0, %v3934
  %v4181 = vsub.f32 0.0, %v3937
  %v4182 = vsub.f32 0.0, %v3942
  %v4183 = vsub.f32 0.0, %v3945
  %v4184 = vsub.f32 0.0, %v3950
  %v4185 = vsub.f32 0.0, %v3953
  %v4186 = vsub.f32 0.0, %v3958
  %v4187 = vsub.f32 0.0, %v3961
  %v4188 = vsub.f32 0.0, %v3966
  %v4189 = vsub.f32 0.0, %v3969
  %v4190 = vsub.f32 0.0, %v3974
  %v4191 = vsub.f32 0.0, %v3977
  %v4192 = vsub.f32 0.0, %v3982
  %v4193 = vsub.f32 0.0, %v3985
  %v4194 = vsub.f32 0.0, %v3990
  %v4195 = vsub.f32 0.0, %v3993
  %v4196 = vmul.f32 %v3996, 1.442695
  %v4197 = vpow.pop %v4196
  %v4198 = vmul.f32 %v3997, 1.442695
  %v4199 = vpow.pop %v4198
  %v4200 = vmul.f32 %v3998, 1.442695
  %v4201 = vpow.pop %v4200
  %v4202 = vmul.f32 %v3999, 1.442695
  %v4203 = vpow.pop %v4202
  %v4204 = vmul.f32 %v4000, 1.442695
  %v4205 = vpow.pop %v4204
  %v4206 = vmul.f32 %v4001, 1.442695
  %v4207 = vpow.pop %v4206
  %v4208 = vmul.f32 %v4002, 1.442695
  %v4209 = vpow.pop %v4208
  %v4210 = vmul.f32 %v4003, 1.442695
  %v4211 = vpow.pop %v4210
  %v4212 = vmul.f32 %v4004, 1.442695
  %v4213 = vpow.pop %v4212
  %v4214 = vmul.f32 %v4005, 1.442695
  %v4215 = vpow.pop %v4214
  %v4216 = vmul.f32 %v4006, 1.442695
  %v4217 = vpow.pop %v4216
  %v4218 = vmul.f32 %v4007, 1.442695
  %v4219 = vpow.pop %v4218
  %v4220 = vmul.f32 %v4008, 1.442695
  %v4221 = vpow.pop %v4220
  %v4222 = vmul.f32 %v4009, 1.442695
  %v4223 = vpow.pop %v4222
  %v4224 = vmul.f32 %v4010, 1.442695
  %v4225 = vpow.pop %v4224
  %v4226 = vmul.f32 %v4011, 1.442695
  %v4227 = vpow.pop %v4226
  %v4228 = vmul.f32 %v4012, 1.442695
  %v4229 = vpow.pop %v4228
  %v4230 = vmul.f32 %v4013, 1.442695
  %v4231 = vpow.pop %v4230
  %v4232 = vmul.f32 %v4014, 1.442695
  %v4233 = vpow.pop %v4232
  %v4234 = vmul.f32 %v4015, 1.442695
  %v4235 = vpow.pop %v4234
  %v4236 = vmul.f32 %v4016, 1.442695
  %v4237 = vpow.pop %v4236
  %v4238 = vmul.f32 %v4017, 1.442695
  %v4239 = vpow.pop %v4238
  %v4240 = vmul.f32 %v4018, 1.442695
  %v4241 = vpow.pop %v4240
  %v4242 = vmul.f32 %v4019, 1.442695
  %v4243 = vpow.pop %v4242
  %v4244 = vmul.f32 %v4020, 1.442695
  %v4245 = vpow.pop %v4244
  %v4246 = vmul.f32 %v4021, 1.442695
  %v4247 = vpow.pop %v4246
  %v4248 = vmul.f32 %v4022, 1.442695
  %v4249 = vpow.pop %v4248
  %v4250 = vmul.f32 %v4023, 1.442695
  %v4251 = vpow.pop %v4250
  %v4252 = vmul.f32 %v4024, 1.442695
  %v4253 = vpow.pop %v4252
  %v4254 = vmul.f32 %v4025, 1.442695
  %v4255 = vpow.pop %v4254
  %v4256 = vmul.f32 %v4026, 1.442695
  %v4257 = vpow.pop %v4256
  %v4258 = vmul.f32 %v4027, 1.442695
  %v4259 = vpow.pop %v4258
  %v4260 = vmul.f32 %v4028, 1.442695
  %v4261 = vpow.pop %v4260
  %v4262 = vmul.f32 %v4029, 1.442695
  %v4263 = vpow.pop %v4262
  %v4264 = vmul.f32 %v4030, 1.442695
  %v4265 = vpow.pop %v4264
  %v4266 = vmul.f32 %v4031, 1.442695
  %v4267 = vpow.pop %v4266
  %v4268 = vmul.f32 %v4032, 1.442695
  %v4269 = vpow.pop %v4268
  %v4270 = vmul.f32 %v4033, 1.442695
  %v4271 = vpow.pop %v4270
  %v4272 = vmul.f32 %v4034, 1.442695
  %v4273 = vpow.pop %v4272
  %v4274 = vmul.f32 %v4035, 1.442695
  %v4275 = vpow.pop %v4274
  %v4276 = vmul.f32 %v4036, 1.442695
  %v4277 = vpow.pop %v4276
  %v4278 = vmul.f32 %v4037, 1.442695
  %v4279 = vpow.pop %v4278
  %v4280 = vmul.f32 %v4038, 1.442695
  %v4281 = vpow.pop %v4280
  %v4282 = vmul.f32 %v4039, 1.442695
  %v4283 = vpow.pop %v4282
  %v4284 = vmul.f32 %v4040, 1.442695
  %v4285 = vpow.pop %v4284
  %v4286 = vmul.f32 %v4041, 1.442695
  %v4287 = vpow.pop %v4286
  %v4288 = vmul.f32 %v4042, 1.442695
  %v4289 = vpow.pop %v4288
  %v4290 = vmul.f32 %v4043, 1.442695
  %v4291 = vpow.pop %v4290
  %v4292 = vmul.f32 %v4044, 1.442695
  %v4293 = vpow.pop %v4292
  %v4294 = vmul.f32 %v4045, 1.442695
  %v4295 = vpow.pop %v4294
  %v4296 = vmul.f32 %v4046, 1.442695
  %v4297 = vpow.pop %v4296
  %v4298 = vmul.f32 %v4047, 1.442695
  %v4299 = vpow.pop %v4298
  %v4300 = vmul.f32 %v4048, 1.442695
  %v4301 = vpow.pop %v4300
  %v4302 = vmul.f32 %v4049, 1.442695
  %v4303 = vpow.pop %v4302
  %v4304 = vmul.f32 %v4050, 1.442695
  %v4305 = vpow.pop %v4304
  %v4306 = vmul.f32 %v4051, 1.442695
  %v4307 = vpow.pop %v4306
  %v4308 = vmul.f32 %v4052, 1.442695
  %v4309 = vpow.pop %v4308
  %v4310 = vmul.f32 %v4053, 1.442695
  %v4311 = vpow.pop %v4310
  %v4312 = vmul.f32 %v4054, 1.442695
  %v4313 = vpow.pop %v4312
  %v4314 = vmul.f32 %v4055, 1.442695
  %v4315 = vpow.pop %v4314
  %v4316 = vmul.f32 %v4056, 1.442695
  %v4317 = vpow.pop %v4316
  %v4318 = vmul.f32 %v4057, 1.442695
  %v4319 = vpow.pop %v4318
  %v4320 = vmul.f32 %v4058, 1.442695
  %v4321 = vpow.pop %v4320
  %v4322 = vmul.f32 %v4059, 1.442695
  %v4323 = vpow.pop %v4322
  %v4324 = vmul.f32 %v4060, 1.442695
  %v4325 = vpow.pop %v4324
  %v4326 = vmul.f32 %v4061, 1.442695
  %v4327 = vpow.pop %v4326
  %v4328 = vmul.f32 %v4062, 1.442695
  %v4329 = vpow.pop %v4328
  %v4330 = vmul.f32 %v4063, 1.442695
  %v4331 = vpow.pop %v4330
  %v4332 = vmul.f32 %v4064, 1.442695
  %v4333 = vpow.pop %v4332
  %v4334 = vmul.f32 %v4065, 1.442695
  %v4335 = vpow.pop %v4334
  %v4336 = vmul.f32 %v4066, 1.442695
  %v4337 = vpow.pop %v4336
  %v4338 = vmul.f32 %v4067, 1.442695
  %v4339 = vpow.pop %v4338
  %v4340 = vmul.f32 %v4068, 1.442695
  %v4341 = vpow.pop %v4340
  %v4342 = vmul.f32 %v4069, 1.442695
  %v4343 = vpow.pop %v4342
  %v4344 = vmul.f32 %v4070, 1.442695
  %v4345 = vpow.pop %v4344
  %v4346 = vmul.f32 %v4071, 1.442695
  %v4347 = vpow.pop %v4346
  %v4348 = vmul.f32 %v4072, 1.442695
  %v4349 = vpow.pop %v4348
  %v4350 = vmul.f32 %v4073, 1.442695
  %v4351 = vpow.pop %v4350
  %v4352 = vmul.f32 %v4074, 1.442695
  %v4353 = vpow.pop %v4352
  %v4354 = vmul.f32 %v4075, 1.442695
  %v4355 = vpow.pop %v4354
  %v4356 = vmul.f32 %v4076, 1.442695
  %v4357 = vpow.pop %v4356
  %v4358 = vmul.f32 %v4077, 1.442695
  %v4359 = vpow.pop %v4358
  %v4360 = vmul.f32 %v4078, 1.442695
  %v4361 = vpow.pop %v4360
  %v4362 = vmul.f32 %v4079, 1.442695
  %v4363 = vpow.pop %v4362
  %v4364 = vmul.f32 %v4080, 1.442695
  %v4365 = vpow.pop %v4364
  %v4366 = vmul.f32 %v4081, 1.442695
  %v4367 = vpow.pop %v4366
  %v4368 = vmul.f32 %v4082, 1.442695
  %v4369 = vpow.pop %v4368
  %v4370 = vmul.f32 %v4083, 1.442695
  %v4371 = vpow.pop %v4370
  %v4372 = vmul.f32 %v4084, 1.442695
  %v4373 = vpow.pop %v4372
  %v4374 = vmul.f32 %v4085, 1.442695
  %v4375 = vpow.pop %v4374
  %v4376 = vmul.f32 %v4086, 1.442695
  %v4377 = vpow.pop %v4376
  %v4378 = vmul.f32 %v4087, 1.442695
  %v4379 = vpow.pop %v4378
  %v4380 = vmul.f32 %v4088, 1.442695
  %v4381 = vpow.pop %v4380
  %v4382 = vmul.f32 %v4089, 1.442695
  %v4383 = vpow.pop %v4382
  %v4384 = vmul.f32 %v4090, 1.442695
  %v4385 = vpow.pop %v4384
  %v4386 = vmul.f32 %v4091, 1.442695
  %v4387 = vpow.pop %v4386
  %v4388 = vmul.f32 %v4092, 1.442695
  %v4389 = vpow.pop %v4388
  %v4390 = vmul.f32 %v4093, 1.442695
  %v4391 = vpow.pop %v4390
  %v4392 = vmul.f32 %v4094, 1.442695
  %v4393 = vpow.pop %v4392
  %v4394 = vmul.f32 %v4095, 1.442695
  %v4395 = vpow.pop %v4394
  %v4396 = vmul.f32 %v4096, 1.442695
  %v4397 = vpow.pop %v4396
  %v4398 = vmul.f32 %v4097, 1.442695
  %v4399 = vpow.pop %v4398
  %v4400 = vmul.f32 %v4098, 1.442695
  %v4401 = vpow.pop %v4400
  %v4402 = vmul.f32 %v4099, 1.442695
  %v4403 = vpow.pop %v4402
  %v4404 = vmul.f32 %v4100, 1.442695
  %v4405 = vpow.pop %v4404
  %v4406 = vmul.f32 %v4101, 1.442695
  %v4407 = vpow.pop %v4406
  %v4408 = vmul.f32 %v4102, 1.442695
  %v4409 = vpow.pop %v4408
  %v4410 = vmul.f32 %v4103, 1.442695
  %v4411 = vpow.pop %v4410
  %v4412 = vmul.f32 %v4104, 1.442695
  %v4413 = vpow.pop %v4412
  %v4414 = vmul.f32 %v4105, 1.442695
  %v4415 = vpow.pop %v4414
  %v4416 = vmul.f32 %v4106, 1.442695
  %v4417 = vpow.pop %v4416
  %v4418 = vmul.f32 %v4107, 1.442695
  %v4419 = vpow.pop %v4418
  %v4420 = vmul.f32 %v4108, 1.442695
  %v4421 = vpow.pop %v4420
  %v4422 = vmul.f32 %v4109, 1.442695
  %v4423 = vpow.pop %v4422
  %v4424 = vmul.f32 %v4110, 1.442695
  %v4425 = vpow.pop %v4424
  %v4426 = vmul.f32 %v4111, 1.442695
  %v4427 = vpow.pop %v4426
  %v4428 = vmul.f32 %v4112, 1.442695
  %v4429 = vpow.pop %v4428
  %v4430 = vmul.f32 %v4113, 1.442695
  %v4431 = vpow.pop %v4430
  %v4432 = vmul.f32 %v4114, 1.442695
  %v4433 = vpow.pop %v4432
  %v4434 = vmul.f32 %v4115, 1.442695
  %v4435 = vpow.pop %v4434
  %v4436 = vmul.f32 %v4116, 1.442695
  %v4437 = vpow.pop %v4436
  %v4438 = vmul.f32 %v4117, 1.442695
  %v4439 = vpow.pop %v4438
  %v4440 = vmul.f32 %v4118, 1.442695
  %v4441 = vpow.pop %v4440
  %v4442 = vmul.f32 %v4119, 1.442695
  %v4443 = vpow.pop %v4442
  %v4444 = vmul.f32 %v4120, 1.442695
  %v4445 = vpow.pop %v4444
  %v4446 = vmul.f32 %v4121, 1.442695
  %v4447 = vpow.pop %v4446
  %v4448 = vmul.f32 %v4122, 1.442695
  %v4449 = vpow.pop %v4448
  %v4450 = vmul.f32 %v4123, 1.442695
  %v4451 = vpow.pop %v4450
  %v4452 = vmul.f32 %v4124, 1.442695
  %v4453 = vpow.pop %v4452
  %v4454 = vmul.f32 %v4125, 1.442695
  %v4455 = vpow.pop %v4454
  %v4456 = vmul.f32 %v4126, 1.442695
  %v4457 = vpow.pop %v4456
  %v4458 = vmul.f32 %v4127, 1.442695
  %v4459 = vpow.pop %v4458
  %v4460 = vmul.f32 %v4128, 1.442695
  %v4461 = vpow.pop %v4460
  %v4462 = vmul.f32 %v4129, 1.442695
  %v4463 = vpow.pop %v4462
  %v4464 = vmul.f32 %v4130, 1.442695
  %v4465 = vpow.pop %v4464
  %v4466 = vmul.f32 %v4131, 1.442695
  %v4467 = vpow.pop %v4466
  %v4468 = vmul.f32 %v4132, 1.442695
  %v4469 = vpow.pop %v4468
  %v4470 = vmul.f32 %v4133, 1.442695
  %v4471 = vpow.pop %v4470
  %v4472 = vmul.f32 %v4134, 1.442695
  %v4473 = vpow.pop %v4472
  %v4474 = vmul.f32 %v4135, 1.442695
  %v4475 = vpow.pop %v4474
  %v4476 = vmul.f32 %v4136, 1.442695
  %v4477 = vpow.pop %v4476
  %v4478 = vmul.f32 %v4137, 1.442695
  %v4479 = vpow.pop %v4478
  %v4480 = vmul.f32 %v4138, 1.442695
  %v4481 = vpow.pop %v4480
  %v4482 = vmul.f32 %v4139, 1.442695
  %v4483 = vpow.pop %v4482
  %v4484 = vmul.f32 %v4140, 1.442695
  %v4485 = vpow.pop %v4484
  %v4486 = vmul.f32 %v4141, 1.442695
  %v4487 = vpow.pop %v4486
  %v4488 = vmul.f32 %v4142, 1.442695
  %v4489 = vpow.pop %v4488
  %v4490 = vmul.f32 %v4143, 1.442695
  %v4491 = vpow.pop %v4490
  %v4492 = vmul.f32 %v4144, 1.442695
  %v4493 = vpow.pop %v4492
  %v4494 = vmul.f32 %v4145, 1.442695
  %v4495 = vpow.pop %v4494
  %v4496 = vmul.f32 %v4146, 1.442695
  %v4497 = vpow.pop %v4496
  %v4498 = vmul.f32 %v4147, 1.442695
  %v4499 = vpow.pop %v4498
  %v4500 = vmul.f32 %v4148, 1.442695
  %v4501 = vpow.pop %v4500
  %v4502 = vmul.f32 %v4149, 1.442695
  %v4503 = vpow.pop %v4502
  %v4504 = vmul.f32 %v4150, 1.442695
  %v4505 = vpow.pop %v4504
  %v4506 = vmul.f32 %v4151, 1.442695
  %v4507 = vpow.pop %v4506
  %v4508 = vmul.f32 %v4152, 1.442695
  %v4509 = vpow.pop %v4508
  %v4510 = vmul.f32 %v4153, 1.442695
  %v4511 = vpow.pop %v4510
  %v4512 = vmul.f32 %v4154, 1.442695
  %v4513 = vpow.pop %v4512
  %v4514 = vmul.f32 %v4155, 1.442695
  %v4515 = vpow.pop %v4514
  %v4516 = vmul.f32 %v4156, 1.442695
  %v4517 = vpow.pop %v4516
  %v4518 = vmul.f32 %v4157, 1.442695
  %v4519 = vpow.pop %v4518
  %v4520 = vmul.f32 %v4158, 1.442695
  %v4521 = vpow.pop %v4520
  %v4522 = vmul.f32 %v4159, 1.442695
  %v4523 = vpow.pop %v4522
  %v4524 = vmul.f32 %v4160, 1.442695
  %v4525 = vpow.pop %v4524
  %v4526 = vmul.f32 %v4161, 1.442695
  %v4527 = vpow.pop %v4526
  %v4528 = vmul.f32 %v4162, 1.442695
  %v4529 = vpow.pop %v4528
  %v4530 = vmul.f32 %v4163, 1.442695
  %v4531 = vpow.pop %v4530
  %v4532 = vmul.f32 %v4164, 1.442695
  %v4533 = vpow.pop %v4532
  %v4534 = vmul.f32 %v4165, 1.442695
  %v4535 = vpow.pop %v4534
  %v4536 = vmul.f32 %v4166, 1.442695
  %v4537 = vpow.pop %v4536
  %v4538 = vmul.f32 %v4167, 1.442695
  %v4539 = vpow.pop %v4538
  %v4540 = vmul.f32 %v4168, 1.442695
  %v4541 = vpow.pop %v4540
  %v4542 = vmul.f32 %v4169, 1.442695
  %v4543 = vpow.pop %v4542
  %v4544 = vmul.f32 %v4170, 1.442695
  %v4545 = vpow.pop %v4544
  %v4546 = vmul.f32 %v4171, 1.442695
  %v4547 = vpow.pop %v4546
  %v4548 = vmul.f32 %v4172, 1.442695
  %v4549 = vpow.pop %v4548
  %v4550 = vmul.f32 %v4173, 1.442695
  %v4551 = vpow.pop %v4550
  %v4552 = vmul.f32 %v4174, 1.442695
  %v4553 = vpow.pop %v4552
  %v4554 = vmul.f32 %v4175, 1.442695
  %v4555 = vpow.pop %v4554
  %v4556 = vmul.f32 %v4176, 1.442695
  %v4557 = vpow.pop %v4556
  %v4558 = vmul.f32 %v4177, 1.442695
  %v4559 = vpow.pop %v4558
  %v4560 = vmul.f32 %v4178, 1.442695
  %v4561 = vpow.pop %v4560
  %v4562 = vmul.f32 %v4179, 1.442695
  %v4563 = vpow.pop %v4562
  %v4564 = vmul.f32 %v4180, 1.442695
  %v4565 = vpow.pop %v4564
  %v4566 = vmul.f32 %v4181, 1.442695
  %v4567 = vpow.pop %v4566
  %v4568 = vmul.f32 %v4182, 1.442695
  %v4569 = vpow.pop %v4568
  %v4570 = vmul.f32 %v4183, 1.442695
  %v4571 = vpow.pop %v4570
  %v4572 = vmul.f32 %v4184, 1.442695
  %v4573 = vpow.pop %v4572
  %v4574 = vmul.f32 %v4185, 1.442695
  %v4575 = vpow.pop %v4574
  %v4576 = vmul.f32 %v4186, 1.442695
  %v4577 = vpow.pop %v4576
  %v4578 = vmul.f32 %v4187, 1.442695
  %v4579 = vpow.pop %v4578
  %v4580 = vmul.f32 %v4188, 1.442695
  %v4581 = vpow.pop %v4580
  %v4582 = vmul.f32 %v4189, 1.442695
  %v4583 = vpow.pop %v4582
  %v4584 = vmul.f32 %v4190, 1.442695
  %v4585 = vpow.pop %v4584
  %v4586 = vmul.f32 %v4191, 1.442695
  %v4587 = vpow.pop %v4586
  %v4588 = vmul.f32 %v4192, 1.442695
  %v4589 = vpow.pop %v4588
  %v4590 = vmul.f32 %v4193, 1.442695
  %v4591 = vpow.pop %v4590
  %v4592 = vmul.f32 %v4194, 1.442695
  %v4593 = vpow.pop %v4592
  %v4594 = vmul.f32 %v4195, 1.442695
  %v4595 = vpow.pop %v4594
  %v4596 = vadd.f32 %v4197, 1.0
  %v4597 = vadd.f32 %v4199, 1.0
  %v4598 = vadd.f32 %v4201, 1.0
  %v4599 = vadd.f32 %v4203, 1.0
  %v4600 = vadd.f32 %v4205, 1.0
  %v4601 = vadd.f32 %v4207, 1.0
  %v4602 = vadd.f32 %v4209, 1.0
  %v4603 = vadd.f32 %v4211, 1.0
  %v4604 = vadd.f32 %v4213, 1.0
  %v4605 = vadd.f32 %v4215, 1.0
  %v4606 = vadd.f32 %v4217, 1.0
  %v4607 = vadd.f32 %v4219, 1.0
  %v4608 = vadd.f32 %v4221, 1.0
  %v4609 = vadd.f32 %v4223, 1.0
  %v4610 = vadd.f32 %v4225, 1.0
  %v4611 = vadd.f32 %v4227, 1.0
  %v4612 = vadd.f32 %v4229, 1.0
  %v4613 = vadd.f32 %v4231, 1.0
  %v4614 = vadd.f32 %v4233, 1.0
  %v4615 = vadd.f32 %v4235, 1.0
  %v4616 = vadd.f32 %v4237, 1.0
  %v4617 = vadd.f32 %v4239, 1.0
  %v4618 = vadd.f32 %v4241, 1.0
  %v4619 = vadd.f32 %v4243, 1.0
  %v4620 = vadd.f32 %v4245, 1.0
  %v4621 = vadd.f32 %v4247, 1.0
  %v4622 = vadd.f32 %v4249, 1.0
  %v4623 = vadd.f32 %v4251, 1.0
  %v4624 = vadd.f32 %v4253, 1.0
  %v4625 = vadd.f32 %v4255, 1.0
  %v4626 = vadd.f32 %v4257, 1.0
  %v4627 = vadd.f32 %v4259, 1.0
  %v4628 = vadd.f32 %v4261, 1.0
  %v4629 = vadd.f32 %v4263, 1.0
  %v4630 = vadd.f32 %v4265, 1.0
  %v4631 = vadd.f32 %v4267, 1.0
  %v4632 = vadd.f32 %v4269, 1.0
  %v4633 = vadd.f32 %v4271, 1.0
  %v4634 = vadd.f32 %v4273, 1.0
  %v4635 = vadd.f32 %v4275, 1.0
  %v4636 = vadd.f32 %v4277, 1.0
  %v4637 = vadd.f32 %v4279, 1.0
  %v4638 = vadd.f32 %v4281, 1.0
  %v4639 = vadd.f32 %v4283, 1.0
  %v4640 = vadd.f32 %v4285, 1.0
  %v4641 = vadd.f32 %v4287, 1.0
  %v4642 = vadd.f32 %v4289, 1.0
  %v4643 = vadd.f32 %v4291, 1.0
  %v4644 = vadd.f32 %v4293, 1.0
  %v4645 = vadd.f32 %v4295, 1.0
  %v4646 = vadd.f32 %v4297, 1.0
  %v4647 = vadd.f32 %v4299, 1.0
  %v4648 = vadd.f32 %v4301, 1.0
  %v4649 = vadd.f32 %v4303, 1.0
  %v4650 = vadd.f32 %v4305, 1.0
  %v4651 = vadd.f32 %v4307, 1.0
  %v4652 = vadd.f32 %v4309, 1.0
  %v4653 = vadd.f32 %v4311, 1.0
  %v4654 = vadd.f32 %v4313, 1.0
  %v4655 = vadd.f32 %v4315, 1.0
  %v4656 = vadd.f32 %v4317, 1.0
  %v4657 = vadd.f32 %v4319, 1.0
  %v4658 = vadd.f32 %v4321, 1.0
  %v4659 = vadd.f32 %v4323, 1.0
  %v4660 = vadd.f32 %v4325, 1.0
  %v4661 = vadd.f32 %v4327, 1.0
  %v4662 = vadd.f32 %v4329, 1.0
  %v4663 = vadd.f32 %v4331, 1.0
  %v4664 = vadd.f32 %v4333, 1.0
  %v4665 = vadd.f32 %v4335, 1.0
  %v4666 = vadd.f32 %v4337, 1.0
  %v4667 = vadd.f32 %v4339, 1.0
  %v4668 = vadd.f32 %v4341, 1.0
  %v4669 = vadd.f32 %v4343, 1.0
  %v4670 = vadd.f32 %v4345, 1.0
  %v4671 = vadd.f32 %v4347, 1.0
  %v4672 = vadd.f32 %v4349, 1.0
  %v4673 = vadd.f32 %v4351, 1.0
  %v4674 = vadd.f32 %v4353, 1.0
  %v4675 = vadd.f32 %v4355, 1.0
  %v4676 = vadd.f32 %v4357, 1.0
  %v4677 = vadd.f32 %v4359, 1.0
  %v4678 = vadd.f32 %v4361, 1.0
  %v4679 = vadd.f32 %v4363, 1.0
  %v4680 = vadd.f32 %v4365, 1.0
  %v4681 = vadd.f32 %v4367, 1.0
  %v4682 = vadd.f32 %v4369, 1.0
  %v4683 = vadd.f32 %v4371, 1.0
  %v4684 = vadd.f32 %v4373, 1.0
  %v4685 = vadd.f32 %v4375, 1.0
  %v4686 = vadd.f32 %v4377, 1.0
  %v4687 = vadd.f32 %v4379, 1.0
  %v4688 = vadd.f32 %v4381, 1.0
  %v4689 = vadd.f32 %v4383, 1.0
  %v4690 = vadd.f32 %v4385, 1.0
  %v4691 = vadd.f32 %v4387, 1.0
  %v4692 = vadd.f32 %v4389, 1.0
  %v4693 = vadd.f32 %v4391, 1.0
  %v4694 = vadd.f32 %v4393, 1.0
  %v4695 = vadd.f32 %v4395, 1.0
  %v4696 = vadd.f32 %v4397, 1.0
  %v4697 = vadd.f32 %v4399, 1.0
  %v4698 = vadd.f32 %v4401, 1.0
  %v4699 = vadd.f32 %v4403, 1.0
  %v4700 = vadd.f32 %v4405, 1.0
  %v4701 = vadd.f32 %v4407, 1.0
  %v4702 = vadd.f32 %v4409, 1.0
  %v4703 = vadd.f32 %v4411, 1.0
  %v4704 = vadd.f32 %v4413, 1.0
  %v4705 = vadd.f32 %v4415, 1.0
  %v4706 = vadd.f32 %v4417, 1.0
  %v4707 = vadd.f32 %v4419, 1.0
  %v4708 = vadd.f32 %v4421, 1.0
  %v4709 = vadd.f32 %v4423, 1.0
  %v4710 = vadd.f32 %v4425, 1.0
  %v4711 = vadd.f32 %v4427, 1.0
  %v4712 = vadd.f32 %v4429, 1.0
  %v4713 = vadd.f32 %v4431, 1.0
  %v4714 = vadd.f32 %v4433, 1.0
  %v4715 = vadd.f32 %v4435, 1.0
  %v4716 = vadd.f32 %v4437, 1.0
  %v4717 = vadd.f32 %v4439, 1.0
  %v4718 = vadd.f32 %v4441, 1.0
  %v4719 = vadd.f32 %v4443, 1.0
  %v4720 = vadd.f32 %v4445, 1.0
  %v4721 = vadd.f32 %v4447, 1.0
  %v4722 = vadd.f32 %v4449, 1.0
  %v4723 = vadd.f32 %v4451, 1.0
  %v4724 = vadd.f32 %v4453, 1.0
  %v4725 = vadd.f32 %v4455, 1.0
  %v4726 = vadd.f32 %v4457, 1.0
  %v4727 = vadd.f32 %v4459, 1.0
  %v4728 = vadd.f32 %v4461, 1.0
  %v4729 = vadd.f32 %v4463, 1.0
  %v4730 = vadd.f32 %v4465, 1.0
  %v4731 = vadd.f32 %v4467, 1.0
  %v4732 = vadd.f32 %v4469, 1.0
  %v4733 = vadd.f32 %v4471, 1.0
  %v4734 = vadd.f32 %v4473, 1.0
  %v4735 = vadd.f32 %v4475, 1.0
  %v4736 = vadd.f32 %v4477, 1.0
  %v4737 = vadd.f32 %v4479, 1.0
  %v4738 = vadd.f32 %v4481, 1.0
  %v4739 = vadd.f32 %v4483, 1.0
  %v4740 = vadd.f32 %v4485, 1.0
  %v4741 = vadd.f32 %v4487, 1.0
  %v4742 = vadd.f32 %v4489, 1.0
  %v4743 = vadd.f32 %v4491, 1.0
  %v4744 = vadd.f32 %v4493, 1.0
  %v4745 = vadd.f32 %v4495, 1.0
  %v4746 = vadd.f32 %v4497, 1.0
  %v4747 = vadd.f32 %v4499, 1.0
  %v4748 = vadd.f32 %v4501, 1.0
  %v4749 = vadd.f32 %v4503, 1.0
  %v4750 = vadd.f32 %v4505, 1.0
  %v4751 = vadd.f32 %v4507, 1.0
  %v4752 = vadd.f32 %v4509, 1.0
  %v4753 = vadd.f32 %v4511, 1.0
  %v4754 = vadd.f32 %v4513, 1.0
  %v4755 = vadd.f32 %v4515, 1.0
  %v4756 = vadd.f32 %v4517, 1.0
  %v4757 = vadd.f32 %v4519, 1.0
  %v4758 = vadd.f32 %v4521, 1.0
  %v4759 = vadd.f32 %v4523, 1.0
  %v4760 = vadd.f32 %v4525, 1.0
  %v4761 = vadd.f32 %v4527, 1.0
  %v4762 = vadd.f32 %v4529, 1.0
  %v4763 = vadd.f32 %v4531, 1.0
  %v4764 = vadd.f32 %v4533, 1.0
  %v4765 = vadd.f32 %v4535, 1.0
  %v4766 = vadd.f32 %v4537, 1.0
  %v4767 = vadd.f32 %v4539, 1.0
  %v4768 = vadd.f32 %v4541, 1.0
  %v4769 = vadd.f32 %v4543, 1.0
  %v4770 = vadd.f32 %v4545, 1.0
  %v4771 = vadd.f32 %v4547, 1.0
  %v4772 = vadd.f32 %v4549, 1.0
  %v4773 = vadd.f32 %v4551, 1.0
  %v4774 = vadd.f32 %v4553, 1.0
  %v4775 = vadd.f32 %v4555, 1.0
  %v4776 = vadd.f32 %v4557, 1.0
  %v4777 = vadd.f32 %v4559, 1.0
  %v4778 = vadd.f32 %v4561, 1.0
  %v4779 = vadd.f32 %v4563, 1.0
  %v4780 = vadd.f32 %v4565, 1.0
  %v4781 = vadd.f32 %v4567, 1.0
  %v4782 = vadd.f32 %v4569, 1.0
  %v4783 = vadd.f32 %v4571, 1.0
  %v4784 = vadd.f32 %v4573, 1.0
  %v4785 = vadd.f32 %v4575, 1.0
  %v4786 = vadd.f32 %v4577, 1.0
  %v4787 = vadd.f32 %v4579, 1.0
  %v4788 = vadd.f32 %v4581, 1.0
  %v4789 = vadd.f32 %v4583, 1.0
  %v4790 = vadd.f32 %v4585, 1.0
  %v4791 = vadd.f32 %v4587, 1.0
  %v4792 = vadd.f32 %v4589, 1.0
  %v4793 = vadd.f32 %v4591, 1.0
  %v4794 = vadd.f32 %v4593, 1.0
  %v4795 = vadd.f32 %v4595, 1.0
  %v4796 = vrcp.pop %v4596
  %v4797 = vrcp.pop %v4597
  %v4798 = vrcp.pop %v4598
  %v4799 = vrcp.pop %v4599
  %v4800 = vrcp.pop %v4600
  %v4801 = vrcp.pop %v4601
  %v4802 = vrcp.pop %v4602
  %v4803 = vrcp.pop %v4603
  %v4804 = vrcp.pop %v4604
  %v4805 = vrcp.pop %v4605
  %v4806 = vrcp.pop %v4606
  %v4807 = vrcp.pop %v4607
  %v4808 = vrcp.pop %v4608
  %v4809 = vrcp.pop %v4609
  %v4810 = vrcp.pop %v4610
  %v4811 = vrcp.pop %v4611
  %v4812 = vrcp.pop %v4612
  %v4813 = vrcp.pop %v4613
  %v4814 = vrcp.pop %v4614
  %v4815 = vrcp.pop %v4615
  %v4816 = vrcp.pop %v4616
  %v4817 = vrcp.pop %v4617
  %v4818 = vrcp.pop %v4618
  %v4819 = vrcp.pop %v4619
  %v4820 = vrcp.pop %v4620
  %v4821 = vrcp.pop %v4621
  %v4822 = vrcp.pop %v4622
  %v4823 = vrcp.pop %v4623
  %v4824 = vrcp.pop %v4624
  %v4825 = vrcp.pop %v4625
  %v4826 = vrcp.pop %v4626
  %v4827 = vrcp.pop %v4627
  %v4828 = vrcp.pop %v4628
  %v4829 = vrcp.pop %v4629
  %v4830 = vrcp.pop %v4630
  %v4831 = vrcp.pop %v4631
  %v4832 = vrcp.pop %v4632
  %v4833 = vrcp.pop %v4633
  %v4834 = vrcp.pop %v4634
  %v4835 = vrcp.pop %v4635
  %v4836 = vrcp.pop %v4636
  %v4837 = vrcp.pop %v4637
  %v4838 = vrcp.pop %v4638
  %v4839 = vrcp.pop %v4639
  %v4840 = vrcp.pop %v4640
  %v4841 = vrcp.pop %v4641
  %v4842 = vrcp.pop %v4642
  %v4843 = vrcp.pop %v4643
  %v4844 = vrcp.pop %v4644
  %v4845 = vrcp.pop %v4645
  %v4846 = vrcp.pop %v4646
  %v4847 = vrcp.pop %v4647
  %v4848 = vrcp.pop %v4648
  %v4849 = vrcp.pop %v4649
  %v4850 = vrcp.pop %v4650
  %v4851 = vrcp.pop %v4651
  %v4852 = vrcp.pop %v4652
  %v4853 = vrcp.pop %v4653
  %v4854 = vrcp.pop %v4654
  %v4855 = vrcp.pop %v4655
  %v4856 = vrcp.pop %v4656
  %v4857 = vrcp.pop %v4657
  %v4858 = vrcp.pop %v4658
  %v4859 = vrcp.pop %v4659
  %v4860 = vrcp.pop %v4660
  %v4861 = vrcp.pop %v4661
  %v4862 = vrcp.pop %v4662
  %v4863 = vrcp.pop %v4663
  %v4864 = vrcp.pop %v4664
  %v4865 = vrcp.pop %v4665
  %v4866 = vrcp.pop %v4666
  %v4867 = vrcp.pop %v4667
  %v4868 = vrcp.pop %v4668
  %v4869 = vrcp.pop %v4669
  %v4870 = vrcp.pop %v4670
  %v4871 = vrcp.pop %v4671
  %v4872 = vrcp.pop %v4672
  %v4873 = vrcp.pop %v4673
  %v4874 = vrcp.pop %v4674
  %v4875 = vrcp.pop %v4675
  %v4876 = vrcp.pop %v4676
  %v4877 = vrcp.pop %v4677
  %v4878 = vrcp.pop %v4678
  %v4879 = vrcp.pop %v4679
  %v4880 = vrcp.pop %v4680
  %v4881 = vrcp.pop %v4681
  %v4882 = vrcp.pop %v4682
  %v4883 = vrcp.pop %v4683
  %v4884 = vrcp.pop %v4684
  %v4885 = vrcp.pop %v4685
  %v4886 = vrcp.pop %v4686
  %v4887 = vrcp.pop %v4687
  %v4888 = vrcp.pop %v4688
  %v4889 = vrcp.pop %v4689
  %v4890 = vrcp.pop %v4690
  %v4891 = vrcp.pop %v4691
  %v4892 = vrcp.pop %v4692
  %v4893 = vrcp.pop %v4693
  %v4894 = vrcp.pop %v4694
  %v4895 = vrcp.pop %v4695
  %v4896 = vrcp.pop %v4696
  %v4897 = vrcp.pop %v4697
  %v4898 = vrcp.pop %v4698
  %v4899 = vrcp.pop %v4699
  %v4900 = vrcp.pop %v4700
  %v4901 = vrcp.pop %v4701
  %v4902 = vrcp.pop %v4702
  %v4903 = vrcp.pop %v4703
  %v4904 = vrcp.pop %v4704
  %v4905 = vrcp.pop %v4705
  %v4906 = vrcp.pop %v4706
  %v4907 = vrcp.pop %v4707
  %v4908 = vrcp.pop %v4708
  %v4909 = vrcp.pop %v4709
  %v4910 = vrcp.pop %v4710
  %v4911 = vrcp.pop %v4711
  %v4912 = vrcp.pop %v4712
  %v4913 = vrcp.pop %v4713
  %v4914 = vrcp.pop %v4714
  %v4915 = vrcp.pop %v4715
  %v4916 = vrcp.pop %v4716
  %v4917 = vrcp.pop %v4717
  %v4918 = vrcp.pop %v4718
  %v4919 = vrcp.pop %v4719
  %v4920 = vrcp.pop %v4720
  %v4921 = vrcp.pop %v4721
  %v4922 = vrcp.pop %v4722
  %v4923 = vrcp.pop %v4723
  %v4924 = vrcp.pop %v4724
  %v4925 = vrcp.pop %v4725
  %v4926 = vrcp.pop %v4726
  %v4927 = vrcp.pop %v4727
  %v4928 = vrcp.pop %v4728
  %v4929 = vrcp.pop %v4729
  %v4930 = vrcp.pop %v4730
  %v4931 = vrcp.pop %v4731
  %v4932 = vrcp.pop %v4732
  %v4933 = vrcp.pop %v4733
  %v4934 = vrcp.pop %v4734
  %v4935 = vrcp.pop %v4735
  %v4936 = vrcp.pop %v4736
  %v4937 = vrcp.pop %v4737
  %v4938 = vrcp.pop %v4738
  %v4939 = vrcp.pop %v4739
  %v4940 = vrcp.pop %v4740
  %v4941 = vrcp.pop %v4741
  %v4942 = vrcp.pop %v4742
  %v4943 = vrcp.pop %v4743
  %v4944 = vrcp.pop %v4744
  %v4945 = vrcp.pop %v4745
  %v4946 = vrcp.pop %v4746
  %v4947 = vrcp.pop %v4747
  %v4948 = vrcp.pop %v4748
  %v4949 = vrcp.pop %v4749
  %v4950 = vrcp.pop %v4750
  %v4951 = vrcp.pop %v4751
  %v4952 = vrcp.pop %v4752
  %v4953 = vrcp.pop %v4753
  %v4954 = vrcp.pop %v4754
  %v4955 = vrcp.pop %v4755
  %v4956 = vrcp.pop %v4756
  %v4957 = vrcp.pop %v4757
  %v4958 = vrcp.pop %v4758
  %v4959 = vrcp.pop %v4759
  %v4960 = vrcp.pop %v4760
  %v4961 = vrcp.pop %v4761
  %v4962 = vrcp.pop %v4762
  %v4963 = vrcp.pop %v4763
  %v4964 = vrcp.pop %v4764
  %v4965 = vrcp.pop %v4765
  %v4966 = vrcp.pop %v4766
  %v4967 = vrcp.pop %v4767
  %v4968 = vrcp.pop %v4768
  %v4969 = vrcp.pop %v4769
  %v4970 = vrcp.pop %v4770
  %v4971 = vrcp.pop %v4771
  %v4972 = vrcp.pop %v4772
  %v4973 = vrcp.pop %v4773
  %v4974 = vrcp.pop %v4774
  %v4975 = vrcp.pop %v4775
  %v4976 = vrcp.pop %v4776
  %v4977 = vrcp.pop %v4777
  %v4978 = vrcp.pop %v4778
  %v4979 = vrcp.pop %v4779
  %v4980 = vrcp.pop %v4780
  %v4981 = vrcp.pop %v4781
  %v4982 = vrcp.pop %v4782
  %v4983 = vrcp.pop %v4783
  %v4984 = vrcp.pop %v4784
  %v4985 = vrcp.pop %v4785
  %v4986 = vrcp.pop %v4786
  %v4987 = vrcp.pop %v4787
  %v4988 = vrcp.pop %v4788
  %v4989 = vrcp.pop %v4789
  %v4990 = vrcp.pop %v4790
  %v4991 = vrcp.pop %v4791
  %v4992 = vrcp.pop %v4792
  %v4993 = vrcp.pop %v4793
  %v4994 = vrcp.pop %v4794
  %v4995 = vrcp.pop %v4795
  %v4996 = vadd.f32 %v4796, %v4798
  %v4997 = vadd.f32 %v4797, %v4799
  %v4998 = vadd.f32 %v4800, %v4802
  %v4999 = vadd.f32 %v4801, %v4803
  %v5000 = vadd.f32 %v4804, %v4806
  %v5001 = vadd.f32 %v4805, %v4807
  %v5002 = vadd.f32 %v4808, %v4810
  %v5003 = vadd.f32 %v4809, %v4811
  %v5004 = vadd.f32 %v4812, %v4814
  %v5005 = vadd.f32 %v4813, %v4815
  %v5006 = vadd.f32 %v4816, %v4818
  %v5007 = vadd.f32 %v4817, %v4819
  %v5008 = vadd.f32 %v4820, %v4822
  %v5009 = vadd.f32 %v4821, %v4823
  %v5010 = vadd.f32 %v4824, %v4826
  %v5011 = vadd.f32 %v4825, %v4827
  %v5012 = vadd.f32 %v4828, %v4830
  %v5013 = vadd.f32 %v4829, %v4831
  %v5014 = vadd.f32 %v4832, %v4834
  %v5015 = vadd.f32 %v4833, %v4835
  %v5016 = vadd.f32 %v4836, %v4838
  %v5017 = vadd.f32 %v4837, %v4839
  %v5018 = vadd.f32 %v4840, %v4842
  %v5019 = vadd.f32 %v4841, %v4843
  %v5020 = vadd.f32 %v4844, %v4846
  %v5021 = vadd.f32 %v4845, %v4847
  %v5022 = vadd.f32 %v4848, %v4850
  %v5023 = vadd.f32 %v4849, %v4851
  %v5024 = vadd.f32 %v4852, %v4854
  %v5025 = vadd.f32 %v4853, %v4855
  %v5026 = vadd.f32 %v4856, %v4858
  %v5027 = vadd.f32 %v4857, %v4859
  %v5028 = vadd.f32 %v4860, %v4862
  %v5029 = vadd.f32 %v4861, %v4863
  %v5030 = vadd.f32 %v4864, %v4866
  %v5031 = vadd.f32 %v4865, %v4867
  %v5032 = vadd.f32 %v4868, %v4870
  %v5033 = vadd.f32 %v4869, %v4871
  %v5034 = vadd.f32 %v4872, %v4874
  %v5035 = vadd.f32 %v4873, %v4875
  %v5036 = vadd.f32 %v4876, %v4878
  %v5037 = vadd.f32 %v4877, %v4879
  %v5038 = vadd.f32 %v4880, %v4882
  %v5039 = vadd.f32 %v4881, %v4883
  %v5040 = vadd.f32 %v4884, %v4886
  %v5041 = vadd.f32 %v4885, %v4887
  %v5042 = vadd.f32 %v4888, %v4890
  %v5043 = vadd.f32 %v4889, %v4891
  %v5044 = vadd.f32 %v4892, %v4894
  %v5045 = vadd.f32 %v4893, %v4895
  %v5046 = vadd.f32 %v4896, %v4898
  %v5047 = vadd.f32 %v4897, %v4899
  %v5048 = vadd.f32 %v4900, %v4902
  %v5049 = vadd.f32 %v4901, %v4903
  %v5050 = vadd.f32 %v4904, %v4906
  %v5051 = vadd.f32 %v4905, %v4907
  %v5052 = vadd.f32 %v4908, %v4910
  %v5053 = vadd.f32 %v4909, %v4911
  %v5054 = vadd.f32 %v4912, %v4914
  %v5055 = vadd.f32 %v4913, %v4915
  %v5056 = vadd.f32 %v4916, %v4918
  %v5057 = vadd.f32 %v4917, %v4919
  %v5058 = vadd.f32 %v4920, %v4922
  %v5059 = vadd.f32 %v4921, %v4923
  %v5060 = vadd.f32 %v4924, %v4926
  %v5061 = vadd.f32 %v4925, %v4927
  %v5062 = vadd.f32 %v4928, %v4930
  %v5063 = vadd.f32 %v4929, %v4931
  %v5064 = vadd.f32 %v4932, %v4934
  %v5065 = vadd.f32 %v4933, %v4935
  %v5066 = vadd.f32 %v4936, %v4938
  %v5067 = vadd.f32 %v4937, %v4939
  %v5068 = vadd.f32 %v4940, %v4942
  %v5069 = vadd.f32 %v4941, %v4943
  %v5070 = vadd.f32 %v4944, %v4946
  %v5071 = vadd.f32 %v4945, %v4947
  %v5072 = vadd.f32 %v4948, %v4950
  %v5073 = vadd.f32 %v4949, %v4951
  %v5074 = vadd.f32 %v4952, %v4954
  %v5075 = vadd.f32 %v4953, %v4955
  %v5076 = vadd.f32 %v4956, %v4958
  %v5077 = vadd.f32 %v4957, %v4959
  %v5078 = vadd.f32 %v4960, %v4962
  %v5079 = vadd.f32 %v4961, %v4963
  %v5080 = vadd.f32 %v4964, %v4966
  %v5081 = vadd.f32 %v4965, %v4967
  %v5082 = vadd.f32 %v4968, %v4970
  %v5083 = vadd.f32 %v4969, %v4971
  %v5084 = vadd.f32 %v4972, %v4974
  %v5085 = vadd.f32 %v4973, %v4975
  %v5086 = vadd.f32 %v4976, %v4978
  %v5087 = vadd.f32 %v4977, %v4979
  %v5088 = vadd.f32 %v4980, %v4982
  %v5089 = vadd.f32 %v4981, %v4983
  %v5090 = vadd.f32 %v4984, %v4986
  %v5091 = vadd.f32 %v4985, %v4987
  %v5092 = vadd.f32 %v4988, %v4990
  %v5093 = vadd.f32 %v4989, %v4991
  %v5094 = vadd.f32 %v4992, %v4994
  %v5095 = vadd.f32 %v4993, %v4995
  %v5096 = vadd.f32 %v4996, %v4998
  %v5097 = vadd.f32 %v4997, %v4999
  %v5098 = vadd.f32 %v5000, %v5002
  %v5099 = vadd.f32 %v5001, %v5003
  %v5100 = vadd.f32 %v5004, %v5006
  %v5101 = vadd.f32 %v5005, %v5007
  %v5102 = vadd.f32 %v5008, %v5010
  %v5103 = vadd.f32 %v5009, %v5011
  %v5104 = vadd.f32 %v5012, %v5014
  %v5105 = vadd.f32 %v5013, %v5015
  %v5106 = vadd.f32 %v5016, %v5018
  %v5107 = vadd.f32 %v5017, %v5019
  %v5108 = vadd.f32 %v5020, %v5022
  %v5109 = vadd.f32 %v5021, %v5023
  %v5110 = vadd.f32 %v5024, %v5026
  %v5111 = vadd.f32 %v5025, %v5027
  %v5112 = vadd.f32 %v5028, %v5030
  %v5113 = vadd.f32 %v5029, %v5031
  %v5114 = vadd.f32 %v5032, %v5034
  %v5115 = vadd.f32 %v5033, %v5035
  %v5116 = vadd.f32 %v5036, %v5038
  %v5117 = vadd.f32 %v5037, %v5039
  %v5118 = vadd.f32 %v5040, %v5042
  %v5119 = vadd.f32 %v5041, %v5043
  %v5120 = vadd.f32 %v5044, %v5046
  %v5121 = vadd.f32 %v5045, %v5047
  %v5122 = vadd.f32 %v5048, %v5050
  %v5123 = vadd.f32 %v5049, %v5051
  %v5124 = vadd.f32 %v5052, %v5054
  %v5125 = vadd.f32 %v5053, %v5055
  %v5126 = vadd.f32 %v5056, %v5058
  %v5127 = vadd.f32 %v5057, %v5059
  %v5128 = vadd.f32 %v5060, %v5062
  %v5129 = vadd.f32 %v5061, %v5063
  %v5130 = vadd.f32 %v5064, %v5066
  %v5131 = vadd.f32 %v5065, %v5067
  %v5132 = vadd.f32 %v5068, %v5070
  %v5133 = vadd.f32 %v5069, %v5071
  %v5134 = vadd.f32 %v5072, %v5074
  %v5135 = vadd.f32 %v5073, %v5075
  %v5136 = vadd.f32 %v5076, %v5078
  %v5137 = vadd.f32 %v5077, %v5079
  %v5138 = vadd.f32 %v5080, %v5082
  %v5139 = vadd.f32 %v5081, %v5083
  %v5140 = vadd.f32 %v5084, %v5086
  %v5141 = vadd.f32 %v5085, %v5087
  %v5142 = vadd.f32 %v5088, %v5090
  %v5143 = vadd.f32 %v5089, %v5091
  %v5144 = vadd.f32 %v5092, %v5094
  %v5145 = vadd.f32 %v5093, %v5095
  %v5146 = vadd.f32 %v5096, %v5098
  %v5147 = vadd.f32 %v5097, %v5099
  %v5148 = vadd.f32 %v5100, %v5102
  %v5149 = vadd.f32 %v5101, %v5103
  %v5150 = vadd.f32 %v5104, %v5106
  %v5151 = vadd.f32 %v5105, %v5107
  %v5152 = vadd.f32 %v5108, %v5110
  %v5153 = vadd.f32 %v5109, %v5111
  %v5154 = vadd.f32 %v5112, %v5114
  %v5155 = vadd.f32 %v5113, %v5115
  %v5156 = vadd.f32 %v5116, %v5118
  %v5157 = vadd.f32 %v5117, %v5119
  %v5158 = vadd.f32 %v5120, %v5122
  %v5159 = vadd.f32 %v5121, %v5123
  %v5160 = vadd.f32 %v5124, %v5126
  %v5161 = vadd.f32 %v5125, %v5127
  %v5162 = vadd.f32 %v5128, %v5130
  %v5163 = vadd.f32 %v5129, %v5131
  %v5164 = vadd.f32 %v5132, %v5134
  %v5165 = vadd.f32 %v5133, %v5135
  %v5166 = vadd.f32 %v5136, %v5138
  %v5167 = vadd.f32 %v5137, %v5139
  %v5168 = vadd.f32 %v5140, %v5142
  %v5169 = vadd.f32 %v5141, %v5143
  %v5170 = vadd.f32 %v5146, %v5148
  %v5171 = vadd.f32 %v5147, %v5149
  %v5172 = vadd.f32 %v5150, %v5152
  %v5173 = vadd.f32 %v5151, %v5153
  %v5174 = vadd.f32 %v5154, %v5156
  %v5175 = vadd.f32 %v5155, %v5157
  %v5176 = vadd.f32 %v5158, %v5160
  %v5177 = vadd.f32 %v5159, %v5161
  %v5178 = vadd.f32 %v5162, %v5164
  %v5179 = vadd.f32 %v5163, %v5165
  %v5180 = vadd.f32 %v5166, %v5168
  %v5181 = vadd.f32 %v5167, %v5169
  %v5182 = vadd.f32 %v5170, %v5172
  %v5183 = vadd.f32 %v5171, %v5173
  %v5184 = vadd.f32 %v5174, %v5176
  %v5185 = vadd.f32 %v5175, %v5177
  %v5186 = vadd.f32 %v5178, %v5180
  %v5187 = vadd.f32 %v5179, %v5181
  %v5188 = vadd.f32 %v5182, %v5184
  %v5189 = vadd.f32 %v5183, %v5185
  %v5190 = vadd.f32 %v5186, %v5144
  %v5191 = vadd.f32 %v5187, %v5145
  %v5192 = vadd.f32 %v5188, %v5190
  %v5193 = vadd.f32 %v5189, %v5191
  %v5194 = vmul.f32 %v5192, 0.01
  %v5195 = vmul.f32 %v5193, 0.01
  %5196 = vxpose.xlu0.b32.start [1/16] %v5194, 128
  %5197 = vxpose.xlu0.b32.cont [2/16] %v5195, 128
  %5198 = vxpose.xlu0.b32.cont [3/16] 0.0, 128
  %5199 = vxpose.xlu0.b32.cont [4/16] 0.0, 128
  %5200 = vxpose.xlu0.b32.cont [5/16] 0.0, 128
  %5201 = vxpose.xlu0.b32.cont [6/16] 0.0, 128
  %5202 = vxpose.xlu0.b32.cont [7/16] 0.0, 128
  %5203 = vxpose.xlu0.b32.cont [8/16] 0.0, 128
  %5204 = vxpose.xlu0.b32.cont [9/16] 0.0, 128
  %5205 = vxpose.xlu0.b32.cont [10/16] 0.0, 128
  %5206 = vxpose.xlu0.b32.cont [11/16] 0.0, 128
  %5207 = vxpose.xlu0.b32.cont [12/16] 0.0, 128
  %5208 = vxpose.xlu0.b32.cont [13/16] 0.0, 128
  %5209 = vxpose.xlu0.b32.cont [14/16] 0.0, 128
  %5210 = vxpose.xlu0.b32.cont [15/16] 0.0, 128
  %5211 = vxpose.xlu0.b32.end [16/16] 0.0, 128
  %v5212 = vpop.trf.xlu0
  %v5213 = vpop.trf.xlu0
  %v5214 = vpop.trf.xlu0
  %v5215 = vpop.trf.xlu0
  %v5216 = vpop.trf.xlu0
  %v5217 = vpop.trf.xlu0
  %v5218 = vpop.trf.xlu0
  %v5219 = vpop.trf.xlu0
  %v5220 = vpop.trf.xlu0
  %v5221 = vpop.trf.xlu0
  %v5222 = vpop.trf.xlu0
  %v5223 = vpop.trf.xlu0
  %v5224 = vpop.trf.xlu0
  %v5225 = vpop.trf.xlu0
  %v5226 = vpop.trf.xlu0
  %v5227 = vpop.trf.xlu0
  %v5228 = vpack.c.bf16 %v5213, %v5212
  %v5229 = vpack.c.bf16 %v5214, %v5214
  %v5230 = vld [vmem:[%s5] sm:$0xf]
  %v5231 = vld [vmem:[%s5 + $0x4] sm:$0xf]
  %v5232 = vld [vmem:[%s5 + $0x8] sm:$0x3]
  %v5233 = vld [vmem:[%s6] sm:$0xff]
  %v5234 = vld [vmem:[%s6 + $0x8] sm:$0xff]
  %v5235 = vld [vmem:[%s6 + $0x10] sm:$0xf]
  %5237 = vset.pattern.permute.xlu0 0
  %5238 = vperm.xlu0 %5237, %v5233
  %v5239 = vpop.permute.xlu0 %5238
  %5242 = vset.pattern.permute.xlu0 0
  %5243 = vperm.xlu0 %5242, %v5234
  %v5244 = vpop.permute.xlu0 %5243
  %5247 = vset.pattern.permute.xlu0 0
  %5248 = vperm.xlu0 %5247, %v5235
  %v5249 = vpop.permute.xlu0 %5248
  %v5254 = vunpack.c.l.b16 %v5230
  %v5255 = vunpack.c.l.b16 %v5231
  %v5256 = vunpack.c.l.b16 %v5232
  %v5257 = vpack.c.b16 %v5255, %v5254
  %v5258 = vpack.c.b16 %v5256, %v5256
  %v5260 = vsel %vm2858, %v5257, 0
  %v5263 = vsel %vm2858, %v5258, 0
  %v5266 = vsel %vm3159, %v5229, 0
  %5268 = vmatprep.subr.bf16.mxu0 0
  %5269 = vmatpush1.bf16.msra.mxu0 0
  %5270 = vmatprep.subr.bf16.mxu0 0
  %5271 = vmatpush1.bf16.msra.mxu0 0
  %5272 = vmatprep.subr.bf16.mxu0 0
  %5273 = vmatpush1.bf16.msra.mxu0 0
  %5274 = vmatprep.subr.bf16.mxu0 0
  %5275 = vmatpush1.bf16.msra.mxu0 0
  %5276 = vmatprep.subr.bf16.mxu0 0
  %5277 = vmatpush1.bf16.msra.mxu0 0
  %5278 = vmatprep.subr.bf16.mxu0 0
  %5279 = vmatpush1.bf16.msra.mxu0 0
  %5280 = vmatprep.subr.bf16.mxu0 0
  %5281 = vmatpush1.bf16.msra.mxu0 %v5266
  %5282 = vmatprep.subr.bf16.mxu0 0
  %5283 = vmatpush1.bf16.msra.mxu0 %v5228
  %5284 = vmatprep.subr.bf16.mxu0 0
  %5285 = vmatpush2.bf16.msra.mxu0 0
  %5286 = vmatprep.subr.bf16.mxu0 0
  %5287 = vmatpush2.bf16.msra.mxu0 0
  %5288 = vmatprep.subr.bf16.mxu0 0
  %5289 = vmatpush2.bf16.msra.mxu0 0
  %5290 = vmatprep.subr.bf16.mxu0 0
  %5291 = vmatpush2.bf16.msra.mxu0 0
  %5292 = vmatprep.subr.bf16.mxu0 0
  %5293 = vmatpush2.bf16.msra.mxu0 0
  %5294 = vmatprep.subr.bf16.mxu0 0
  %5295 = vmatpush2.bf16.msra.mxu0 0
  %5296 = vmatprep.subr.bf16.mxu0 0
  %5297 = vmatpush2.bf16.msra.mxu0 0
  %5298 = vmatprep.subr.bf16.mxu0 0
  %5299 = vmatpush2.bf16.msra.mxu0 0
  %5300 = vmatprep.mubr.bf16.mxu0 0
  %5301 = vmatmul.mubr.bf16.gmra.mxu0 %v5260
  %v5302 = vpop.f32.mrf.mxu0
  %v5303 = vadd.f32 %v5239, %v5302
  %v5304 = vpop.f32.mrf.mxu0
  %v5305 = vpop.f32.mrf.mxu0
  %v5306 = vadd.f32 %v5244, %v5305
  %v5307 = vpop.f32.mrf.mxu0
  %5308 = vmatprep.mubr.bf16.mxu0 0
  %5309 = vmatmul.mubr.bf16.gmra.mxu0 %v5263
  %v5310 = vpop.f32.mrf.mxu0
  %v5311 = vadd.f32 %v5249, %v5310
  %v5312 = vpop.f32.mrf.mxu0
  %v5313 = vpop.f32.mrf.mxu0
  %v5314 = vpop.f32.mrf.mxu0
  %5315 = vdwg.mxu0
  %v5316 = vsub.f32 0.0, %v5303
  %v5317 = vsub.f32 0.0, %v5306
  %v5318 = vsub.f32 0.0, %v5311
  %v5319 = vmul.f32 %v5316, 1.442695
  %v5320 = vpow.pop %v5319
  %v5321 = vmul.f32 %v5317, 1.442695
  %v5322 = vpow.pop %v5321
  %v5323 = vmul.f32 %v5318, 1.442695
  %v5324 = vpow.pop %v5323
  %v5325 = vadd.f32 %v5320, 1.0
  %v5326 = vadd.f32 %v5322, 1.0
  %v5327 = vadd.f32 %v5324, 1.0
  %v5328 = vrcp.pop %v5325
  %v5329 = vrcp.pop %v5326
  %v5330 = vrcp.pop %v5327
  %v5331 = vld [vmem:[%s7] sm:$0xff]
  %v5332 = vld [vmem:[%s7 + $0x8] sm:$0xff]
  %v5333 = vld [vmem:[%s7 + $0x10] sm:$0xf]
  %5335 = vset.pattern.permute.xlu0 0
  %5336 = vperm.xlu0 %5335, %v5331
  %v5337 = vpop.permute.xlu0 %5336
  %5340 = vset.pattern.permute.xlu0 0
  %5341 = vperm.xlu0 %5340, %v5332
  %v5342 = vpop.permute.xlu0 %5341
  %5345 = vset.pattern.permute.xlu0 0
  %5346 = vperm.xlu0 %5345, %v5333
  %v5347 = vpop.permute.xlu0 %5346
  %v5349 = vmul.f32 %v5328, %v5337
  %v5350 = vmul.f32 %v5329, %v5342
  %v5351 = vmul.f32 %v5330, %v5347
  %vm5352 = vcmask 130048
  %v5353 = vsel %vm5352, %v5349, 0.0
  %v5354 = vsel %vm5352, %v5350, 0.0
  %v5355 = vadd.f32 %v5353, %v5354
  %vm5356 = vcmask 125952
  %v5357 = vsel %vm5356, %v5351, 0.0
  %v5358 = vadd.f32 %v5355, %v5357
  %v5359 = vrot.slane %v5358, 4
  %v5360 = vadd.f32 %v5358, %v5359
  %v5361 = vrot.slane %v5360, 2
  %v5362 = vadd.f32 %v5360, %v5361
  %v5363 = vrot.slane %v5362, 1
  %v5364 = vadd.f32 %v5362, %v5363
  %v5365 = vld [vmem:[#allocation2] sm:$0x1]
  %5367 = vset.pattern.permute.xlu0 0
  %5368 = vperm.xlu0 %5367, %v5365
  %v5369 = vpop.permute.xlu0 %5368
  %v5371 = vlaneseq
  %v5372 = vshrl.u32 %v5371, 7
  %v5373 = vsub.s32 0, %v5372
  %v5374 = vrot.slane %v5369, %v5373
  %v5375 = vadd.f32 %v5364, %v5374
  %v5376 = vsub.f32 0.0, %v5375
  %v5377 = vmul.f32 %v5376, 1.442695
  %v5378 = vpow.pop %v5377
  %v5379 = vadd.f32 %v5378, 1.0
  %v5380 = vrcp.pop %v5379
  %vm5381 = vcmask 122880
  %5382 = vst.msk [vmem:[%s9] sm:$0x1] %vm5381, %v5380
  // Predicated region
  $region38: #{epi_forward.1} parent=0 // pred_check
    _
  $region39: #{epi_forward.1} parent=0 // pred_check_branch
    %5384 = sbr.rel (0) target = $region41
  $region40: #{epi_forward.1} parent=0 // pred_region
    _
  $region41: #{epi_forward.1} parent=0 // pred_fallthru
    _
  // Predicated region
  $region42: #{epi_forward.1} parent=0 // pred_check
    _
  $region43: #{epi_forward.1} parent=0 // pred_check_branch
    %5386 = sbr.rel (0) target = $region45
  $region44: #{epi_forward.1} parent=0 // pred_region
    _
  $region45: #{epi_forward.1} parent=0 // pred_fallthru
    _

</llo_original>
